<compile_context>
chip_gen: v5e
topology: v5e:2x2
jax: 0.10.0
libtpu: 0.0.40
codegen_flags: <defaults>
</compile_context>

<pallas_src>
import functools

import jax
import jax.numpy as jnp
from jax.experimental import pallas as pl
from jax.experimental.pallas import tpu as pltpu

LANE = 128


def _round_up(v, m):
    return (v + m - 1) // m * m


def _nbytes(shape, itemsize):
    n = 1
    for s in shape:
        n *= int(s)
    return n * itemsize


def _pick_nb(n, h, w, max_rows=512):
    """Largest divisor of n (<=8) such that nb*h*w <= max_rows; at least 1."""
    best = 1
    for cand in range(1, min(n, 8) + 1):
        if n % cand == 0 and cand * h * w <= max_rows:
            best = cand
    return best


# ----------------------------------------------------------------------------
# Fused kernel: conv1+bn1+relu -> conv2(3x3)+bn2+relu -> conv3+bn3+add+relu
# ----------------------------------------------------------------------------
def _bottleneck_kernel(x_ref, w1_ref, b1_ref, w2_ref, b2_ref, w3_ref, b3_ref,
                       o_ref, h1pad_ref, *, NB, H, W):
    Cp = x_ref.shape[-1]           # padded in/out channel width (mult. of 128)
    Wp = w1_ref.shape[-1]          # padded internal width (mult. of 128)
    R = NB * H * W                 # matmul rows per grid step

    # ---- conv1 (1x1) + bn1 (scale folded into w1) + relu --------------------
    x_bf = x_ref[...].reshape(R, Cp).astype(jnp.bfloat16)
    h1 = jnp.dot(x_bf, w1_ref[...], preferred_element_type=jnp.float32)
    h1 = jnp.maximum(h1 + b1_ref[...], 0.0)            # (R, Wp) f32

    # ---- stage h1 (bf16) into the halo; zero only the border slabs ---------
    # The 3x3 read windows only touch rows 0..H+1 and cols 0..W+1.
    zrow = jnp.zeros((NB, 1, W + 2, Wp), jnp.bfloat16)
    h1pad_ref[:, 0:1, 0:W + 2, :] = zrow
    h1pad_ref[:, H + 1:H + 2, 0:W + 2, :] = zrow
    zcol = jnp.zeros((NB, H, 1, Wp), jnp.bfloat16)
    h1pad_ref[:, 1:H + 1, 0:1, :] = zcol
    h1pad_ref[:, 1:H + 1, W + 1:W + 2, :] = zcol
    h1pad_ref[:, 1:H + 1, 1:W + 1, :] = (
        h1.astype(jnp.bfloat16).reshape(NB, H, W, Wp))

    # ---- conv2 (3x3, pad=1, stride=1) as a 9-tap MXU reduction --------------
    def tap(t):
        dy, dx = t // 3, t % 3
        xt = h1pad_ref[:, dy:dy + H, dx:dx + W, :].reshape(R, Wp)
        return jnp.dot(xt, w2_ref[t], preferred_element_type=jnp.float32)

    acc = tap(0)                                       # direct assign (no zeros)
    for t in range(1, 9):
        acc = acc + tap(t)
    h2 = jnp.maximum(acc + b2_ref[...], 0.0).astype(jnp.bfloat16)

    # ---- conv3 (1x1) + bn3 + residual add + relu ----------------------------
    y = jnp.dot(h2, w3_ref[...], preferred_element_type=jnp.float32)
    y = y + b3_ref[...] + x_ref[...].reshape(R, Cp)    # re-read resident x block
    o_ref[...] = jnp.maximum(y, 0.0).reshape(NB, H, W, Cp).astype(o_ref.dtype)


# ----------------------------------------------------------------------------
# NHWC wrapper: BN folding, weight packing/padding, pallas_call
# ----------------------------------------------------------------------------
def bottleneck_forward_nhwc(x_nhwc, params, *, eps=1e-5):
    """x_nhwc: (N, H, W, Cin) float32.  Returns (N, H, W, Cout) float32."""
    N, H, W, Cin = x_nhwc.shape
    w1, bn1, w2, bn2, w3, bn3 = (
        params["w1"], params["bn1"], params["w2"], params["bn2"],
        params["w3"], params["bn3"],
    )
    width = w1.shape[0]
    cout = w3.shape[0]
    assert Cin == cout, "downsample=None path requires inplanes == planes*4"

    Wp = _round_up(width, LANE)     # lane-dense internal channel width
    Cp = _round_up(Cin, LANE)       # lane-dense in/out channel width
    NB = _pick_nb(N, H, W)          # images per grid step (fills MXU rows)
    Wh = _round_up(W + 2, 8)        # sublane-padded halo width

    def fold(stats):
        g, b, m, v = stats
        s = g / jnp.sqrt(v + eps)
        return s, b - m * s

    s1, b1 = fold(bn1)
    s2, b2 = fold(bn2)
    s3, b3 = fold(bn3)

    # conv1 weight: (width, Cin, 1, 1) -> (Cp, Wp), BN scale folded per out col.
    w1m = (jnp.zeros((Cp, Wp), jnp.float32)
           .at[:Cin, :width].set(w1.reshape(width, Cin).T * s1[None, :])
           .astype(jnp.bfloat16))
    b1p = jnp.zeros((1, Wp), jnp.float32).at[0, :width].set(b1)

    # conv2 weight: (width, width, 3, 3) -> (9 taps, Wp_in, Wp_out), scale folded.
    w2taps = jnp.transpose(w2, (2, 3, 1, 0)).reshape(9, width, width)  # (tap,ci,co)
    w2p = (jnp.zeros((9, Wp, Wp), jnp.float32)
           .at[:, :width, :width].set(w2taps * s2[None, None, :])
           .astype(jnp.bfloat16))
    b2p = jnp.zeros((1, Wp), jnp.float32).at[0, :width].set(b2)

    # conv3 weight: (cout, width, 1, 1) -> (Wp, Cp), scale folded per out col.
    w3m = (jnp.zeros((Wp, Cp), jnp.float32)
           .at[:width, :cout].set(w3.reshape(cout, width).T * s3[None, :])
           .astype(jnp.bfloat16))
    b3p = jnp.zeros((1, Cp), jnp.float32).at[0, :cout].set(b3)

    # Pad input channels to lane-dense width (zeros propagate as exact zeros).
    x_p = x_nhwc if Cp == Cin else jnp.pad(
        x_nhwc, ((0, 0), (0, 0), (0, 0), (0, Cp - Cin)))

    # VMEM budget derived from actual buffer sizes (with headroom), capped by
    # the chip's physical VMEM.
    rows = NB * H * W
    needed = (
        4 * _nbytes((NB, H, W, Cp), 4)                         # x/out, 2x-buffered
        + 2 * (_nbytes((Cp, Wp), 2) + _nbytes((9, Wp, Wp), 2)
               + _nbytes((Wp, Cp), 2))                         # bf16 weights
        + 6 * _nbytes((1, max(Wp, Cp)), 4)                     # biases
        + _nbytes((NB, H + 2, Wh, Wp), 2)                      # bf16 halo scratch
        + 8 * rows * Wp * 4                                    # live intermediates
    )
    try:
        phys = int(pltpu.get_tpu_info().vmem_capacity_bytes)
    except Exception:
        phys = 64 << 20
    vmem_limit = int(max(32 << 20, min(2 * needed + (8 << 20), phys * 3 // 4)))

    kern = functools.partial(_bottleneck_kernel, NB=NB, H=H, W=W)
    out_p = pl.pallas_call(
        kern,
        out_shape=jax.ShapeDtypeStruct((N, H, W, Cp), x_nhwc.dtype),
        grid=(N // NB,),
        in_specs=[
            pl.BlockSpec((NB, H, W, Cp), lambda n: (n, 0, 0, 0)),  # x tile
            pl.BlockSpec((Cp, Wp), lambda n: (0, 0)),              # w1 (resident)
            pl.BlockSpec((1, Wp), lambda n: (0, 0)),               # b1
            pl.BlockSpec((9, Wp, Wp), lambda n: (0, 0, 0)),        # w2 taps
            pl.BlockSpec((1, Wp), lambda n: (0, 0)),               # b2
            pl.BlockSpec((Wp, Cp), lambda n: (0, 0)),              # w3
            pl.BlockSpec((1, Cp), lambda n: (0, 0)),               # b3
        ],
        out_specs=pl.BlockSpec((NB, H, W, Cp), lambda n: (n, 0, 0, 0)),
        scratch_shapes=[pltpu.VMEM((NB, H + 2, Wh, Wp), jnp.bfloat16)],  # halo
        compiler_params=pltpu.CompilerParams(
            dimension_semantics=("parallel",),       # megacore sharding over N
            vmem_limit_bytes=vmem_limit,
        ),
    )(x_p, w1m, b1p, w2p, b2p, w3m, b3p)

    return out_p if Cp == cout else out_p[..., :cout]


def bottleneck_forward(x_nchw, params, *, eps=1e-5):
    """NCHW compatibility wrapper around the NHWC kernel (matches PyTorch I/O)."""
    x_nhwc = jnp.transpose(x_nchw, (0, 2, 3, 1))
    out_nhwc = bottleneck_forward_nhwc(x_nhwc, params, eps=eps)
    return jnp.transpose(out_nhwc, (0, 3, 1, 2))


# ----------------------------------------------------------------------------
# Pure-JAX reference (f32) for the correctness check
# ----------------------------------------------------------------------------
def _ref_forward(x, params, eps=1e-5):
    def conv(x, w, padding=0):
        return jax.lax.conv_general_dilated(
            x, w, window_strides=(1, 1),
            padding=[(padding, padding), (padding, padding)],
            dimension_numbers=("NCHW", "OIHW", "NCHW"),
        )

    def bn(x, stats):
        g, b, m, v = stats
        sh = (1, -1, 1, 1)
        return (x - m.reshape(sh)) / jnp.sqrt(v.reshape(sh) + eps) * g.reshape(sh) + b.reshape(sh)

    out = jax.nn.relu(bn(conv(x, params["w1"]), params["bn1"]))
    out = jax.nn.relu(bn(conv(out, params["w2"], padding=1), params["bn2"]))
    out = bn(conv(out, params["w3"]), params["bn3"])
    return jax.nn.relu(out + x)


# ----------------------------------------------------------------------------
# Main
# ----------------------------------------------------------------------------
def _make_params(key, inplanes, planes):
    expansion = 4
    width = planes           # base_width=64, groups=1
    cout = planes * expansion
    ks = jax.random.split(key, 6)

    def bn_stats(k, c):
        k1, k2, k3, k4 = jax.random.split(k, 4)
        gamma = jax.random.uniform(k1, (c,), minval=0.5, maxval=1.5)
        beta = 0.1 * jax.random.normal(k2, (c,))
        mean = 0.1 * jax.random.normal(k3, (c,))
        var = jax.random.uniform(k4, (c,), minval=0.5, maxval=1.5)
        return (gamma, beta, mean, var)

    params = {
        "w1": 0.1 * jax.random.normal(ks[0], (width, inplanes, 1, 1)),
        "bn1": bn_stats(ks[1], width),
        "w2": 0.1 * jax.random.normal(ks[2], (width, width, 3, 3)),
        "bn2": bn_stats(ks[3], width),
        "w3": 0.1 * jax.random.normal(ks[4], (cout, width, 1, 1)),
        "bn3": bn_stats(ks[5], cout),
    }
    return jax.tree.map(lambda a: a.astype(jnp.float32), params)


if __name__ == "__main__":
    key = jax.random.PRNGKey(0)
    k_x, k_p = jax.random.split(key)

    # Small shapes consistent with the module: inplanes = planes * expansion so
    # the residual add works with downsample=None, stride=1.
    N, planes, H, W = 2, 8, 8, 8
    inplanes = planes * 4  # 32

    x = jax.random.normal(k_x, (N, inplanes, H, W), dtype=jnp.float32)
    params = _make_params(k_p, inplanes, planes)

    out = jax.block_until_ready(bottleneck_forward(x, params))
    ref = jax.block_until_ready(_ref_forward(x, params))

    assert out.shape == ref.shape == (N, inplanes, H, W)
    # bf16 matmul operands with f32 accumulation -> loosened tolerance.
    max_err = jnp.max(jnp.abs(out - ref))
    assert max_err < 5e-2, f"mismatch vs. reference conv path (max abs err {max_err})"

    print("KERNEL_OK")
</pallas_src>

<mosaic_0001>
module attributes {stable_mosaic.version = 11 : i64} {
  func.func @_bottleneck_kernel(%arg0: i32, %arg1: memref<2x8x8x128xf32, #tpu.memory_space<vmem>>, %arg2: memref<128x128xbf16, #tpu.memory_space<vmem>>, %arg3: memref<1x128xf32, #tpu.memory_space<vmem>>, %arg4: memref<9x128x128xbf16, #tpu.memory_space<vmem>>, %arg5: memref<1x128xf32, #tpu.memory_space<vmem>>, %arg6: memref<128x128xbf16, #tpu.memory_space<vmem>>, %arg7: memref<1x128xf32, #tpu.memory_space<vmem>>, %arg8: memref<2x8x8x128xf32, #tpu.memory_space<vmem>>, %arg9: memref<2x10x16x128xbf16, #tpu.memory_space<vmem>>) attributes {dimension_semantics = [#tpu.dimension_semantics<parallel>], iteration_bounds = array<i64: 1>, scalar_prefetch = 0 : i64, scratch_operands = 1 : i64, tpu.core_type = #tpu.core_type<tc>, window_params = [{transform_indices = @transform_0, window_bounds = array<i64: 2, 8, 8, 128>}, {pipeline_mode = #tpu.pipeline_mode<synchronous>, transform_indices = @transform_1, window_bounds = array<i64: 128, 128>}, {pipeline_mode = #tpu.pipeline_mode<synchronous>, transform_indices = @transform_2, window_bounds = array<i64: 1, 128>}, {pipeline_mode = #tpu.pipeline_mode<synchronous>, transform_indices = @transform_3, window_bounds = array<i64: 9, 128, 128>}, {pipeline_mode = #tpu.pipeline_mode<synchronous>, transform_indices = @transform_4, window_bounds = array<i64: 1, 128>}, {pipeline_mode = #tpu.pipeline_mode<synchronous>, transform_indices = @transform_5, window_bounds = array<i64: 128, 128>}, {pipeline_mode = #tpu.pipeline_mode<synchronous>, transform_indices = @transform_6, window_bounds = array<i64: 1, 128>}, {transform_indices = @transform_7, window_bounds = array<i64: 2, 8, 8, 128>}]} {
    %c0 = arith.constant 0 : index
    %c0_0 = arith.constant 0 : index
    %c0_1 = arith.constant 0 : index
    %c0_2 = arith.constant 0 : index
    %0 = vector.load %arg1[%c0, %c0_0, %c0_1, %c0_2] : memref<2x8x8x128xf32, #tpu.memory_space<vmem>>, vector<2x8x8x128xf32>
    %1 = vector.shape_cast %0 : vector<2x8x8x128xf32> to vector<128x128xf32>
    %2 = arith.truncf %1 : vector<128x128xf32> to vector<128x128xbf16>
    %c0_3 = arith.constant 0 : index
    %c0_4 = arith.constant 0 : index
    %3 = vector.load %arg2[%c0_3, %c0_4] : memref<128x128xbf16, #tpu.memory_space<vmem>>, vector<128x128xbf16>
    %cst = arith.constant dense<0.000000e+00> : vector<128x128xf32>
    %4 = tpu.matmul %2, %3, %cst {dimension_numbers = #tpu.dot_dimension_numbers<[1], [0], [0], [1], [0, 0, 1, 1], [], []>} : vector<128x128xbf16>, vector<128x128xbf16>, vector<128x128xf32> -> vector<128x128xf32>
    %c0_5 = arith.constant 0 : index
    %c0_6 = arith.constant 0 : index
    %5 = vector.load %arg3[%c0_5, %c0_6] : memref<1x128xf32, #tpu.memory_space<vmem>>, vector<1x128xf32>
    %6 = vector.broadcast %5 : vector<1x128xf32> to vector<128x128xf32>
    %7 = arith.addf %4, %6 : vector<128x128xf32>
    %cst_7 = arith.constant 0.000000e+00 : f32
    %8 = vector.broadcast %cst_7 : f32 to vector<128x128xf32>
    %9 = arith.maximumf %7, %8 : vector<128x128xf32>
    %cst_8 = arith.constant 0.000000e+00 : bf16
    %10 = vector.broadcast %cst_8 : bf16 to vector<2x1x10x128xbf16>
    %c0_9 = arith.constant 0 : index
    %c0_10 = arith.constant 0 : index
    %c0_11 = arith.constant 0 : index
    %c0_12 = arith.constant 0 : index
    %11 = vector.load %arg9[%c0_9, %c0_10, %c0_11, %c0_12] : memref<2x10x16x128xbf16, #tpu.memory_space<vmem>>, vector<2x1x10x128xbf16>
    tpu.vector_store %arg9[%c0_9, %c0_10, %c0_11, %c0_12], %10 {strides = array<i32>} : memref<2x10x16x128xbf16, #tpu.memory_space<vmem>>, vector<2x1x10x128xbf16>,
    %c0_13 = arith.constant 0 : index
    %c9 = arith.constant 9 : index
    %c0_14 = arith.constant 0 : index
    %c0_15 = arith.constant 0 : index
    %12 = vector.load %arg9[%c0_13, %c9, %c0_14, %c0_15] : memref<2x10x16x128xbf16, #tpu.memory_space<vmem>>, vector<2x1x10x128xbf16>
    tpu.vector_store %arg9[%c0_13, %c9, %c0_14, %c0_15], %10 {strides = array<i32>} : memref<2x10x16x128xbf16, #tpu.memory_space<vmem>>, vector<2x1x10x128xbf16>,
    %cst_16 = arith.constant 0.000000e+00 : bf16
    %13 = vector.broadcast %cst_16 : bf16 to vector<2x8x1x128xbf16>
    %c0_17 = arith.constant 0 : index
    %c1 = arith.constant 1 : index
    %c0_18 = arith.constant 0 : index
    %c0_19 = arith.constant 0 : index
    %14 = vector.load %arg9[%c0_17, %c1, %c0_18, %c0_19] : memref<2x10x16x128xbf16, #tpu.memory_space<vmem>>, vector<2x8x1x128xbf16>
    tpu.vector_store %arg9[%c0_17, %c1, %c0_18, %c0_19], %13 {strides = array<i32>} : memref<2x10x16x128xbf16, #tpu.memory_space<vmem>>, vector<2x8x1x128xbf16>,
    %c0_20 = arith.constant 0 : index
    %c1_21 = arith.constant 1 : index
    %c9_22 = arith.constant 9 : index
    %c0_23 = arith.constant 0 : index
    %15 = vector.load %arg9[%c0_20, %c1_21, %c9_22, %c0_23] : memref<2x10x16x128xbf16, #tpu.memory_space<vmem>>, vector<2x8x1x128xbf16>
    tpu.vector_store %arg9[%c0_20, %c1_21, %c9_22, %c0_23], %13 {strides = array<i32>} : memref<2x10x16x128xbf16, #tpu.memory_space<vmem>>, vector<2x8x1x128xbf16>,
    %16 = arith.truncf %9 : vector<128x128xf32> to vector<128x128xbf16>
    %17 = vector.shape_cast %16 : vector<128x128xbf16> to vector<2x8x8x128xbf16>
    %c0_24 = arith.constant 0 : index
    %c1_25 = arith.constant 1 : index
    %c1_26 = arith.constant 1 : index
    %c0_27 = arith.constant 0 : index
    %18 = vector.load %arg9[%c0_24, %c1_25, %c1_26, %c0_27] : memref<2x10x16x128xbf16, #tpu.memory_space<vmem>>, vector<2x8x8x128xbf16>
    tpu.vector_store %arg9[%c0_24, %c1_25, %c1_26, %c0_27], %17 {strides = array<i32>} : memref<2x10x16x128xbf16, #tpu.memory_space<vmem>>, vector<2x8x8x128xbf16>,
    %c0_28 = arith.constant 0 : index
    %c0_29 = arith.constant 0 : index
    %c0_30 = arith.constant 0 : index
    %c0_31 = arith.constant 0 : index
    %19 = vector.load %arg9[%c0_28, %c0_29, %c0_30, %c0_31] : memref<2x10x16x128xbf16, #tpu.memory_space<vmem>>, vector<2x8x8x128xbf16>
    %20 = vector.shape_cast %19 : vector<2x8x8x128xbf16> to vector<128x128xbf16>
    %c0_32 = arith.constant 0 : index
    %c0_33 = arith.constant 0 : index
    %c0_34 = arith.constant 0 : index
    %21 = vector.load %arg4[%c0_32, %c0_33, %c0_34] : memref<9x128x128xbf16, #tpu.memory_space<vmem>>, vector<1x128x128xbf16>
    %22 = vector.shape_cast %21 : vector<1x128x128xbf16> to vector<128x128xbf16>
    %cst_35 = arith.constant dense<0.000000e+00> : vector<128x128xf32>
    %23 = tpu.matmul %20, %22, %cst_35 {dimension_numbers = #tpu.dot_dimension_numbers<[1], [0], [0], [1], [0, 0, 1, 1], [], []>} : vector<128x128xbf16>, vector<128x128xbf16>, vector<128x128xf32> -> vector<128x128xf32>
    %c0_36 = arith.constant 0 : index
    %c0_37 = arith.constant 0 : index
    %c1_38 = arith.constant 1 : index
    %c0_39 = arith.constant 0 : index
    %24 = vector.load %arg9[%c0_36, %c0_37, %c1_38, %c0_39] : memref<2x10x16x128xbf16, #tpu.memory_space<vmem>>, vector<2x8x8x128xbf16>
    %25 = vector.shape_cast %24 : vector<2x8x8x128xbf16> to vector<128x128xbf16>
    %c1_40 = arith.constant 1 : index
    %c0_41 = arith.constant 0 : index
    %c0_42 = arith.constant 0 : index
    %26 = vector.load %arg4[%c1_40, %c0_41, %c0_42] : memref<9x128x128xbf16, #tpu.memory_space<vmem>>, vector<1x128x128xbf16>
    %27 = vector.shape_cast %26 : vector<1x128x128xbf16> to vector<128x128xbf16>
    %cst_43 = arith.constant dense<0.000000e+00> : vector<128x128xf32>
    %28 = tpu.matmul %25, %27, %cst_43 {dimension_numbers = #tpu.dot_dimension_numbers<[1], [0], [0], [1], [0, 0, 1, 1], [], []>} : vector<128x128xbf16>, vector<128x128xbf16>, vector<128x128xf32> -> vector<128x128xf32>
    %29 = arith.addf %23, %28 : vector<128x128xf32>
    %c0_44 = arith.constant 0 : index
    %c0_45 = arith.constant 0 : index
    %c2 = arith.constant 2 : index
    %c0_46 = arith.constant 0 : index
    %30 = vector.load %arg9[%c0_44, %c0_45, %c2, %c0_46] : memref<2x10x16x128xbf16, #tpu.memory_space<vmem>>, vector<2x8x8x128xbf16>
    %31 = vector.shape_cast %30 : vector<2x8x8x128xbf16> to vector<128x128xbf16>
    %c2_47 = arith.constant 2 : index
    %c0_48 = arith.constant 0 : index
    %c0_49 = arith.constant 0 : index
    %32 = vector.load %arg4[%c2_47, %c0_48, %c0_49] : memref<9x128x128xbf16, #tpu.memory_space<vmem>>, vector<1x128x128xbf16>
    %33 = vector.shape_cast %32 : vector<1x128x128xbf16> to vector<128x128xbf16>
    %cst_50 = arith.constant dense<0.000000e+00> : vector<128x128xf32>
    %34 = tpu.matmul %31, %33, %cst_50 {dimension_numbers = #tpu.dot_dimension_numbers<[1], [0], [0], [1], [0, 0, 1, 1], [], []>} : vector<128x128xbf16>, vector<128x128xbf16>, vector<128x128xf32> -> vector<128x128xf32>
    %35 = arith.addf %29, %34 : vector<128x128xf32>
    %c0_51 = arith.constant 0 : index
    %c1_52 = arith.constant 1 : index
    %c0_53 = arith.constant 0 : index
    %c0_54 = arith.constant 0 : index
    %36 = vector.load %arg9[%c0_51, %c1_52, %c0_53, %c0_54] : memref<2x10x16x128xbf16, #tpu.memory_space<vmem>>, vector<2x8x8x128xbf16>
    %37 = vector.shape_cast %36 : vector<2x8x8x128xbf16> to vector<128x128xbf16>
    %c3 = arith.constant 3 : index
    %c0_55 = arith.constant 0 : index
    %c0_56 = arith.constant 0 : index
    %38 = vector.load %arg4[%c3, %c0_55, %c0_56] : memref<9x128x128xbf16, #tpu.memory_space<vmem>>, vector<1x128x128xbf16>
    %39 = vector.shape_cast %38 : vector<1x128x128xbf16> to vector<128x128xbf16>
    %cst_57 = arith.constant dense<0.000000e+00> : vector<128x128xf32>
    %40 = tpu.matmul %37, %39, %cst_57 {dimension_numbers = #tpu.dot_dimension_numbers<[1], [0], [0], [1], [0, 0, 1, 1], [], []>} : vector<128x128xbf16>, vector<128x128xbf16>, vector<128x128xf32> -> vector<128x128xf32>
    %41 = arith.addf %35, %40 : vector<128x128xf32>
    %c0_58 = arith.constant 0 : index
    %c1_59 = arith.constant 1 : index
    %c1_60 = arith.constant 1 : index
    %c0_61 = arith.constant 0 : index
    %42 = vector.load %arg9[%c0_58, %c1_59, %c1_60, %c0_61] : memref<2x10x16x128xbf16, #tpu.memory_space<vmem>>, vector<2x8x8x128xbf16>
    %43 = vector.shape_cast %42 : vector<2x8x8x128xbf16> to vector<128x128xbf16>
    %c4 = arith.constant 4 : index
    %c0_62 = arith.constant 0 : index
    %c0_63 = arith.constant 0 : index
    %44 = vector.load %arg4[%c4, %c0_62, %c0_63] : memref<9x128x128xbf16, #tpu.memory_space<vmem>>, vector<1x128x128xbf16>
    %45 = vector.shape_cast %44 : vector<1x128x128xbf16> to vector<128x128xbf16>
    %cst_64 = arith.constant dense<0.000000e+00> : vector<128x128xf32>
    %46 = tpu.matmul %43, %45, %cst_64 {dimension_numbers = #tpu.dot_dimension_numbers<[1], [0], [0], [1], [0, 0, 1, 1], [], []>} : vector<128x128xbf16>, vector<128x128xbf16>, vector<128x128xf32> -> vector<128x128xf32>
    %47 = arith.addf %41, %46 : vector<128x128xf32>
    %c0_65 = arith.constant 0 : index
    %c1_66 = arith.constant 1 : index
    %c2_67 = arith.constant 2 : index
    %c0_68 = arith.constant 0 : index
    %48 = vector.load %arg9[%c0_65, %c1_66, %c2_67, %c0_68] : memref<2x10x16x128xbf16, #tpu.memory_space<vmem>>, vector<2x8x8x128xbf16>
    %49 = vector.shape_cast %48 : vector<2x8x8x128xbf16> to vector<128x128xbf16>
    %c5 = arith.constant 5 : index
    %c0_69 = arith.constant 0 : index
    %c0_70 = arith.constant 0 : index
    %50 = vector.load %arg4[%c5, %c0_69, %c0_70] : memref<9x128x128xbf16, #tpu.memory_space<vmem>>, vector<1x128x128xbf16>
    %51 = vector.shape_cast %50 : vector<1x128x128xbf16> to vector<128x128xbf16>
    %cst_71 = arith.constant dense<0.000000e+00> : vector<128x128xf32>
    %52 = tpu.matmul %49, %51, %cst_71 {dimension_numbers = #tpu.dot_dimension_numbers<[1], [0], [0], [1], [0, 0, 1, 1], [], []>} : vector<128x128xbf16>, vector<128x128xbf16>, vector<128x128xf32> -> vector<128x128xf32>
    %53 = arith.addf %47, %52 : vector<128x128xf32>
    %c0_72 = arith.constant 0 : index
    %c2_73 = arith.constant 2 : index
    %c0_74 = arith.constant 0 : index
    %c0_75 = arith.constant 0 : index
    %54 = vector.load %arg9[%c0_72, %c2_73, %c0_74, %c0_75] : memref<2x10x16x128xbf16, #tpu.memory_space<vmem>>, vector<2x8x8x128xbf16>
    %55 = vector.shape_cast %54 : vector<2x8x8x128xbf16> to vector<128x128xbf16>
    %c6 = arith.constant 6 : index
    %c0_76 = arith.constant 0 : index
    %c0_77 = arith.constant 0 : index
    %56 = vector.load %arg4[%c6, %c0_76, %c0_77] : memref<9x128x128xbf16, #tpu.memory_space<vmem>>, vector<1x128x128xbf16>
    %57 = vector.shape_cast %56 : vector<1x128x128xbf16> to vector<128x128xbf16>
    %cst_78 = arith.constant dense<0.000000e+00> : vector<128x128xf32>
    %58 = tpu.matmul %55, %57, %cst_78 {dimension_numbers = #tpu.dot_dimension_numbers<[1], [0], [0], [1], [0, 0, 1, 1], [], []>} : vector<128x128xbf16>, vector<128x128xbf16>, vector<128x128xf32> -> vector<128x128xf32>
    %59 = arith.addf %53, %58 : vector<128x128xf32>
    %c0_79 = arith.constant 0 : index
    %c2_80 = arith.constant 2 : index
    %c1_81 = arith.constant 1 : index
    %c0_82 = arith.constant 0 : index
    %60 = vector.load %arg9[%c0_79, %c2_80, %c1_81, %c0_82] : memref<2x10x16x128xbf16, #tpu.memory_space<vmem>>, vector<2x8x8x128xbf16>
    %61 = vector.shape_cast %60 : vector<2x8x8x128xbf16> to vector<128x128xbf16>
    %c7 = arith.constant 7 : index
    %c0_83 = arith.constant 0 : index
    %c0_84 = arith.constant 0 : index
    %62 = vector.load %arg4[%c7, %c0_83, %c0_84] : memref<9x128x128xbf16, #tpu.memory_space<vmem>>, vector<1x128x128xbf16>
    %63 = vector.shape_cast %62 : vector<1x128x128xbf16> to vector<128x128xbf16>
    %cst_85 = arith.constant dense<0.000000e+00> : vector<128x128xf32>
    %64 = tpu.matmul %61, %63, %cst_85 {dimension_numbers = #tpu.dot_dimension_numbers<[1], [0], [0], [1], [0, 0, 1, 1], [], []>} : vector<128x128xbf16>, vector<128x128xbf16>, vector<128x128xf32> -> vector<128x128xf32>
    %65 = arith.addf %59, %64 : vector<128x128xf32>
    %c0_86 = arith.constant 0 : index
    %c2_87 = arith.constant 2 : index
    %c2_88 = arith.constant 2 : index
    %c0_89 = arith.constant 0 : index
    %66 = vector.load %arg9[%c0_86, %c2_87, %c2_88, %c0_89] : memref<2x10x16x128xbf16, #tpu.memory_space<vmem>>, vector<2x8x8x128xbf16>
    %67 = vector.shape_cast %66 : vector<2x8x8x128xbf16> to vector<128x128xbf16>
    %c8 = arith.constant 8 : index
    %c0_90 = arith.constant 0 : index
    %c0_91 = arith.constant 0 : index
    %68 = vector.load %arg4[%c8, %c0_90, %c0_91] : memref<9x128x128xbf16, #tpu.memory_space<vmem>>, vector<1x128x128xbf16>
    %69 = vector.shape_cast %68 : vector<1x128x128xbf16> to vector<128x128xbf16>
    %cst_92 = arith.constant dense<0.000000e+00> : vector<128x128xf32>
    %70 = tpu.matmul %67, %69, %cst_92 {dimension_numbers = #tpu.dot_dimension_numbers<[1], [0], [0], [1], [0, 0, 1, 1], [], []>} : vector<128x128xbf16>, vector<128x128xbf16>, vector<128x128xf32> -> vector<128x128xf32>
    %71 = arith.addf %65, %70 : vector<128x128xf32>
    %c0_93 = arith.constant 0 : index
    %c0_94 = arith.constant 0 : index
    %72 = vector.load %arg5[%c0_93, %c0_94] : memref<1x128xf32, #tpu.memory_space<vmem>>, vector<1x128xf32>
    %73 = vector.broadcast %72 : vector<1x128xf32> to vector<128x128xf32>
    %74 = arith.addf %71, %73 : vector<128x128xf32>
    %cst_95 = arith.constant 0.000000e+00 : f32
    %75 = vector.broadcast %cst_95 : f32 to vector<128x128xf32>
    %76 = arith.maximumf %74, %75 : vector<128x128xf32>
    %77 = arith.truncf %76 : vector<128x128xf32> to vector<128x128xbf16>
    %c0_96 = arith.constant 0 : index
    %c0_97 = arith.constant 0 : index
    %78 = vector.load %arg6[%c0_96, %c0_97] : memref<128x128xbf16, #tpu.memory_space<vmem>>, vector<128x128xbf16>
    %cst_98 = arith.constant dense<0.000000e+00> : vector<128x128xf32>
    %79 = tpu.matmul %77, %78, %cst_98 {dimension_numbers = #tpu.dot_dimension_numbers<[1], [0], [0], [1], [0, 0, 1, 1], [], []>} : vector<128x128xbf16>, vector<128x128xbf16>, vector<128x128xf32> -> vector<128x128xf32>
    %c0_99 = arith.constant 0 : index
    %c0_100 = arith.constant 0 : index
    %80 = vector.load %arg7[%c0_99, %c0_100] : memref<1x128xf32, #tpu.memory_space<vmem>>, vector<1x128xf32>
    %81 = vector.broadcast %80 : vector<1x128xf32> to vector<128x128xf32>
    %82 = arith.addf %79, %81 : vector<128x128xf32>
    %c0_101 = arith.constant 0 : index
    %c0_102 = arith.constant 0 : index
    %c0_103 = arith.constant 0 : index
    %c0_104 = arith.constant 0 : index
    %83 = vector.load %arg1[%c0_101, %c0_102, %c0_103, %c0_104] : memref<2x8x8x128xf32, #tpu.memory_space<vmem>>, vector<2x8x8x128xf32>
    %84 = vector.shape_cast %83 : vector<2x8x8x128xf32> to vector<128x128xf32>
    %85 = arith.addf %82, %84 : vector<128x128xf32>
    %cst_105 = arith.constant 0.000000e+00 : f32
    %86 = vector.broadcast %cst_105 : f32 to vector<128x128xf32>
    %87 = arith.maximumf %85, %86 : vector<128x128xf32>
    %88 = vector.shape_cast %87 : vector<128x128xf32> to vector<2x8x8x128xf32>
    %c0_106 = arith.constant 0 : index
    %c0_107 = arith.constant 0 : index
    %c0_108 = arith.constant 0 : index
    %c0_109 = arith.constant 0 : index
    %89 = vector.load %arg8[%c0_106, %c0_107, %c0_108, %c0_109] : memref<2x8x8x128xf32, #tpu.memory_space<vmem>>, vector<2x8x8x128xf32>
    tpu.vector_store %arg8[%c0_106, %c0_107, %c0_108, %c0_109], %88 {strides = array<i32>} : memref<2x8x8x128xf32, #tpu.memory_space<vmem>>, vector<2x8x8x128xf32>,
    return
  }
  func.func @transform_0(%arg0: i32) -> (i32, i32, i32, i32) {
    %c0_i32 = arith.constant 0 : i32
    %c0_i32_0 = arith.constant 0 : i32
    %c0_i32_1 = arith.constant 0 : i32
    %c0_i32_2 = arith.constant 0 : i32
    return %arg0, %c0_i32, %c0_i32_0, %c0_i32_1 : i32, i32, i32, i32
  }
  func.func @transform_1(%arg0: i32) -> (i32, i32) {
    %c0_i32 = arith.constant 0 : i32
    %c0_i32_0 = arith.constant 0 : i32
    %c0_i32_1 = arith.constant 0 : i32
    return %c0_i32, %c0_i32_0 : i32, i32
  }
  func.func @transform_2(%arg0: i32) -> (i32, i32) {
    %c0_i32 = arith.constant 0 : i32
    %c0_i32_0 = arith.constant 0 : i32
    %c0_i32_1 = arith.constant 0 : i32
    return %c0_i32, %c0_i32_0 : i32, i32
  }
  func.func @transform_3(%arg0: i32) -> (i32, i32, i32) {
    %c0_i32 = arith.constant 0 : i32
    %c0_i32_0 = arith.constant 0 : i32
    %c0_i32_1 = arith.constant 0 : i32
    %c0_i32_2 = arith.constant 0 : i32
    return %c0_i32, %c0_i32_0, %c0_i32_1 : i32, i32, i32
  }
  func.func @transform_4(%arg0: i32) -> (i32, i32) {
    %c0_i32 = arith.constant 0 : i32
    %c0_i32_0 = arith.constant 0 : i32
    %c0_i32_1 = arith.constant 0 : i32
    return %c0_i32, %c0_i32_0 : i32, i32
  }
  func.func @transform_5(%arg0: i32) -> (i32, i32) {
    %c0_i32 = arith.constant 0 : i32
    %c0_i32_0 = arith.constant 0 : i32
    %c0_i32_1 = arith.constant 0 : i32
    return %c0_i32, %c0_i32_0 : i32, i32
  }
  func.func @transform_6(%arg0: i32) -> (i32, i32) {
    %c0_i32 = arith.constant 0 : i32
    %c0_i32_0 = arith.constant 0 : i32
    %c0_i32_1 = arith.constant 0 : i32
    return %c0_i32, %c0_i32_0 : i32, i32
  }
  func.func @transform_7(%arg0: i32) -> (i32, i32, i32, i32) {
    %c0_i32 = arith.constant 0 : i32
    %c0_i32_0 = arith.constant 0 : i32
    %c0_i32_1 = arith.constant 0 : i32
    %c0_i32_2 = arith.constant 0 : i32
    return %arg0, %c0_i32, %c0_i32_0, %c0_i32_1 : i32, i32, i32, i32
  }
}

</mosaic_0001>

<llo_original>
// kernel: tpu_custom_call.1
$region0: #{tpu_custom_call.1}
  #allocation0 [shape = 'u32[]', space=smem, size = 0x4, offset = 0x4, fixed_abs, tag = 'smem constant byte address 0x4 - core index']
  #allocation1 [shape = 'u32[72,128]{1,0:T(1,128)}', space=vmem, size = 0x9000, scoped, tag = 'internal scratch']
  #allocation2 [shape = 'bf16[2,10,16,128]{3,2,1,0:T(8,128)(2,1)}', space=vmem, size = 0x14000, scoped, tag = 'scratch operand']
  %s0 = inlined_call_operand.hbm [shape: f32[2,8,8,128], index: 0, kind: input, shape index: {}]
  %s1 = inlined_call_operand.hbm [shape: bf16[128,128], index: 1, kind: input, shape index: {}]
  %s2 = inlined_call_operand.vmem [shape: f32[1,128], index: 2, kind: input, shape index: {}]
  %s3 = inlined_call_operand.hbm [shape: bf16[9,128,128], index: 3, kind: input, shape index: {}]
  %s4 = inlined_call_operand.vmem [shape: f32[1,128], index: 4, kind: input, shape index: {}]
  %s5 = inlined_call_operand.hbm [shape: bf16[128,128], index: 5, kind: input, shape index: {}]
  %s6 = inlined_call_operand.vmem [shape: f32[1,128], index: 6, kind: input, shape index: {}]
  %s7 = inlined_call_operand.hbm [shape: f32[2,8,8,128], index: 7, kind: output, shape index: {}]
  %s8 = sld [smem:[#allocation0]]
  $region54: #{tpu_custom_call.1} parent=0
    _
  %s10 = ssub.s32 1, %s8
  %s11 = scalar_select 0, %s10, %s8
  $region1: #{tpu_custom_call.1} parent=0
    #allocation3 [shape = 'u8[65536]{0}', space=vmem, size = 0x10000, scoped, tag = 'input window, operand 0, single buffered']
    #allocation4 [shape = 's32[1]{0}', space=sflag, size = 0x4, scoped, tag = 'scoped memory for tpu_custom_call.1']
    #allocation5 [shape = 's32[1]{0}', space=sflag, size = 0x4, scoped, tag = 'scoped memory for tpu_custom_call.1']
    #allocation6 [shape = 'u8[32768]{0}', space=vmem, size = 0x8000, scoped, tag = 'input window, operand 1, single buffered']
    #allocation7 [shape = 's32[1]{0}', space=sflag, size = 0x4, scoped, tag = 'scoped memory for tpu_custom_call.1']
    #allocation8 [shape = 'u8[294912]{0}', space=vmem, size = 0x48000, scoped, tag = 'input window, operand 3, single buffered']
    #allocation9 [shape = 'u8[32768]{0}', space=vmem, size = 0x8000, scoped, tag = 'input window, operand 5, single buffered']
    #allocation10 [shape = 's32[1]{0}', space=sflag, size = 0x4, scoped, tag = 'scoped memory for tpu_custom_call.1']
    #allocation11 [shape = 'u8[65536]{0}', space=vmem, size = 0x10000, scoped, tag = 'output window, operand 0, single buffered']
    %12 = vsyncpa [#allocation4], 0
    %13 = vsyncpa [#allocation7], 0
    %14 = vsyncpa [#allocation10], 0
    %15 = vsyncpa [#allocation5], 0
    // Predicated region
    $region2: #{tpu_custom_call.1} parent=1 // pred_check
      _
    $region3: #{tpu_custom_call.1} parent=1 // pred_check_branch
      %17 = sbr.rel (0) target = $region5
    $region4: #{tpu_custom_call.1} parent=1 // pred_region
      %19 = vsyncadd [#allocation4], 0
      %s20 = sshll.u32 %s0, 4
      %s21 = int_to_ptr.hbm [resolvable:$true] %s20
      %s22 = sshll.u32 [#allocation3], 4
      %s23 = int_to_ptr.vmem [resolvable:$true] %s22
      %28 = dma.hbm_to_vmem [thread:$0]  %s21, 2048, %s23, [#allocation4], 128, 128, 8
    $region5: #{tpu_custom_call.1} parent=1 // pred_fallthru
      _
    // Predicated region
    $region6: #{tpu_custom_call.1} parent=1 // pred_check
      _
    $region7: #{tpu_custom_call.1} parent=1 // pred_check_branch
      %30 = sbr.rel (0) target = $region9
    $region8: #{tpu_custom_call.1} parent=1 // pred_region
      %32 = vsyncadd [#allocation7], 0
      %s33 = sshll.u32 %s1, 4
      %s34 = int_to_ptr.hbm [resolvable:$true] %s33
      %s35 = sshll.u32 [#allocation6], 4
      %s36 = int_to_ptr.vmem [resolvable:$true] %s35
      %41 = dma.hbm_to_vmem [thread:$0]  %s34, 1024, %s36, [#allocation7], 64, 64, 4
    $region9: #{tpu_custom_call.1} parent=1 // pred_fallthru
      _
    // Predicated region
    $region10: #{tpu_custom_call.1} parent=1 // pred_check
      _
    $region11: #{tpu_custom_call.1} parent=1 // pred_check_branch
      %43 = sbr.rel (0) target = $region13
    $region12: #{tpu_custom_call.1} parent=1 // pred_region
      _
    $region13: #{tpu_custom_call.1} parent=1 // pred_fallthru
      _
    // Predicated region
    $region14: #{tpu_custom_call.1} parent=1 // pred_check
      _
    $region15: #{tpu_custom_call.1} parent=1 // pred_check_branch
      %45 = sbr.rel (0) target = $region17
    $region16: #{tpu_custom_call.1} parent=1 // pred_region
      %47 = vsyncadd [#allocation7], 0
      %s48 = sshll.u32 %s3, 4
      %s49 = int_to_ptr.hbm [resolvable:$true] %s48
      %s50 = sshll.u32 [#allocation8], 4
      %s51 = int_to_ptr.vmem [resolvable:$true] %s50
      %56 = dma.hbm_to_vmem [thread:$0]  %s49, 9216, %s51, [#allocation7], 64, 64, 4
    $region17: #{tpu_custom_call.1} parent=1 // pred_fallthru
      _
    // Predicated region
    $region18: #{tpu_custom_call.1} parent=1 // pred_check
      _
    $region19: #{tpu_custom_call.1} parent=1 // pred_check_branch
      %58 = sbr.rel (0) target = $region21
    $region20: #{tpu_custom_call.1} parent=1 // pred_region
      _
    $region21: #{tpu_custom_call.1} parent=1 // pred_fallthru
      _
    // Predicated region
    $region22: #{tpu_custom_call.1} parent=1 // pred_check
      _
    $region23: #{tpu_custom_call.1} parent=1 // pred_check_branch
      %60 = sbr.rel (0) target = $region25
    $region24: #{tpu_custom_call.1} parent=1 // pred_region
      %62 = vsyncadd [#allocation10], 0
      %s63 = sshll.u32 %s5, 4
      %s64 = int_to_ptr.hbm [resolvable:$true] %s63
      %s65 = sshll.u32 [#allocation9], 4
      %s66 = int_to_ptr.vmem [resolvable:$true] %s65
      %71 = dma.hbm_to_vmem [thread:$0]  %s64, 1024, %s66, [#allocation10], 64, 64, 4
    $region25: #{tpu_custom_call.1} parent=1 // pred_fallthru
      _
    // Predicated region
    $region26: #{tpu_custom_call.1} parent=1 // pred_check
      _
    $region27: #{tpu_custom_call.1} parent=1 // pred_check_branch
      %73 = sbr.rel (0) target = $region29
    $region28: #{tpu_custom_call.1} parent=1 // pred_region
      _
    $region29: #{tpu_custom_call.1} parent=1 // pred_fallthru
      _
    // Predicated region
    $region30: #{tpu_custom_call.1} parent=1 // pred_check
      _
    $region31: #{tpu_custom_call.1} parent=1 // pred_check_branch
      %75 = sbr.rel (0) target = $region33
    $region32: #{tpu_custom_call.1} parent=1 // pred_region
      %77 = dma.done [#allocation4], 2048
    $region33: #{tpu_custom_call.1} parent=1 // pred_fallthru
      _
    // Predicated region
    $region34: #{tpu_custom_call.1} parent=1 // pred_check
      _
    $region35: #{tpu_custom_call.1} parent=1 // pred_check_branch
      %79 = sbr.rel (0) target = $region37
    $region36: #{tpu_custom_call.1} parent=1 // pred_region
      %81 = dma.done [#allocation7], 1024
    $region37: #{tpu_custom_call.1} parent=1 // pred_fallthru
      _
    // Predicated region
    $region38: #{tpu_custom_call.1} parent=1 // pred_check
      _
    $region39: #{tpu_custom_call.1} parent=1 // pred_check_branch
      %83 = sbr.rel (0) target = $region41
    $region40: #{tpu_custom_call.1} parent=1 // pred_region
      %85 = dma.done [#allocation7], 9216
    $region41: #{tpu_custom_call.1} parent=1 // pred_fallthru
      _
    // Predicated region
    $region42: #{tpu_custom_call.1} parent=1 // pred_check
      _
    $region43: #{tpu_custom_call.1} parent=1 // pred_check_branch
      %87 = sbr.rel (0) target = $region45
    $region44: #{tpu_custom_call.1} parent=1 // pred_region
      %89 = dma.done [#allocation10], 1024
    $region45: #{tpu_custom_call.1} parent=1 // pred_fallthru
      _
    %v91 = vld [vmem:[#allocation3] sm:$0xff]
    %v92 = vld [vmem:[#allocation3 + $0x8] sm:$0xff]
    %v93 = vld [vmem:[#allocation3 + $0x10] sm:$0xff]
    %v94 = vld [vmem:[#allocation3 + $0x18] sm:$0xff]
    %v95 = vld [vmem:[#allocation3 + $0x20] sm:$0xff]
    %v96 = vld [vmem:[#allocation3 + $0x28] sm:$0xff]
    %v97 = vld [vmem:[#allocation3 + $0x30] sm:$0xff]
    %v98 = vld [vmem:[#allocation3 + $0x38] sm:$0xff]
    %v99 = vld [vmem:[#allocation3 + $0x40] sm:$0xff]
    %v100 = vld [vmem:[#allocation3 + $0x48] sm:$0xff]
    %v101 = vld [vmem:[#allocation3 + $0x50] sm:$0xff]
    %v102 = vld [vmem:[#allocation3 + $0x58] sm:$0xff]
    %v103 = vld [vmem:[#allocation3 + $0x60] sm:$0xff]
    %v104 = vld [vmem:[#allocation3 + $0x68] sm:$0xff]
    %v105 = vld [vmem:[#allocation3 + $0x70] sm:$0xff]
    %v106 = vld [vmem:[#allocation3 + $0x78] sm:$0xff]
    %v107 = vpack.c.bf16 %v92, %v91
    %v108 = vpack.c.bf16 %v94, %v93
    %v109 = vpack.c.bf16 %v96, %v95
    %v110 = vpack.c.bf16 %v98, %v97
    %v111 = vpack.c.bf16 %v100, %v99
    %v112 = vpack.c.bf16 %v102, %v101
    %v113 = vpack.c.bf16 %v104, %v103
    %v114 = vpack.c.bf16 %v106, %v105
    %v115 = vld [vmem:[#allocation6] sm:$0xf]
    %v116 = vld [vmem:[#allocation6 + $0x4] sm:$0xf]
    %v117 = vld [vmem:[#allocation6 + $0x8] sm:$0xf]
    %v118 = vld [vmem:[#allocation6 + $0xc] sm:$0xf]
    %v119 = vld [vmem:[#allocation6 + $0x10] sm:$0xf]
    %v120 = vld [vmem:[#allocation6 + $0x14] sm:$0xf]
    %v121 = vld [vmem:[#allocation6 + $0x18] sm:$0xf]
    %v122 = vld [vmem:[#allocation6 + $0x1c] sm:$0xf]
    %v123 = vld [vmem:[#allocation6 + $0x20] sm:$0xf]
    %v124 = vld [vmem:[#allocation6 + $0x24] sm:$0xf]
    %v125 = vld [vmem:[#allocation6 + $0x28] sm:$0xf]
    %v126 = vld [vmem:[#allocation6 + $0x2c] sm:$0xf]
    %v127 = vld [vmem:[#allocation6 + $0x30] sm:$0xf]
    %v128 = vld [vmem:[#allocation6 + $0x34] sm:$0xf]
    %v129 = vld [vmem:[#allocation6 + $0x38] sm:$0xf]
    %v130 = vld [vmem:[#allocation6 + $0x3c] sm:$0xf]
    %v131 = vld [vmem:[%s2] sm:$0x1]
    %v133 = vperm.slane %v131, 0
    %v151 = vunpack.c.l.b16 %v115
    %v152 = vunpack.c.l.b16 %v116
    %v153 = vunpack.c.l.b16 %v117
    %v154 = vunpack.c.l.b16 %v118
    %v155 = vunpack.c.l.b16 %v119
    %v156 = vunpack.c.l.b16 %v120
    %v157 = vunpack.c.l.b16 %v121
    %v158 = vunpack.c.l.b16 %v122
    %v159 = vunpack.c.l.b16 %v123
    %v160 = vunpack.c.l.b16 %v124
    %v161 = vunpack.c.l.b16 %v125
    %v162 = vunpack.c.l.b16 %v126
    %v163 = vunpack.c.l.b16 %v127
    %v164 = vunpack.c.l.b16 %v128
    %v165 = vunpack.c.l.b16 %v129
    %v166 = vunpack.c.l.b16 %v130
    %v167 = vpack.c.b16 %v152, %v151
    %v168 = vpack.c.b16 %v154, %v153
    %v169 = vpack.c.b16 %v156, %v155
    %v170 = vpack.c.b16 %v158, %v157
    %v171 = vpack.c.b16 %v160, %v159
    %v172 = vpack.c.b16 %v162, %v161
    %v173 = vpack.c.b16 %v164, %v163
    %v174 = vpack.c.b16 %v166, %v165
    %183 = vmatpush.bf16.msra.mxu0 %v174
    %184 = vmatpush.bf16.msra.mxu0 %v173
    %185 = vmatpush.bf16.msra.mxu0 %v172
    %186 = vmatpush.bf16.msra.mxu0 %v171
    %187 = vmatpush.bf16.msra.mxu0 %v170
    %188 = vmatpush.bf16.msra.mxu0 %v169
    %189 = vmatpush.bf16.msra.mxu0 %v168
    %190 = vmatpush.bf16.msra.mxu0 %v167
    %191 = vmatmul.bf16.gmra.mxu0 %v107
    %v192 = vpop.f32.mrf.mxu0
    %v193 = vadd.f32 %v133, %v192
    %v194 = vpop.f32.mrf.mxu0
    %v195 = vadd.f32 %v133, %v194
    %196 = vmatmul.bf16.gmra.mxu0 %v108
    %v197 = vpop.f32.mrf.mxu0
    %v198 = vadd.f32 %v133, %v197
    %v199 = vpop.f32.mrf.mxu0
    %v200 = vadd.f32 %v133, %v199
    %201 = vmatmul.bf16.gmra.mxu0 %v109
    %v202 = vpop.f32.mrf.mxu0
    %v203 = vadd.f32 %v133, %v202
    %v204 = vpop.f32.mrf.mxu0
    %v205 = vadd.f32 %v133, %v204
    %206 = vmatmul.bf16.gmra.mxu0 %v110
    %v207 = vpop.f32.mrf.mxu0
    %v208 = vadd.f32 %v133, %v207
    %v209 = vpop.f32.mrf.mxu0
    %v210 = vadd.f32 %v133, %v209
    %211 = vmatmul.bf16.gmra.mxu0 %v111
    %v212 = vpop.f32.mrf.mxu0
    %v213 = vadd.f32 %v133, %v212
    %v214 = vpop.f32.mrf.mxu0
    %v215 = vadd.f32 %v133, %v214
    %216 = vmatmul.bf16.gmra.mxu0 %v112
    %v217 = vpop.f32.mrf.mxu0
    %v218 = vadd.f32 %v133, %v217
    %v219 = vpop.f32.mrf.mxu0
    %v220 = vadd.f32 %v133, %v219
    %221 = vmatmul.bf16.gmra.mxu0 %v113
    %v222 = vpop.f32.mrf.mxu0
    %v223 = vadd.f32 %v133, %v222
    %v224 = vpop.f32.mrf.mxu0
    %v225 = vadd.f32 %v133, %v224
    %226 = vmatmul.bf16.gmra.mxu0 %v114
    %v227 = vpop.f32.mrf.mxu0
    %v228 = vadd.f32 %v133, %v227
    %v229 = vpop.f32.mrf.mxu0
    %v230 = vadd.f32 %v133, %v229
    %231 = vdwg.mxu0
    %v232 = vmax.f32 %v193, 0.0
    %v233 = vmax.f32 %v195, 0.0
    %v234 = vmax.f32 %v198, 0.0
    %v235 = vmax.f32 %v200, 0.0
    %v236 = vmax.f32 %v203, 0.0
    %v237 = vmax.f32 %v205, 0.0
    %v238 = vmax.f32 %v208, 0.0
    %v239 = vmax.f32 %v210, 0.0
    %v240 = vmax.f32 %v213, 0.0
    %v241 = vmax.f32 %v215, 0.0
    %v242 = vmax.f32 %v218, 0.0
    %v243 = vmax.f32 %v220, 0.0
    %v244 = vmax.f32 %v223, 0.0
    %v245 = vmax.f32 %v225, 0.0
    %v246 = vmax.f32 %v228, 0.0
    %v247 = vmax.f32 %v230, 0.0
    %248 = vst [vmem:[#allocation2] sm:$0xf] 0
    %249 = vst [vmem:[#allocation2 + $0x4] sm:$0x1] 0
    %250 = vst [vmem:[#allocation2 + $0x50] sm:$0xf] 0
    %251 = vst [vmem:[#allocation2 + $0x54] sm:$0x1] 0
    %s252 = scalar_lea.vmem [#allocation2], 72
    %253 = vst [vmem:[%s252] sm:$0xf] 0
    %254 = vst [vmem:[%s252 + $0x4] sm:$0x1] 0
    %255 = vst [vmem:[%s252 + $0x50] sm:$0xf] 0
    %256 = vst [vmem:[%s252 + $0x54] sm:$0x1] 0
    %s257 = scalar_lea.vmem [#allocation2], 8
    %vm258 = vcmask 1040384
    %vm259 = vsmask.f32 256
    %vm260 = vmand %vm258, %vm259
    %v261 = vld [vmem:[%s257] sm:$0x1]
    %v262 = vsel %vm260, 0, %v261
    %263 = vst [vmem:[%s257] sm:$0x1] %v262
    %v264 = vld [vmem:[%s257 + $0x8] sm:$0x1]
    %v265 = vsel %vm260, 0, %v264
    %266 = vst [vmem:[%s257 + $0x8] sm:$0x1] %v265
    %v267 = vld [vmem:[%s257 + $0x10] sm:$0x1]
    %v268 = vsel %vm260, 0, %v267
    %269 = vst [vmem:[%s257 + $0x10] sm:$0x1] %v268
    %v270 = vld [vmem:[%s257 + $0x18] sm:$0x1]
    %v271 = vsel %vm260, 0, %v270
    %272 = vst [vmem:[%s257 + $0x18] sm:$0x1] %v271
    %v273 = vld [vmem:[%s257 + $0x20] sm:$0x1]
    %v274 = vsel %vm260, 0, %v273
    %275 = vst [vmem:[%s257 + $0x20] sm:$0x1] %v274
    %v276 = vld [vmem:[%s257 + $0x28] sm:$0x1]
    %v277 = vsel %vm260, 0, %v276
    %278 = vst [vmem:[%s257 + $0x28] sm:$0x1] %v277
    %v279 = vld [vmem:[%s257 + $0x30] sm:$0x1]
    %v280 = vsel %vm260, 0, %v279
    %281 = vst [vmem:[%s257 + $0x30] sm:$0x1] %v280
    %v282 = vld [vmem:[%s257 + $0x38] sm:$0x1]
    %v283 = vsel %vm260, 0, %v282
    %284 = vst [vmem:[%s257 + $0x38] sm:$0x1] %v283
    %v285 = vld [vmem:[%s257 + $0x50] sm:$0x1]
    %v286 = vsel %vm260, 0, %v285
    %287 = vst [vmem:[%s257 + $0x50] sm:$0x1] %v286
    %v288 = vld [vmem:[%s257 + $0x58] sm:$0x1]
    %v289 = vsel %vm260, 0, %v288
    %290 = vst [vmem:[%s257 + $0x58] sm:$0x1] %v289
    %v291 = vld [vmem:[%s257 + $0x60] sm:$0x1]
    %v292 = vsel %vm260, 0, %v291
    %293 = vst [vmem:[%s257 + $0x60] sm:$0x1] %v292
    %v294 = vld [vmem:[%s257 + $0x68] sm:$0x1]
    %v295 = vsel %vm260, 0, %v294
    %296 = vst [vmem:[%s257 + $0x68] sm:$0x1] %v295
    %v297 = vld [vmem:[%s257 + $0x70] sm:$0x1]
    %v298 = vsel %vm260, 0, %v297
    %299 = vst [vmem:[%s257 + $0x70] sm:$0x1] %v298
    %v300 = vld [vmem:[%s257 + $0x78] sm:$0x1]
    %v301 = vsel %vm260, 0, %v300
    %302 = vst [vmem:[%s257 + $0x78] sm:$0x1] %v301
    %v303 = vld [vmem:[%s257 + $0x80] sm:$0x1]
    %v304 = vsel %vm260, 0, %v303
    %305 = vst [vmem:[%s257 + $0x80] sm:$0x1] %v304
    %v306 = vld [vmem:[%s257 + $0x88] sm:$0x1]
    %v307 = vsel %vm260, 0, %v306
    %308 = vst [vmem:[%s257 + $0x88] sm:$0x1] %v307
    %vm309 = vsmask.f32 7938
    %vm310 = vmand %vm258, %vm309
    %v311 = vld [vmem:[%s257 + $0x4] sm:$0x1]
    %v312 = vsel %vm310, 0, %v311
    %313 = vst [vmem:[%s257 + $0x4] sm:$0x1] %v312
    %v314 = vld [vmem:[%s257 + $0xc] sm:$0x1]
    %v315 = vsel %vm310, 0, %v314
    %316 = vst [vmem:[%s257 + $0xc] sm:$0x1] %v315
    %v317 = vld [vmem:[%s257 + $0x14] sm:$0x1]
    %v318 = vsel %vm310, 0, %v317
    %319 = vst [vmem:[%s257 + $0x14] sm:$0x1] %v318
    %v320 = vld [vmem:[%s257 + $0x1c] sm:$0x1]
    %v321 = vsel %vm310, 0, %v320
    %322 = vst [vmem:[%s257 + $0x1c] sm:$0x1] %v321
    %v323 = vld [vmem:[%s257 + $0x24] sm:$0x1]
    %v324 = vsel %vm310, 0, %v323
    %325 = vst [vmem:[%s257 + $0x24] sm:$0x1] %v324
    %v326 = vld [vmem:[%s257 + $0x2c] sm:$0x1]
    %v327 = vsel %vm310, 0, %v326
    %328 = vst [vmem:[%s257 + $0x2c] sm:$0x1] %v327
    %v329 = vld [vmem:[%s257 + $0x34] sm:$0x1]
    %v330 = vsel %vm310, 0, %v329
    %331 = vst [vmem:[%s257 + $0x34] sm:$0x1] %v330
    %v332 = vld [vmem:[%s257 + $0x3c] sm:$0x1]
    %v333 = vsel %vm310, 0, %v332
    %334 = vst [vmem:[%s257 + $0x3c] sm:$0x1] %v333
    %v335 = vld [vmem:[%s257 + $0x54] sm:$0x1]
    %v336 = vsel %vm310, 0, %v335
    %337 = vst [vmem:[%s257 + $0x54] sm:$0x1] %v336
    %v338 = vld [vmem:[%s257 + $0x5c] sm:$0x1]
    %v339 = vsel %vm310, 0, %v338
    %340 = vst [vmem:[%s257 + $0x5c] sm:$0x1] %v339
    %v341 = vld [vmem:[%s257 + $0x64] sm:$0x1]
    %v342 = vsel %vm310, 0, %v341
    %343 = vst [vmem:[%s257 + $0x64] sm:$0x1] %v342
    %v344 = vld [vmem:[%s257 + $0x6c] sm:$0x1]
    %v345 = vsel %vm310, 0, %v344
    %346 = vst [vmem:[%s257 + $0x6c] sm:$0x1] %v345
    %v347 = vld [vmem:[%s257 + $0x74] sm:$0x1]
    %v348 = vsel %vm310, 0, %v347
    %349 = vst [vmem:[%s257 + $0x74] sm:$0x1] %v348
    %v350 = vld [vmem:[%s257 + $0x7c] sm:$0x1]
    %v351 = vsel %vm310, 0, %v350
    %352 = vst [vmem:[%s257 + $0x7c] sm:$0x1] %v351
    %v353 = vld [vmem:[%s257 + $0x84] sm:$0x1]
    %v354 = vsel %vm310, 0, %v353
    %355 = vst [vmem:[%s257 + $0x84] sm:$0x1] %v354
    %v356 = vld [vmem:[%s257 + $0x8c] sm:$0x1]
    %v357 = vsel %vm310, 0, %v356
    %358 = vst [vmem:[%s257 + $0x8c] sm:$0x1] %v357
    %v359 = vpack.c.bf16 %v232, %v232
    %v360 = vpack.c.bf16 %v233, %v233
    %v361 = vpack.c.bf16 %v234, %v234
    %v362 = vpack.c.bf16 %v235, %v235
    %v363 = vpack.c.bf16 %v236, %v236
    %v364 = vpack.c.bf16 %v237, %v237
    %v365 = vpack.c.bf16 %v238, %v238
    %v366 = vpack.c.bf16 %v239, %v239
    %v367 = vpack.c.bf16 %v240, %v240
    %v368 = vpack.c.bf16 %v241, %v241
    %v369 = vpack.c.bf16 %v242, %v242
    %v370 = vpack.c.bf16 %v243, %v243
    %v371 = vpack.c.bf16 %v244, %v244
    %v372 = vpack.c.bf16 %v245, %v245
    %v373 = vpack.c.bf16 %v246, %v246
    %v374 = vpack.c.bf16 %v247, %v247
    %v376 = vshrl.u32 %v359, 16
    %v378 = vrot.slane %v376, 7
    %v379 = vshll.u32 %v359, 16
    %v381 = vor.u32 %v378, %v379
    %v382 = vrot.slane %v378, 4
    %v384 = vshrl.u32 %v360, 16
    %v386 = vrot.slane %v384, 7
    %v387 = vshll.u32 %v360, 16
    %v389 = vor.u32 %v386, %v387
    %v390 = vrot.slane %v386, 4
    %v392 = vshrl.u32 %v361, 16
    %v394 = vrot.slane %v392, 7
    %v395 = vshll.u32 %v361, 16
    %v397 = vor.u32 %v394, %v395
    %v398 = vrot.slane %v394, 4
    %v400 = vshrl.u32 %v362, 16
    %v402 = vrot.slane %v400, 7
    %v403 = vshll.u32 %v362, 16
    %v405 = vor.u32 %v402, %v403
    %v406 = vrot.slane %v402, 4
    %v408 = vshrl.u32 %v363, 16
    %v410 = vrot.slane %v408, 7
    %v411 = vshll.u32 %v363, 16
    %v413 = vor.u32 %v410, %v411
    %v414 = vrot.slane %v410, 4
    %v416 = vshrl.u32 %v364, 16
    %v418 = vrot.slane %v416, 7
    %v419 = vshll.u32 %v364, 16
    %v421 = vor.u32 %v418, %v419
    %v422 = vrot.slane %v418, 4
    %v424 = vshrl.u32 %v365, 16
    %v426 = vrot.slane %v424, 7
    %v427 = vshll.u32 %v365, 16
    %v429 = vor.u32 %v426, %v427
    %v430 = vrot.slane %v426, 4
    %v432 = vshrl.u32 %v366, 16
    %v434 = vrot.slane %v432, 7
    %v435 = vshll.u32 %v366, 16
    %v437 = vor.u32 %v434, %v435
    %v438 = vrot.slane %v434, 4
    %v440 = vshrl.u32 %v367, 16
    %v442 = vrot.slane %v440, 7
    %v443 = vshll.u32 %v367, 16
    %v445 = vor.u32 %v442, %v443
    %v446 = vrot.slane %v442, 4
    %v448 = vshrl.u32 %v368, 16
    %v450 = vrot.slane %v448, 7
    %v451 = vshll.u32 %v368, 16
    %v453 = vor.u32 %v450, %v451
    %v454 = vrot.slane %v450, 4
    %v456 = vshrl.u32 %v369, 16
    %v458 = vrot.slane %v456, 7
    %v459 = vshll.u32 %v369, 16
    %v461 = vor.u32 %v458, %v459
    %v462 = vrot.slane %v458, 4
    %v464 = vshrl.u32 %v370, 16
    %v466 = vrot.slane %v464, 7
    %v467 = vshll.u32 %v370, 16
    %v469 = vor.u32 %v466, %v467
    %v470 = vrot.slane %v466, 4
    %v472 = vshrl.u32 %v371, 16
    %v474 = vrot.slane %v472, 7
    %v475 = vshll.u32 %v371, 16
    %v477 = vor.u32 %v474, %v475
    %v478 = vrot.slane %v474, 4
    %v480 = vshrl.u32 %v372, 16
    %v482 = vrot.slane %v480, 7
    %v483 = vshll.u32 %v372, 16
    %v485 = vor.u32 %v482, %v483
    %v486 = vrot.slane %v482, 4
    %v488 = vshrl.u32 %v373, 16
    %v490 = vrot.slane %v488, 7
    %v491 = vshll.u32 %v373, 16
    %v493 = vor.u32 %v490, %v491
    %v494 = vrot.slane %v490, 4
    %v496 = vshrl.u32 %v374, 16
    %v498 = vrot.slane %v496, 7
    %v499 = vshll.u32 %v374, 16
    %v501 = vor.u32 %v498, %v499
    %v502 = vrot.slane %v498, 4
    %vm535 = vcmask 1043456
    %vm536 = vmand %vm535, %vm309
    %v537 = vld [vmem:[%s257] sm:$0xf]
    %v538 = vsel %vm536, %v381, %v537
    %539 = vst [vmem:[%s257] sm:$0xf] %v538
    %v540 = vld [vmem:[%s257 + $0x4] sm:$0x1]
    %v541 = vsel %vm260, %v382, %v540
    %542 = vst [vmem:[%s257 + $0x4] sm:$0x1] %v541
    %v543 = vld [vmem:[%s257 + $0x8] sm:$0xf]
    %v544 = vsel %vm536, %v389, %v543
    %545 = vst [vmem:[%s257 + $0x8] sm:$0xf] %v544
    %v546 = vld [vmem:[%s257 + $0xc] sm:$0x1]
    %v547 = vsel %vm260, %v390, %v546
    %548 = vst [vmem:[%s257 + $0xc] sm:$0x1] %v547
    %v549 = vld [vmem:[%s257 + $0x10] sm:$0xf]
    %v550 = vsel %vm536, %v397, %v549
    %551 = vst [vmem:[%s257 + $0x10] sm:$0xf] %v550
    %v552 = vld [vmem:[%s257 + $0x14] sm:$0x1]
    %v553 = vsel %vm260, %v398, %v552
    %554 = vst [vmem:[%s257 + $0x14] sm:$0x1] %v553
    %v555 = vld [vmem:[%s257 + $0x18] sm:$0xf]
    %v556 = vsel %vm536, %v405, %v555
    %557 = vst [vmem:[%s257 + $0x18] sm:$0xf] %v556
    %v558 = vld [vmem:[%s257 + $0x1c] sm:$0x1]
    %v559 = vsel %vm260, %v406, %v558
    %560 = vst [vmem:[%s257 + $0x1c] sm:$0x1] %v559
    %v561 = vld [vmem:[%s257 + $0x20] sm:$0xf]
    %v562 = vsel %vm536, %v413, %v561
    %563 = vst [vmem:[%s257 + $0x20] sm:$0xf] %v562
    %v564 = vld [vmem:[%s257 + $0x24] sm:$0x1]
    %v565 = vsel %vm260, %v414, %v564
    %566 = vst [vmem:[%s257 + $0x24] sm:$0x1] %v565
    %v567 = vld [vmem:[%s257 + $0x28] sm:$0xf]
    %v568 = vsel %vm536, %v421, %v567
    %569 = vst [vmem:[%s257 + $0x28] sm:$0xf] %v568
    %v570 = vld [vmem:[%s257 + $0x2c] sm:$0x1]
    %v571 = vsel %vm260, %v422, %v570
    %572 = vst [vmem:[%s257 + $0x2c] sm:$0x1] %v571
    %v573 = vld [vmem:[%s257 + $0x30] sm:$0xf]
    %v574 = vsel %vm536, %v429, %v573
    %575 = vst [vmem:[%s257 + $0x30] sm:$0xf] %v574
    %v576 = vld [vmem:[%s257 + $0x34] sm:$0x1]
    %v577 = vsel %vm260, %v430, %v576
    %578 = vst [vmem:[%s257 + $0x34] sm:$0x1] %v577
    %v579 = vld [vmem:[%s257 + $0x38] sm:$0xf]
    %v580 = vsel %vm536, %v437, %v579
    %581 = vst [vmem:[%s257 + $0x38] sm:$0xf] %v580
    %v582 = vld [vmem:[%s257 + $0x3c] sm:$0x1]
    %v583 = vsel %vm260, %v438, %v582
    %584 = vst [vmem:[%s257 + $0x3c] sm:$0x1] %v583
    %v585 = vld [vmem:[%s257 + $0x50] sm:$0xf]
    %v586 = vsel %vm536, %v445, %v585
    %587 = vst [vmem:[%s257 + $0x50] sm:$0xf] %v586
    %v588 = vld [vmem:[%s257 + $0x54] sm:$0x1]
    %v589 = vsel %vm260, %v446, %v588
    %590 = vst [vmem:[%s257 + $0x54] sm:$0x1] %v589
    %v591 = vld [vmem:[%s257 + $0x58] sm:$0xf]
    %v592 = vsel %vm536, %v453, %v591
    %593 = vst [vmem:[%s257 + $0x58] sm:$0xf] %v592
    %v594 = vld [vmem:[%s257 + $0x5c] sm:$0x1]
    %v595 = vsel %vm260, %v454, %v594
    %596 = vst [vmem:[%s257 + $0x5c] sm:$0x1] %v595
    %v597 = vld [vmem:[%s257 + $0x60] sm:$0xf]
    %v598 = vsel %vm536, %v461, %v597
    %599 = vst [vmem:[%s257 + $0x60] sm:$0xf] %v598
    %v600 = vld [vmem:[%s257 + $0x64] sm:$0x1]
    %v601 = vsel %vm260, %v462, %v600
    %602 = vst [vmem:[%s257 + $0x64] sm:$0x1] %v601
    %v603 = vld [vmem:[%s257 + $0x68] sm:$0xf]
    %v604 = vsel %vm536, %v469, %v603
    %605 = vst [vmem:[%s257 + $0x68] sm:$0xf] %v604
    %v606 = vld [vmem:[%s257 + $0x6c] sm:$0x1]
    %v607 = vsel %vm260, %v470, %v606
    %608 = vst [vmem:[%s257 + $0x6c] sm:$0x1] %v607
    %v609 = vld [vmem:[%s257 + $0x70] sm:$0xf]
    %v610 = vsel %vm536, %v477, %v609
    %611 = vst [vmem:[%s257 + $0x70] sm:$0xf] %v610
    %v612 = vld [vmem:[%s257 + $0x74] sm:$0x1]
    %v613 = vsel %vm260, %v478, %v612
    %614 = vst [vmem:[%s257 + $0x74] sm:$0x1] %v613
    %v615 = vld [vmem:[%s257 + $0x78] sm:$0xf]
    %v616 = vsel %vm536, %v485, %v615
    %617 = vst [vmem:[%s257 + $0x78] sm:$0xf] %v616
    %v618 = vld [vmem:[%s257 + $0x7c] sm:$0x1]
    %v619 = vsel %vm260, %v486, %v618
    %620 = vst [vmem:[%s257 + $0x7c] sm:$0x1] %v619
    %v621 = vld [vmem:[%s257 + $0x80] sm:$0xf]
    %v622 = vsel %vm536, %v493, %v621
    %623 = vst [vmem:[%s257 + $0x80] sm:$0xf] %v622
    %v624 = vld [vmem:[%s257 + $0x84] sm:$0x1]
    %v625 = vsel %vm260, %v494, %v624
    %626 = vst [vmem:[%s257 + $0x84] sm:$0x1] %v625
    %v627 = vld [vmem:[%s257 + $0x88] sm:$0xf]
    %v628 = vsel %vm536, %v501, %v627
    %629 = vst [vmem:[%s257 + $0x88] sm:$0xf] %v628
    %v630 = vld [vmem:[%s257 + $0x8c] sm:$0x1]
    %v631 = vsel %vm260, %v502, %v630
    %632 = vst [vmem:[%s257 + $0x8c] sm:$0x1] %v631
    %v633 = vld [vmem:[#allocation2] sm:$0xf]
    %v634 = vld [vmem:[#allocation2 + $0x8] sm:$0xf]
    %v635 = vld [vmem:[#allocation2 + $0x10] sm:$0xf]
    %v636 = vld [vmem:[#allocation2 + $0x18] sm:$0xf]
    %v637 = vld [vmem:[#allocation2 + $0x20] sm:$0xf]
    %v638 = vld [vmem:[#allocation2 + $0x28] sm:$0xf]
    %v639 = vld [vmem:[#allocation2 + $0x30] sm:$0xf]
    %v640 = vld [vmem:[#allocation2 + $0x38] sm:$0xf]
    %v641 = vld [vmem:[#allocation2 + $0x50] sm:$0xf]
    %v642 = vld [vmem:[#allocation2 + $0x58] sm:$0xf]
    %v643 = vld [vmem:[#allocation2 + $0x60] sm:$0xf]
    %v644 = vld [vmem:[#allocation2 + $0x68] sm:$0xf]
    %v645 = vld [vmem:[#allocation2 + $0x70] sm:$0xf]
    %v646 = vld [vmem:[#allocation2 + $0x78] sm:$0xf]
    %v647 = vld [vmem:[#allocation2 + $0x80] sm:$0xf]
    %v648 = vld [vmem:[#allocation2 + $0x88] sm:$0xf]
    %v649 = vld [vmem:[#allocation8] sm:$0xf]
    %v650 = vld [vmem:[#allocation8 + $0x4] sm:$0xf]
    %v651 = vld [vmem:[#allocation8 + $0x8] sm:$0xf]
    %v652 = vld [vmem:[#allocation8 + $0xc] sm:$0xf]
    %v653 = vld [vmem:[#allocation8 + $0x10] sm:$0xf]
    %v654 = vld [vmem:[#allocation8 + $0x14] sm:$0xf]
    %v655 = vld [vmem:[#allocation8 + $0x18] sm:$0xf]
    %v656 = vld [vmem:[#allocation8 + $0x1c] sm:$0xf]
    %v657 = vld [vmem:[#allocation8 + $0x20] sm:$0xf]
    %v658 = vld [vmem:[#allocation8 + $0x24] sm:$0xf]
    %v659 = vld [vmem:[#allocation8 + $0x28] sm:$0xf]
    %v660 = vld [vmem:[#allocation8 + $0x2c] sm:$0xf]
    %v661 = vld [vmem:[#allocation8 + $0x30] sm:$0xf]
    %v662 = vld [vmem:[#allocation8 + $0x34] sm:$0xf]
    %v663 = vld [vmem:[#allocation8 + $0x38] sm:$0xf]
    %v664 = vld [vmem:[#allocation8 + $0x3c] sm:$0xf]
    %v665 = vld [vmem:[#allocation2 + $0x4] sm:$0x1]
    %v666 = vld [vmem:[#allocation2 + $0xc] sm:$0x1]
    %v667 = vld [vmem:[#allocation2 + $0x14] sm:$0x1]
    %v668 = vld [vmem:[#allocation2 + $0x1c] sm:$0x1]
    %v669 = vld [vmem:[#allocation2 + $0x24] sm:$0x1]
    %v670 = vld [vmem:[#allocation2 + $0x2c] sm:$0x1]
    %v671 = vld [vmem:[#allocation2 + $0x34] sm:$0x1]
    %v672 = vld [vmem:[#allocation2 + $0x3c] sm:$0x1]
    %v673 = vld [vmem:[#allocation2 + $0x54] sm:$0x1]
    %v674 = vld [vmem:[#allocation2 + $0x5c] sm:$0x1]
    %v675 = vld [vmem:[#allocation2 + $0x64] sm:$0x1]
    %v676 = vld [vmem:[#allocation2 + $0x6c] sm:$0x1]
    %v677 = vld [vmem:[#allocation2 + $0x74] sm:$0x1]
    %v678 = vld [vmem:[#allocation2 + $0x7c] sm:$0x1]
    %v679 = vld [vmem:[#allocation2 + $0x84] sm:$0x1]
    %v680 = vld [vmem:[#allocation2 + $0x8c] sm:$0x1]
    %vm681 = vsmask.f32 3328
    %vm682 = vsmask.f32 7440
    %vm683 = vmor %vm681, %vm682
    %v685 = vshrl.u32 %v633, 16
    %v687 = vrot.slane %v685, 4
    %v688 = vshll.u32 %v633, 16
    %v690 = vrot.slane %v688, 5
    %v691 = vor.u32 %v687, %v690
    %v692 = vrot.slane %v691, 4
    %v694 = vshll.u32 %v665, 16
    %v696 = vrot.slane %v694, 5
    %v697 = vsel %vm683, %v692, %v696
    %v699 = vshrl.u32 %v634, 16
    %v701 = vrot.slane %v699, 4
    %v702 = vshll.u32 %v634, 16
    %v704 = vrot.slane %v702, 5
    %v705 = vor.u32 %v701, %v704
    %v706 = vrot.slane %v705, 4
    %v708 = vshll.u32 %v666, 16
    %v710 = vrot.slane %v708, 5
    %v711 = vsel %vm683, %v706, %v710
    %v713 = vshrl.u32 %v635, 16
    %v715 = vrot.slane %v713, 4
    %v716 = vshll.u32 %v635, 16
    %v718 = vrot.slane %v716, 5
    %v719 = vor.u32 %v715, %v718
    %v720 = vrot.slane %v719, 4
    %v722 = vshll.u32 %v667, 16
    %v724 = vrot.slane %v722, 5
    %v725 = vsel %vm683, %v720, %v724
    %v727 = vshrl.u32 %v636, 16
    %v729 = vrot.slane %v727, 4
    %v730 = vshll.u32 %v636, 16
    %v732 = vrot.slane %v730, 5
    %v733 = vor.u32 %v729, %v732
    %v734 = vrot.slane %v733, 4
    %v736 = vshll.u32 %v668, 16
    %v738 = vrot.slane %v736, 5
    %v739 = vsel %vm683, %v734, %v738
    %v741 = vshrl.u32 %v637, 16
    %v743 = vrot.slane %v741, 4
    %v744 = vshll.u32 %v637, 16
    %v746 = vrot.slane %v744, 5
    %v747 = vor.u32 %v743, %v746
    %v748 = vrot.slane %v747, 4
    %v750 = vshll.u32 %v669, 16
    %v752 = vrot.slane %v750, 5
    %v753 = vsel %vm683, %v748, %v752
    %v755 = vshrl.u32 %v638, 16
    %v757 = vrot.slane %v755, 4
    %v758 = vshll.u32 %v638, 16
    %v760 = vrot.slane %v758, 5
    %v761 = vor.u32 %v757, %v760
    %v762 = vrot.slane %v761, 4
    %v764 = vshll.u32 %v670, 16
    %v766 = vrot.slane %v764, 5
    %v767 = vsel %vm683, %v762, %v766
    %v769 = vshrl.u32 %v639, 16
    %v771 = vrot.slane %v769, 4
    %v772 = vshll.u32 %v639, 16
    %v774 = vrot.slane %v772, 5
    %v775 = vor.u32 %v771, %v774
    %v776 = vrot.slane %v775, 4
    %v778 = vshll.u32 %v671, 16
    %v780 = vrot.slane %v778, 5
    %v781 = vsel %vm683, %v776, %v780
    %v783 = vshrl.u32 %v640, 16
    %v785 = vrot.slane %v783, 4
    %v786 = vshll.u32 %v640, 16
    %v788 = vrot.slane %v786, 5
    %v789 = vor.u32 %v785, %v788
    %v790 = vrot.slane %v789, 4
    %v792 = vshll.u32 %v672, 16
    %v794 = vrot.slane %v792, 5
    %v795 = vsel %vm683, %v790, %v794
    %v797 = vshrl.u32 %v641, 16
    %v799 = vrot.slane %v797, 4
    %v800 = vshll.u32 %v641, 16
    %v802 = vrot.slane %v800, 5
    %v803 = vor.u32 %v799, %v802
    %v804 = vrot.slane %v803, 4
    %v806 = vshll.u32 %v673, 16
    %v808 = vrot.slane %v806, 5
    %v809 = vsel %vm683, %v804, %v808
    %v811 = vshrl.u32 %v642, 16
    %v813 = vrot.slane %v811, 4
    %v814 = vshll.u32 %v642, 16
    %v816 = vrot.slane %v814, 5
    %v817 = vor.u32 %v813, %v816
    %v818 = vrot.slane %v817, 4
    %v820 = vshll.u32 %v674, 16
    %v822 = vrot.slane %v820, 5
    %v823 = vsel %vm683, %v818, %v822
    %v825 = vshrl.u32 %v643, 16
    %v827 = vrot.slane %v825, 4
    %v828 = vshll.u32 %v643, 16
    %v830 = vrot.slane %v828, 5
    %v831 = vor.u32 %v827, %v830
    %v832 = vrot.slane %v831, 4
    %v834 = vshll.u32 %v675, 16
    %v836 = vrot.slane %v834, 5
    %v837 = vsel %vm683, %v832, %v836
    %v839 = vshrl.u32 %v644, 16
    %v841 = vrot.slane %v839, 4
    %v842 = vshll.u32 %v644, 16
    %v844 = vrot.slane %v842, 5
    %v845 = vor.u32 %v841, %v844
    %v846 = vrot.slane %v845, 4
    %v848 = vshll.u32 %v676, 16
    %v850 = vrot.slane %v848, 5
    %v851 = vsel %vm683, %v846, %v850
    %v853 = vshrl.u32 %v645, 16
    %v855 = vrot.slane %v853, 4
    %v856 = vshll.u32 %v645, 16
    %v858 = vrot.slane %v856, 5
    %v859 = vor.u32 %v855, %v858
    %v860 = vrot.slane %v859, 4
    %v862 = vshll.u32 %v677, 16
    %v864 = vrot.slane %v862, 5
    %v865 = vsel %vm683, %v860, %v864
    %v867 = vshrl.u32 %v646, 16
    %v869 = vrot.slane %v867, 4
    %v870 = vshll.u32 %v646, 16
    %v872 = vrot.slane %v870, 5
    %v873 = vor.u32 %v869, %v872
    %v874 = vrot.slane %v873, 4
    %v876 = vshll.u32 %v678, 16
    %v878 = vrot.slane %v876, 5
    %v879 = vsel %vm683, %v874, %v878
    %v881 = vshrl.u32 %v647, 16
    %v883 = vrot.slane %v881, 4
    %v884 = vshll.u32 %v647, 16
    %v886 = vrot.slane %v884, 5
    %v887 = vor.u32 %v883, %v886
    %v888 = vrot.slane %v887, 4
    %v890 = vshll.u32 %v679, 16
    %v892 = vrot.slane %v890, 5
    %v893 = vsel %vm683, %v888, %v892
    %v895 = vshrl.u32 %v648, 16
    %v897 = vrot.slane %v895, 4
    %v898 = vshll.u32 %v648, 16
    %v900 = vrot.slane %v898, 5
    %v901 = vor.u32 %v897, %v900
    %v902 = vrot.slane %v901, 4
    %v904 = vshll.u32 %v680, 16
    %v906 = vrot.slane %v904, 5
    %v907 = vsel %vm683, %v902, %v906
    %s908 = scalar_lea.vmem [#allocation8], 64
    %v909 = vld [vmem:[%s908] sm:$0xf]
    %v910 = vld [vmem:[%s908 + $0x4] sm:$0xf]
    %v911 = vld [vmem:[%s908 + $0x8] sm:$0xf]
    %v912 = vld [vmem:[%s908 + $0xc] sm:$0xf]
    %v913 = vld [vmem:[%s908 + $0x10] sm:$0xf]
    %v914 = vld [vmem:[%s908 + $0x14] sm:$0xf]
    %v915 = vld [vmem:[%s908 + $0x18] sm:$0xf]
    %v916 = vld [vmem:[%s908 + $0x1c] sm:$0xf]
    %v917 = vld [vmem:[%s908 + $0x20] sm:$0xf]
    %v918 = vld [vmem:[%s908 + $0x24] sm:$0xf]
    %v919 = vld [vmem:[%s908 + $0x28] sm:$0xf]
    %v920 = vld [vmem:[%s908 + $0x2c] sm:$0xf]
    %v921 = vld [vmem:[%s908 + $0x30] sm:$0xf]
    %v922 = vld [vmem:[%s908 + $0x34] sm:$0xf]
    %v923 = vld [vmem:[%s908 + $0x38] sm:$0xf]
    %v924 = vld [vmem:[%s908 + $0x3c] sm:$0xf]
    %v925 = vunpack.c.l.b16 %v697
    %v926 = vunpack.c.l.b16 %v711
    %v927 = vunpack.c.l.b16 %v725
    %v928 = vunpack.c.l.b16 %v739
    %v929 = vunpack.c.l.b16 %v753
    %v930 = vunpack.c.l.b16 %v767
    %v931 = vunpack.c.l.b16 %v781
    %v932 = vunpack.c.l.b16 %v795
    %v933 = vunpack.c.l.b16 %v809
    %v934 = vunpack.c.l.b16 %v823
    %v935 = vunpack.c.l.b16 %v837
    %v936 = vunpack.c.l.b16 %v851
    %v937 = vunpack.c.l.b16 %v865
    %v938 = vunpack.c.l.b16 %v879
    %v939 = vunpack.c.l.b16 %v893
    %v940 = vunpack.c.l.b16 %v907
    %v941 = vpack.c.b16 %v926, %v925
    %v942 = vpack.c.b16 %v928, %v927
    %v943 = vpack.c.b16 %v930, %v929
    %v944 = vpack.c.b16 %v932, %v931
    %v945 = vpack.c.b16 %v934, %v933
    %v946 = vpack.c.b16 %v936, %v935
    %v947 = vpack.c.b16 %v938, %v937
    %v948 = vpack.c.b16 %v940, %v939
    %v973 = vunpack.c.l.b16 %v909
    %v974 = vunpack.c.l.b16 %v910
    %v975 = vunpack.c.l.b16 %v911
    %v976 = vunpack.c.l.b16 %v912
    %v977 = vunpack.c.l.b16 %v913
    %v978 = vunpack.c.l.b16 %v914
    %v979 = vunpack.c.l.b16 %v915
    %v980 = vunpack.c.l.b16 %v916
    %v981 = vunpack.c.l.b16 %v917
    %v982 = vunpack.c.l.b16 %v918
    %v983 = vunpack.c.l.b16 %v919
    %v984 = vunpack.c.l.b16 %v920
    %v985 = vunpack.c.l.b16 %v921
    %v986 = vunpack.c.l.b16 %v922
    %v987 = vunpack.c.l.b16 %v923
    %v988 = vunpack.c.l.b16 %v924
    %v989 = vpack.c.b16 %v974, %v973
    %v990 = vpack.c.b16 %v976, %v975
    %v991 = vpack.c.b16 %v978, %v977
    %v992 = vpack.c.b16 %v980, %v979
    %v993 = vpack.c.b16 %v982, %v981
    %v994 = vpack.c.b16 %v984, %v983
    %v995 = vpack.c.b16 %v986, %v985
    %v996 = vpack.c.b16 %v988, %v987
    %1005 = vmatpush.bf16.msra.mxu0 %v996
    %1006 = vmatpush.bf16.msra.mxu0 %v995
    %1007 = vmatpush.bf16.msra.mxu0 %v994
    %1008 = vmatpush.bf16.msra.mxu0 %v993
    %1009 = vmatpush.bf16.msra.mxu0 %v992
    %1010 = vmatpush.bf16.msra.mxu0 %v991
    %1011 = vmatpush.bf16.msra.mxu0 %v990
    %1012 = vmatpush.bf16.msra.mxu0 %v989
    %1013 = vmatmul.bf16.gmra.mxu0 %v941
    %v1014 = vpop.f32.mrf.mxu0
    %v1015 = vadd.f32 0.0, %v1014
    %v1016 = vpop.f32.mrf.mxu0
    %v1017 = vadd.f32 0.0, %v1016
    %1018 = vmatmul.bf16.gmra.mxu0 %v942
    %v1019 = vpop.f32.mrf.mxu0
    %v1020 = vadd.f32 0.0, %v1019
    %v1021 = vpop.f32.mrf.mxu0
    %v1022 = vadd.f32 0.0, %v1021
    %1023 = vmatmul.bf16.gmra.mxu0 %v943
    %v1024 = vpop.f32.mrf.mxu0
    %v1025 = vadd.f32 0.0, %v1024
    %v1026 = vpop.f32.mrf.mxu0
    %v1027 = vadd.f32 0.0, %v1026
    %1028 = vmatmul.bf16.gmra.mxu0 %v944
    %v1029 = vpop.f32.mrf.mxu0
    %v1030 = vadd.f32 0.0, %v1029
    %v1031 = vpop.f32.mrf.mxu0
    %v1032 = vadd.f32 0.0, %v1031
    %1033 = vmatmul.bf16.gmra.mxu0 %v945
    %v1034 = vpop.f32.mrf.mxu0
    %v1035 = vadd.f32 0.0, %v1034
    %v1036 = vpop.f32.mrf.mxu0
    %v1037 = vadd.f32 0.0, %v1036
    %1038 = vmatmul.bf16.gmra.mxu0 %v946
    %v1039 = vpop.f32.mrf.mxu0
    %v1040 = vadd.f32 0.0, %v1039
    %v1041 = vpop.f32.mrf.mxu0
    %v1042 = vadd.f32 0.0, %v1041
    %1043 = vmatmul.bf16.gmra.mxu0 %v947
    %v1044 = vpop.f32.mrf.mxu0
    %v1045 = vadd.f32 0.0, %v1044
    %v1046 = vpop.f32.mrf.mxu0
    %v1047 = vadd.f32 0.0, %v1046
    %1048 = vmatmul.bf16.gmra.mxu0 %v948
    %v1049 = vpop.f32.mrf.mxu0
    %v1050 = vadd.f32 0.0, %v1049
    %v1051 = vpop.f32.mrf.mxu0
    %v1052 = vadd.f32 0.0, %v1051
    %1053 = vdwg.mxu0
    %v1070 = vunpack.c.l.b16 %v633
    %v1071 = vunpack.c.l.b16 %v634
    %v1072 = vunpack.c.l.b16 %v635
    %v1073 = vunpack.c.l.b16 %v636
    %v1074 = vunpack.c.l.b16 %v637
    %v1075 = vunpack.c.l.b16 %v638
    %v1076 = vunpack.c.l.b16 %v639
    %v1077 = vunpack.c.l.b16 %v640
    %v1078 = vunpack.c.l.b16 %v641
    %v1079 = vunpack.c.l.b16 %v642
    %v1080 = vunpack.c.l.b16 %v643
    %v1081 = vunpack.c.l.b16 %v644
    %v1082 = vunpack.c.l.b16 %v645
    %v1083 = vunpack.c.l.b16 %v646
    %v1084 = vunpack.c.l.b16 %v647
    %v1085 = vunpack.c.l.b16 %v648
    %v1086 = vpack.c.b16 %v1071, %v1070
    %v1087 = vpack.c.b16 %v1073, %v1072
    %v1088 = vpack.c.b16 %v1075, %v1074
    %v1089 = vpack.c.b16 %v1077, %v1076
    %v1090 = vpack.c.b16 %v1079, %v1078
    %v1091 = vpack.c.b16 %v1081, %v1080
    %v1092 = vpack.c.b16 %v1083, %v1082
    %v1093 = vpack.c.b16 %v1085, %v1084
    %v1118 = vunpack.c.l.b16 %v649
    %v1119 = vunpack.c.l.b16 %v650
    %v1120 = vunpack.c.l.b16 %v651
    %v1121 = vunpack.c.l.b16 %v652
    %v1122 = vunpack.c.l.b16 %v653
    %v1123 = vunpack.c.l.b16 %v654
    %v1124 = vunpack.c.l.b16 %v655
    %v1125 = vunpack.c.l.b16 %v656
    %v1126 = vunpack.c.l.b16 %v657
    %v1127 = vunpack.c.l.b16 %v658
    %v1128 = vunpack.c.l.b16 %v659
    %v1129 = vunpack.c.l.b16 %v660
    %v1130 = vunpack.c.l.b16 %v661
    %v1131 = vunpack.c.l.b16 %v662
    %v1132 = vunpack.c.l.b16 %v663
    %v1133 = vunpack.c.l.b16 %v664
    %v1134 = vpack.c.b16 %v1119, %v1118
    %v1135 = vpack.c.b16 %v1121, %v1120
    %v1136 = vpack.c.b16 %v1123, %v1122
    %v1137 = vpack.c.b16 %v1125, %v1124
    %v1138 = vpack.c.b16 %v1127, %v1126
    %v1139 = vpack.c.b16 %v1129, %v1128
    %v1140 = vpack.c.b16 %v1131, %v1130
    %v1141 = vpack.c.b16 %v1133, %v1132
    %1150 = vmatpush.bf16.msra.mxu0 %v1141
    %1151 = vmatpush.bf16.msra.mxu0 %v1140
    %1152 = vmatpush.bf16.msra.mxu0 %v1139
    %1153 = vmatpush.bf16.msra.mxu0 %v1138
    %1154 = vmatpush.bf16.msra.mxu0 %v1137
    %1155 = vmatpush.bf16.msra.mxu0 %v1136
    %1156 = vmatpush.bf16.msra.mxu0 %v1135
    %1157 = vmatpush.bf16.msra.mxu0 %v1134
    %1158 = vmatmul.bf16.gmra.mxu0 %v1086
    %v1159 = vpop.f32.mrf.mxu0
    %v1160 = vadd.f32 %v1015, %v1159
    %v1161 = vpop.f32.mrf.mxu0
    %v1162 = vadd.f32 %v1017, %v1161
    %1163 = vmatmul.bf16.gmra.mxu0 %v1087
    %v1164 = vpop.f32.mrf.mxu0
    %v1165 = vadd.f32 %v1020, %v1164
    %v1166 = vpop.f32.mrf.mxu0
    %v1167 = vadd.f32 %v1022, %v1166
    %1168 = vmatmul.bf16.gmra.mxu0 %v1088
    %v1169 = vpop.f32.mrf.mxu0
    %v1170 = vadd.f32 %v1025, %v1169
    %v1171 = vpop.f32.mrf.mxu0
    %v1172 = vadd.f32 %v1027, %v1171
    %1173 = vmatmul.bf16.gmra.mxu0 %v1089
    %v1174 = vpop.f32.mrf.mxu0
    %v1175 = vadd.f32 %v1030, %v1174
    %v1176 = vpop.f32.mrf.mxu0
    %v1177 = vadd.f32 %v1032, %v1176
    %1178 = vmatmul.bf16.gmra.mxu0 %v1090
    %v1179 = vpop.f32.mrf.mxu0
    %v1180 = vadd.f32 %v1035, %v1179
    %v1181 = vpop.f32.mrf.mxu0
    %v1182 = vadd.f32 %v1037, %v1181
    %1183 = vmatmul.bf16.gmra.mxu0 %v1091
    %v1184 = vpop.f32.mrf.mxu0
    %v1185 = vadd.f32 %v1040, %v1184
    %v1186 = vpop.f32.mrf.mxu0
    %v1187 = vadd.f32 %v1042, %v1186
    %1188 = vmatmul.bf16.gmra.mxu0 %v1092
    %v1189 = vpop.f32.mrf.mxu0
    %v1190 = vadd.f32 %v1045, %v1189
    %v1191 = vpop.f32.mrf.mxu0
    %v1192 = vadd.f32 %v1047, %v1191
    %1193 = vmatmul.bf16.gmra.mxu0 %v1093
    %v1194 = vpop.f32.mrf.mxu0
    %v1195 = vadd.f32 %v1050, %v1194
    %v1196 = vpop.f32.mrf.mxu0
    %v1197 = vadd.f32 %v1052, %v1196
    %1198 = vdwg.mxu0
    %v1199 = vld [vmem:[#allocation2] sm:$0xe]
    %v1200 = vld [vmem:[#allocation2 + $0x8] sm:$0xe]
    %v1201 = vld [vmem:[#allocation2 + $0x10] sm:$0xe]
    %v1202 = vld [vmem:[#allocation2 + $0x18] sm:$0xe]
    %v1203 = vld [vmem:[#allocation2 + $0x20] sm:$0xe]
    %v1204 = vld [vmem:[#allocation2 + $0x28] sm:$0xe]
    %v1205 = vld [vmem:[#allocation2 + $0x30] sm:$0xe]
    %v1206 = vld [vmem:[#allocation2 + $0x38] sm:$0xe]
    %v1207 = vld [vmem:[#allocation2 + $0x50] sm:$0xe]
    %v1208 = vld [vmem:[#allocation2 + $0x58] sm:$0xe]
    %v1209 = vld [vmem:[#allocation2 + $0x60] sm:$0xe]
    %v1210 = vld [vmem:[#allocation2 + $0x68] sm:$0xe]
    %v1211 = vld [vmem:[#allocation2 + $0x70] sm:$0xe]
    %v1212 = vld [vmem:[#allocation2 + $0x78] sm:$0xe]
    %v1213 = vld [vmem:[#allocation2 + $0x80] sm:$0xe]
    %v1214 = vld [vmem:[#allocation2 + $0x88] sm:$0xe]
    %vm1247 = vcmask 1042432
    %vm1248 = vcmask 1046532
    %vm1249 = vmor %vm1247, %vm1248
    %v1250 = vrot.slane %v1199, 5
    %v1251 = vrot.slane %v1250, 4
    %v1252 = vrot.slane %v665, 5
    %v1253 = vsel %vm1249, %v1251, %v1252
    %v1254 = vrot.slane %v1200, 5
    %v1255 = vrot.slane %v1254, 4
    %v1256 = vrot.slane %v666, 5
    %v1257 = vsel %vm1249, %v1255, %v1256
    %v1258 = vrot.slane %v1201, 5
    %v1259 = vrot.slane %v1258, 4
    %v1260 = vrot.slane %v667, 5
    %v1261 = vsel %vm1249, %v1259, %v1260
    %v1262 = vrot.slane %v1202, 5
    %v1263 = vrot.slane %v1262, 4
    %v1264 = vrot.slane %v668, 5
    %v1265 = vsel %vm1249, %v1263, %v1264
    %v1266 = vrot.slane %v1203, 5
    %v1267 = vrot.slane %v1266, 4
    %v1268 = vrot.slane %v669, 5
    %v1269 = vsel %vm1249, %v1267, %v1268
    %v1270 = vrot.slane %v1204, 5
    %v1271 = vrot.slane %v1270, 4
    %v1272 = vrot.slane %v670, 5
    %v1273 = vsel %vm1249, %v1271, %v1272
    %v1274 = vrot.slane %v1205, 5
    %v1275 = vrot.slane %v1274, 4
    %v1276 = vrot.slane %v671, 5
    %v1277 = vsel %vm1249, %v1275, %v1276
    %v1278 = vrot.slane %v1206, 5
    %v1279 = vrot.slane %v1278, 4
    %v1280 = vrot.slane %v672, 5
    %v1281 = vsel %vm1249, %v1279, %v1280
    %v1282 = vrot.slane %v1207, 5
    %v1283 = vrot.slane %v1282, 4
    %v1284 = vrot.slane %v673, 5
    %v1285 = vsel %vm1249, %v1283, %v1284
    %v1286 = vrot.slane %v1208, 5
    %v1287 = vrot.slane %v1286, 4
    %v1288 = vrot.slane %v674, 5
    %v1289 = vsel %vm1249, %v1287, %v1288
    %v1290 = vrot.slane %v1209, 5
    %v1291 = vrot.slane %v1290, 4
    %v1292 = vrot.slane %v675, 5
    %v1293 = vsel %vm1249, %v1291, %v1292
    %v1294 = vrot.slane %v1210, 5
    %v1295 = vrot.slane %v1294, 4
    %v1296 = vrot.slane %v676, 5
    %v1297 = vsel %vm1249, %v1295, %v1296
    %v1298 = vrot.slane %v1211, 5
    %v1299 = vrot.slane %v1298, 4
    %v1300 = vrot.slane %v677, 5
    %v1301 = vsel %vm1249, %v1299, %v1300
    %v1302 = vrot.slane %v1212, 5
    %v1303 = vrot.slane %v1302, 4
    %v1304 = vrot.slane %v678, 5
    %v1305 = vsel %vm1249, %v1303, %v1304
    %v1306 = vrot.slane %v1213, 5
    %v1307 = vrot.slane %v1306, 4
    %v1308 = vrot.slane %v679, 5
    %v1309 = vsel %vm1249, %v1307, %v1308
    %v1310 = vrot.slane %v1214, 5
    %v1311 = vrot.slane %v1310, 4
    %v1312 = vrot.slane %v680, 5
    %v1313 = vsel %vm1249, %v1311, %v1312
    %s1314 = scalar_lea.vmem [#allocation8], 128
    %v1315 = vld [vmem:[%s1314] sm:$0xf]
    %v1316 = vld [vmem:[%s1314 + $0x4] sm:$0xf]
    %v1317 = vld [vmem:[%s1314 + $0x8] sm:$0xf]
    %v1318 = vld [vmem:[%s1314 + $0xc] sm:$0xf]
    %v1319 = vld [vmem:[%s1314 + $0x10] sm:$0xf]
    %v1320 = vld [vmem:[%s1314 + $0x14] sm:$0xf]
    %v1321 = vld [vmem:[%s1314 + $0x18] sm:$0xf]
    %v1322 = vld [vmem:[%s1314 + $0x1c] sm:$0xf]
    %v1323 = vld [vmem:[%s1314 + $0x20] sm:$0xf]
    %v1324 = vld [vmem:[%s1314 + $0x24] sm:$0xf]
    %v1325 = vld [vmem:[%s1314 + $0x28] sm:$0xf]
    %v1326 = vld [vmem:[%s1314 + $0x2c] sm:$0xf]
    %v1327 = vld [vmem:[%s1314 + $0x30] sm:$0xf]
    %v1328 = vld [vmem:[%s1314 + $0x34] sm:$0xf]
    %v1329 = vld [vmem:[%s1314 + $0x38] sm:$0xf]
    %v1330 = vld [vmem:[%s1314 + $0x3c] sm:$0xf]
    %v1331 = vunpack.c.l.b16 %v1253
    %v1332 = vunpack.c.l.b16 %v1257
    %v1333 = vunpack.c.l.b16 %v1261
    %v1334 = vunpack.c.l.b16 %v1265
    %v1335 = vunpack.c.l.b16 %v1269
    %v1336 = vunpack.c.l.b16 %v1273
    %v1337 = vunpack.c.l.b16 %v1277
    %v1338 = vunpack.c.l.b16 %v1281
    %v1339 = vunpack.c.l.b16 %v1285
    %v1340 = vunpack.c.l.b16 %v1289
    %v1341 = vunpack.c.l.b16 %v1293
    %v1342 = vunpack.c.l.b16 %v1297
    %v1343 = vunpack.c.l.b16 %v1301
    %v1344 = vunpack.c.l.b16 %v1305
    %v1345 = vunpack.c.l.b16 %v1309
    %v1346 = vunpack.c.l.b16 %v1313
    %v1347 = vpack.c.b16 %v1332, %v1331
    %v1348 = vpack.c.b16 %v1334, %v1333
    %v1349 = vpack.c.b16 %v1336, %v1335
    %v1350 = vpack.c.b16 %v1338, %v1337
    %v1351 = vpack.c.b16 %v1340, %v1339
    %v1352 = vpack.c.b16 %v1342, %v1341
    %v1353 = vpack.c.b16 %v1344, %v1343
    %v1354 = vpack.c.b16 %v1346, %v1345
    %v1379 = vunpack.c.l.b16 %v1315
    %v1380 = vunpack.c.l.b16 %v1316
    %v1381 = vunpack.c.l.b16 %v1317
    %v1382 = vunpack.c.l.b16 %v1318
    %v1383 = vunpack.c.l.b16 %v1319
    %v1384 = vunpack.c.l.b16 %v1320
    %v1385 = vunpack.c.l.b16 %v1321
    %v1386 = vunpack.c.l.b16 %v1322
    %v1387 = vunpack.c.l.b16 %v1323
    %v1388 = vunpack.c.l.b16 %v1324
    %v1389 = vunpack.c.l.b16 %v1325
    %v1390 = vunpack.c.l.b16 %v1326
    %v1391 = vunpack.c.l.b16 %v1327
    %v1392 = vunpack.c.l.b16 %v1328
    %v1393 = vunpack.c.l.b16 %v1329
    %v1394 = vunpack.c.l.b16 %v1330
    %v1395 = vpack.c.b16 %v1380, %v1379
    %v1396 = vpack.c.b16 %v1382, %v1381
    %v1397 = vpack.c.b16 %v1384, %v1383
    %v1398 = vpack.c.b16 %v1386, %v1385
    %v1399 = vpack.c.b16 %v1388, %v1387
    %v1400 = vpack.c.b16 %v1390, %v1389
    %v1401 = vpack.c.b16 %v1392, %v1391
    %v1402 = vpack.c.b16 %v1394, %v1393
    %1411 = vmatpush.bf16.msra.mxu0 %v1402
    %1412 = vmatpush.bf16.msra.mxu0 %v1401
    %1413 = vmatpush.bf16.msra.mxu0 %v1400
    %1414 = vmatpush.bf16.msra.mxu0 %v1399
    %1415 = vmatpush.bf16.msra.mxu0 %v1398
    %1416 = vmatpush.bf16.msra.mxu0 %v1397
    %1417 = vmatpush.bf16.msra.mxu0 %v1396
    %1418 = vmatpush.bf16.msra.mxu0 %v1395
    %1419 = vmatmul.bf16.gmra.mxu0 %v1347
    %v1420 = vpop.f32.mrf.mxu0
    %v1421 = vadd.f32 0.0, %v1420
    %v1422 = vpop.f32.mrf.mxu0
    %v1423 = vadd.f32 0.0, %v1422
    %1424 = vmatmul.bf16.gmra.mxu0 %v1348
    %v1425 = vpop.f32.mrf.mxu0
    %v1426 = vadd.f32 0.0, %v1425
    %v1427 = vpop.f32.mrf.mxu0
    %v1428 = vadd.f32 0.0, %v1427
    %1429 = vmatmul.bf16.gmra.mxu0 %v1349
    %v1430 = vpop.f32.mrf.mxu0
    %v1431 = vadd.f32 0.0, %v1430
    %v1432 = vpop.f32.mrf.mxu0
    %v1433 = vadd.f32 0.0, %v1432
    %1434 = vmatmul.bf16.gmra.mxu0 %v1350
    %v1435 = vpop.f32.mrf.mxu0
    %v1436 = vadd.f32 0.0, %v1435
    %v1437 = vpop.f32.mrf.mxu0
    %v1438 = vadd.f32 0.0, %v1437
    %1439 = vmatmul.bf16.gmra.mxu0 %v1351
    %v1440 = vpop.f32.mrf.mxu0
    %v1441 = vadd.f32 0.0, %v1440
    %v1442 = vpop.f32.mrf.mxu0
    %v1443 = vadd.f32 0.0, %v1442
    %1444 = vmatmul.bf16.gmra.mxu0 %v1352
    %v1445 = vpop.f32.mrf.mxu0
    %v1446 = vadd.f32 0.0, %v1445
    %v1447 = vpop.f32.mrf.mxu0
    %v1448 = vadd.f32 0.0, %v1447
    %1449 = vmatmul.bf16.gmra.mxu0 %v1353
    %v1450 = vpop.f32.mrf.mxu0
    %v1451 = vadd.f32 0.0, %v1450
    %v1452 = vpop.f32.mrf.mxu0
    %v1453 = vadd.f32 0.0, %v1452
    %1454 = vmatmul.bf16.gmra.mxu0 %v1354
    %v1455 = vpop.f32.mrf.mxu0
    %v1456 = vadd.f32 0.0, %v1455
    %v1457 = vpop.f32.mrf.mxu0
    %v1458 = vadd.f32 0.0, %v1457
    %1459 = vdwg.mxu0
    %v1460 = vadd.f32 %v1160, %v1421
    %v1461 = vadd.f32 %v1162, %v1423
    %v1462 = vadd.f32 %v1165, %v1426
    %v1463 = vadd.f32 %v1167, %v1428
    %v1464 = vadd.f32 %v1170, %v1431
    %v1465 = vadd.f32 %v1172, %v1433
    %v1466 = vadd.f32 %v1175, %v1436
    %v1467 = vadd.f32 %v1177, %v1438
    %v1468 = vadd.f32 %v1180, %v1441
    %v1469 = vadd.f32 %v1182, %v1443
    %v1470 = vadd.f32 %v1185, %v1446
    %v1471 = vadd.f32 %v1187, %v1448
    %v1472 = vadd.f32 %v1190, %v1451
    %v1473 = vadd.f32 %v1192, %v1453
    %v1474 = vadd.f32 %v1195, %v1456
    %v1475 = vadd.f32 %v1197, %v1458
    %v1476 = vld [vmem:[%s257] sm:$0xf]
    %v1477 = vld [vmem:[%s257 + $0x8] sm:$0xf]
    %v1478 = vld [vmem:[%s257 + $0x10] sm:$0xf]
    %v1479 = vld [vmem:[%s257 + $0x18] sm:$0xf]
    %v1480 = vld [vmem:[%s257 + $0x20] sm:$0xf]
    %v1481 = vld [vmem:[%s257 + $0x28] sm:$0xf]
    %v1482 = vld [vmem:[%s257 + $0x30] sm:$0xf]
    %v1483 = vld [vmem:[%s257 + $0x38] sm:$0xf]
    %v1484 = vld [vmem:[%s257 + $0x50] sm:$0xf]
    %v1485 = vld [vmem:[%s257 + $0x58] sm:$0xf]
    %v1486 = vld [vmem:[%s257 + $0x60] sm:$0xf]
    %v1487 = vld [vmem:[%s257 + $0x68] sm:$0xf]
    %v1488 = vld [vmem:[%s257 + $0x70] sm:$0xf]
    %v1489 = vld [vmem:[%s257 + $0x78] sm:$0xf]
    %v1490 = vld [vmem:[%s257 + $0x80] sm:$0xf]
    %v1491 = vld [vmem:[%s257 + $0x88] sm:$0xf]
    %s1492 = scalar_lea.vmem [#allocation8], 192
    %v1493 = vld [vmem:[%s1492] sm:$0xf]
    %v1494 = vld [vmem:[%s1492 + $0x4] sm:$0xf]
    %v1495 = vld [vmem:[%s1492 + $0x8] sm:$0xf]
    %v1496 = vld [vmem:[%s1492 + $0xc] sm:$0xf]
    %v1497 = vld [vmem:[%s1492 + $0x10] sm:$0xf]
    %v1498 = vld [vmem:[%s1492 + $0x14] sm:$0xf]
    %v1499 = vld [vmem:[%s1492 + $0x18] sm:$0xf]
    %v1500 = vld [vmem:[%s1492 + $0x1c] sm:$0xf]
    %v1501 = vld [vmem:[%s1492 + $0x20] sm:$0xf]
    %v1502 = vld [vmem:[%s1492 + $0x24] sm:$0xf]
    %v1503 = vld [vmem:[%s1492 + $0x28] sm:$0xf]
    %v1504 = vld [vmem:[%s1492 + $0x2c] sm:$0xf]
    %v1505 = vld [vmem:[%s1492 + $0x30] sm:$0xf]
    %v1506 = vld [vmem:[%s1492 + $0x34] sm:$0xf]
    %v1507 = vld [vmem:[%s1492 + $0x38] sm:$0xf]
    %v1508 = vld [vmem:[%s1492 + $0x3c] sm:$0xf]
    %v1525 = vunpack.c.l.b16 %v1476
    %v1526 = vunpack.c.l.b16 %v1477
    %v1527 = vunpack.c.l.b16 %v1478
    %v1528 = vunpack.c.l.b16 %v1479
    %v1529 = vunpack.c.l.b16 %v1480
    %v1530 = vunpack.c.l.b16 %v1481
    %v1531 = vunpack.c.l.b16 %v1482
    %v1532 = vunpack.c.l.b16 %v1483
    %v1533 = vunpack.c.l.b16 %v1484
    %v1534 = vunpack.c.l.b16 %v1485
    %v1535 = vunpack.c.l.b16 %v1486
    %v1536 = vunpack.c.l.b16 %v1487
    %v1537 = vunpack.c.l.b16 %v1488
    %v1538 = vunpack.c.l.b16 %v1489
    %v1539 = vunpack.c.l.b16 %v1490
    %v1540 = vunpack.c.l.b16 %v1491
    %v1541 = vpack.c.b16 %v1526, %v1525
    %v1542 = vpack.c.b16 %v1528, %v1527
    %v1543 = vpack.c.b16 %v1530, %v1529
    %v1544 = vpack.c.b16 %v1532, %v1531
    %v1545 = vpack.c.b16 %v1534, %v1533
    %v1546 = vpack.c.b16 %v1536, %v1535
    %v1547 = vpack.c.b16 %v1538, %v1537
    %v1548 = vpack.c.b16 %v1540, %v1539
    %v1573 = vunpack.c.l.b16 %v1493
    %v1574 = vunpack.c.l.b16 %v1494
    %v1575 = vunpack.c.l.b16 %v1495
    %v1576 = vunpack.c.l.b16 %v1496
    %v1577 = vunpack.c.l.b16 %v1497
    %v1578 = vunpack.c.l.b16 %v1498
    %v1579 = vunpack.c.l.b16 %v1499
    %v1580 = vunpack.c.l.b16 %v1500
    %v1581 = vunpack.c.l.b16 %v1501
    %v1582 = vunpack.c.l.b16 %v1502
    %v1583 = vunpack.c.l.b16 %v1503
    %v1584 = vunpack.c.l.b16 %v1504
    %v1585 = vunpack.c.l.b16 %v1505
    %v1586 = vunpack.c.l.b16 %v1506
    %v1587 = vunpack.c.l.b16 %v1507
    %v1588 = vunpack.c.l.b16 %v1508
    %v1589 = vpack.c.b16 %v1574, %v1573
    %v1590 = vpack.c.b16 %v1576, %v1575
    %v1591 = vpack.c.b16 %v1578, %v1577
    %v1592 = vpack.c.b16 %v1580, %v1579
    %v1593 = vpack.c.b16 %v1582, %v1581
    %v1594 = vpack.c.b16 %v1584, %v1583
    %v1595 = vpack.c.b16 %v1586, %v1585
    %v1596 = vpack.c.b16 %v1588, %v1587
    %1605 = vmatpush.bf16.msra.mxu0 %v1596
    %1606 = vmatpush.bf16.msra.mxu0 %v1595
    %1607 = vmatpush.bf16.msra.mxu0 %v1594
    %1608 = vmatpush.bf16.msra.mxu0 %v1593
    %1609 = vmatpush.bf16.msra.mxu0 %v1592
    %1610 = vmatpush.bf16.msra.mxu0 %v1591
    %1611 = vmatpush.bf16.msra.mxu0 %v1590
    %1612 = vmatpush.bf16.msra.mxu0 %v1589
    %1613 = vmatmul.bf16.gmra.mxu0 %v1541
    %v1614 = vpop.f32.mrf.mxu0
    %v1615 = vadd.f32 0.0, %v1614
    %v1616 = vpop.f32.mrf.mxu0
    %v1617 = vadd.f32 0.0, %v1616
    %1618 = vmatmul.bf16.gmra.mxu0 %v1542
    %v1619 = vpop.f32.mrf.mxu0
    %v1620 = vadd.f32 0.0, %v1619
    %v1621 = vpop.f32.mrf.mxu0
    %v1622 = vadd.f32 0.0, %v1621
    %1623 = vmatmul.bf16.gmra.mxu0 %v1543
    %v1624 = vpop.f32.mrf.mxu0
    %v1625 = vadd.f32 0.0, %v1624
    %v1626 = vpop.f32.mrf.mxu0
    %v1627 = vadd.f32 0.0, %v1626
    %1628 = vmatmul.bf16.gmra.mxu0 %v1544
    %v1629 = vpop.f32.mrf.mxu0
    %v1630 = vadd.f32 0.0, %v1629
    %v1631 = vpop.f32.mrf.mxu0
    %v1632 = vadd.f32 0.0, %v1631
    %1633 = vmatmul.bf16.gmra.mxu0 %v1545
    %v1634 = vpop.f32.mrf.mxu0
    %v1635 = vadd.f32 0.0, %v1634
    %v1636 = vpop.f32.mrf.mxu0
    %v1637 = vadd.f32 0.0, %v1636
    %1638 = vmatmul.bf16.gmra.mxu0 %v1546
    %v1639 = vpop.f32.mrf.mxu0
    %v1640 = vadd.f32 0.0, %v1639
    %v1641 = vpop.f32.mrf.mxu0
    %v1642 = vadd.f32 0.0, %v1641
    %1643 = vmatmul.bf16.gmra.mxu0 %v1547
    %v1644 = vpop.f32.mrf.mxu0
    %v1645 = vadd.f32 0.0, %v1644
    %v1646 = vpop.f32.mrf.mxu0
    %v1647 = vadd.f32 0.0, %v1646
    %1648 = vmatmul.bf16.gmra.mxu0 %v1548
    %v1649 = vpop.f32.mrf.mxu0
    %v1650 = vadd.f32 0.0, %v1649
    %v1651 = vpop.f32.mrf.mxu0
    %v1652 = vadd.f32 0.0, %v1651
    %1653 = vdwg.mxu0
    %v1654 = vadd.f32 %v1460, %v1615
    %v1655 = vadd.f32 %v1461, %v1617
    %v1656 = vadd.f32 %v1462, %v1620
    %v1657 = vadd.f32 %v1463, %v1622
    %v1658 = vadd.f32 %v1464, %v1625
    %v1659 = vadd.f32 %v1465, %v1627
    %v1660 = vadd.f32 %v1466, %v1630
    %v1661 = vadd.f32 %v1467, %v1632
    %v1662 = vadd.f32 %v1468, %v1635
    %v1663 = vadd.f32 %v1469, %v1637
    %v1664 = vadd.f32 %v1470, %v1640
    %v1665 = vadd.f32 %v1471, %v1642
    %v1666 = vadd.f32 %v1472, %v1645
    %v1667 = vadd.f32 %v1473, %v1647
    %v1668 = vadd.f32 %v1474, %v1650
    %v1669 = vadd.f32 %v1475, %v1652
    %v1670 = vld [vmem:[%s257] sm:$0xf]
    %v1671 = vld [vmem:[%s257 + $0x4] sm:$0x1]
    %v1672 = vld [vmem:[%s257 + $0x8] sm:$0xf]
    %v1673 = vld [vmem:[%s257 + $0xc] sm:$0x1]
    %v1674 = vld [vmem:[%s257 + $0x10] sm:$0xf]
    %v1675 = vld [vmem:[%s257 + $0x14] sm:$0x1]
    %v1676 = vld [vmem:[%s257 + $0x18] sm:$0xf]
    %v1677 = vld [vmem:[%s257 + $0x1c] sm:$0x1]
    %v1678 = vld [vmem:[%s257 + $0x20] sm:$0xf]
    %v1679 = vld [vmem:[%s257 + $0x24] sm:$0x1]
    %v1680 = vld [vmem:[%s257 + $0x28] sm:$0xf]
    %v1681 = vld [vmem:[%s257 + $0x2c] sm:$0x1]
    %v1682 = vld [vmem:[%s257 + $0x30] sm:$0xf]
    %v1683 = vld [vmem:[%s257 + $0x34] sm:$0x1]
    %v1684 = vld [vmem:[%s257 + $0x38] sm:$0xf]
    %v1685 = vld [vmem:[%s257 + $0x3c] sm:$0x1]
    %v1686 = vld [vmem:[%s257 + $0x50] sm:$0xf]
    %v1687 = vld [vmem:[%s257 + $0x54] sm:$0x1]
    %v1688 = vld [vmem:[%s257 + $0x58] sm:$0xf]
    %v1689 = vld [vmem:[%s257 + $0x5c] sm:$0x1]
    %v1690 = vld [vmem:[%s257 + $0x60] sm:$0xf]
    %v1691 = vld [vmem:[%s257 + $0x64] sm:$0x1]
    %v1692 = vld [vmem:[%s257 + $0x68] sm:$0xf]
    %v1693 = vld [vmem:[%s257 + $0x6c] sm:$0x1]
    %v1694 = vld [vmem:[%s257 + $0x70] sm:$0xf]
    %v1695 = vld [vmem:[%s257 + $0x74] sm:$0x1]
    %v1696 = vld [vmem:[%s257 + $0x78] sm:$0xf]
    %v1697 = vld [vmem:[%s257 + $0x7c] sm:$0x1]
    %v1698 = vld [vmem:[%s257 + $0x80] sm:$0xf]
    %v1699 = vld [vmem:[%s257 + $0x84] sm:$0x1]
    %v1700 = vld [vmem:[%s257 + $0x88] sm:$0xf]
    %v1701 = vld [vmem:[%s257 + $0x8c] sm:$0x1]
    %v1703 = vshrl.u32 %v1670, 16
    %v1705 = vrot.slane %v1703, 4
    %v1706 = vshll.u32 %v1670, 16
    %v1708 = vrot.slane %v1706, 5
    %v1709 = vor.u32 %v1705, %v1708
    %v1710 = vrot.slane %v1709, 4
    %v1712 = vshll.u32 %v1671, 16
    %v1714 = vrot.slane %v1712, 5
    %v1715 = vsel %vm683, %v1710, %v1714
    %v1717 = vshrl.u32 %v1672, 16
    %v1719 = vrot.slane %v1717, 4
    %v1720 = vshll.u32 %v1672, 16
    %v1722 = vrot.slane %v1720, 5
    %v1723 = vor.u32 %v1719, %v1722
    %v1724 = vrot.slane %v1723, 4
    %v1726 = vshll.u32 %v1673, 16
    %v1728 = vrot.slane %v1726, 5
    %v1729 = vsel %vm683, %v1724, %v1728
    %v1731 = vshrl.u32 %v1674, 16
    %v1733 = vrot.slane %v1731, 4
    %v1734 = vshll.u32 %v1674, 16
    %v1736 = vrot.slane %v1734, 5
    %v1737 = vor.u32 %v1733, %v1736
    %v1738 = vrot.slane %v1737, 4
    %v1740 = vshll.u32 %v1675, 16
    %v1742 = vrot.slane %v1740, 5
    %v1743 = vsel %vm683, %v1738, %v1742
    %v1745 = vshrl.u32 %v1676, 16
    %v1747 = vrot.slane %v1745, 4
    %v1748 = vshll.u32 %v1676, 16
    %v1750 = vrot.slane %v1748, 5
    %v1751 = vor.u32 %v1747, %v1750
    %v1752 = vrot.slane %v1751, 4
    %v1754 = vshll.u32 %v1677, 16
    %v1756 = vrot.slane %v1754, 5
    %v1757 = vsel %vm683, %v1752, %v1756
    %v1759 = vshrl.u32 %v1678, 16
    %v1761 = vrot.slane %v1759, 4
    %v1762 = vshll.u32 %v1678, 16
    %v1764 = vrot.slane %v1762, 5
    %v1765 = vor.u32 %v1761, %v1764
    %v1766 = vrot.slane %v1765, 4
    %v1768 = vshll.u32 %v1679, 16
    %v1770 = vrot.slane %v1768, 5
    %v1771 = vsel %vm683, %v1766, %v1770
    %v1773 = vshrl.u32 %v1680, 16
    %v1775 = vrot.slane %v1773, 4
    %v1776 = vshll.u32 %v1680, 16
    %v1778 = vrot.slane %v1776, 5
    %v1779 = vor.u32 %v1775, %v1778
    %v1780 = vrot.slane %v1779, 4
    %v1782 = vshll.u32 %v1681, 16
    %v1784 = vrot.slane %v1782, 5
    %v1785 = vsel %vm683, %v1780, %v1784
    %v1787 = vshrl.u32 %v1682, 16
    %v1789 = vrot.slane %v1787, 4
    %v1790 = vshll.u32 %v1682, 16
    %v1792 = vrot.slane %v1790, 5
    %v1793 = vor.u32 %v1789, %v1792
    %v1794 = vrot.slane %v1793, 4
    %v1796 = vshll.u32 %v1683, 16
    %v1798 = vrot.slane %v1796, 5
    %v1799 = vsel %vm683, %v1794, %v1798
    %v1801 = vshrl.u32 %v1684, 16
    %v1803 = vrot.slane %v1801, 4
    %v1804 = vshll.u32 %v1684, 16
    %v1806 = vrot.slane %v1804, 5
    %v1807 = vor.u32 %v1803, %v1806
    %v1808 = vrot.slane %v1807, 4
    %v1810 = vshll.u32 %v1685, 16
    %v1812 = vrot.slane %v1810, 5
    %v1813 = vsel %vm683, %v1808, %v1812
    %v1815 = vshrl.u32 %v1686, 16
    %v1817 = vrot.slane %v1815, 4
    %v1818 = vshll.u32 %v1686, 16
    %v1820 = vrot.slane %v1818, 5
    %v1821 = vor.u32 %v1817, %v1820
    %v1822 = vrot.slane %v1821, 4
    %v1824 = vshll.u32 %v1687, 16
    %v1826 = vrot.slane %v1824, 5
    %v1827 = vsel %vm683, %v1822, %v1826
    %v1829 = vshrl.u32 %v1688, 16
    %v1831 = vrot.slane %v1829, 4
    %v1832 = vshll.u32 %v1688, 16
    %v1834 = vrot.slane %v1832, 5
    %v1835 = vor.u32 %v1831, %v1834
    %v1836 = vrot.slane %v1835, 4
    %v1838 = vshll.u32 %v1689, 16
    %v1840 = vrot.slane %v1838, 5
    %v1841 = vsel %vm683, %v1836, %v1840
    %v1843 = vshrl.u32 %v1690, 16
    %v1845 = vrot.slane %v1843, 4
    %v1846 = vshll.u32 %v1690, 16
    %v1848 = vrot.slane %v1846, 5
    %v1849 = vor.u32 %v1845, %v1848
    %v1850 = vrot.slane %v1849, 4
    %v1852 = vshll.u32 %v1691, 16
    %v1854 = vrot.slane %v1852, 5
    %v1855 = vsel %vm683, %v1850, %v1854
    %v1857 = vshrl.u32 %v1692, 16
    %v1859 = vrot.slane %v1857, 4
    %v1860 = vshll.u32 %v1692, 16
    %v1862 = vrot.slane %v1860, 5
    %v1863 = vor.u32 %v1859, %v1862
    %v1864 = vrot.slane %v1863, 4
    %v1866 = vshll.u32 %v1693, 16
    %v1868 = vrot.slane %v1866, 5
    %v1869 = vsel %vm683, %v1864, %v1868
    %v1871 = vshrl.u32 %v1694, 16
    %v1873 = vrot.slane %v1871, 4
    %v1874 = vshll.u32 %v1694, 16
    %v1876 = vrot.slane %v1874, 5
    %v1877 = vor.u32 %v1873, %v1876
    %v1878 = vrot.slane %v1877, 4
    %v1880 = vshll.u32 %v1695, 16
    %v1882 = vrot.slane %v1880, 5
    %v1883 = vsel %vm683, %v1878, %v1882
    %v1885 = vshrl.u32 %v1696, 16
    %v1887 = vrot.slane %v1885, 4
    %v1888 = vshll.u32 %v1696, 16
    %v1890 = vrot.slane %v1888, 5
    %v1891 = vor.u32 %v1887, %v1890
    %v1892 = vrot.slane %v1891, 4
    %v1894 = vshll.u32 %v1697, 16
    %v1896 = vrot.slane %v1894, 5
    %v1897 = vsel %vm683, %v1892, %v1896
    %v1899 = vshrl.u32 %v1698, 16
    %v1901 = vrot.slane %v1899, 4
    %v1902 = vshll.u32 %v1698, 16
    %v1904 = vrot.slane %v1902, 5
    %v1905 = vor.u32 %v1901, %v1904
    %v1906 = vrot.slane %v1905, 4
    %v1908 = vshll.u32 %v1699, 16
    %v1910 = vrot.slane %v1908, 5
    %v1911 = vsel %vm683, %v1906, %v1910
    %v1913 = vshrl.u32 %v1700, 16
    %v1915 = vrot.slane %v1913, 4
    %v1916 = vshll.u32 %v1700, 16
    %v1918 = vrot.slane %v1916, 5
    %v1919 = vor.u32 %v1915, %v1918
    %v1920 = vrot.slane %v1919, 4
    %v1922 = vshll.u32 %v1701, 16
    %v1924 = vrot.slane %v1922, 5
    %v1925 = vsel %vm683, %v1920, %v1924
    %s1926 = scalar_lea.vmem [#allocation8], 256
    %v1927 = vld [vmem:[%s1926] sm:$0xf]
    %v1928 = vld [vmem:[%s1926 + $0x4] sm:$0xf]
    %v1929 = vld [vmem:[%s1926 + $0x8] sm:$0xf]
    %v1930 = vld [vmem:[%s1926 + $0xc] sm:$0xf]
    %v1931 = vld [vmem:[%s1926 + $0x10] sm:$0xf]
    %v1932 = vld [vmem:[%s1926 + $0x14] sm:$0xf]
    %v1933 = vld [vmem:[%s1926 + $0x18] sm:$0xf]
    %v1934 = vld [vmem:[%s1926 + $0x1c] sm:$0xf]
    %v1935 = vld [vmem:[%s1926 + $0x20] sm:$0xf]
    %v1936 = vld [vmem:[%s1926 + $0x24] sm:$0xf]
    %v1937 = vld [vmem:[%s1926 + $0x28] sm:$0xf]
    %v1938 = vld [vmem:[%s1926 + $0x2c] sm:$0xf]
    %v1939 = vld [vmem:[%s1926 + $0x30] sm:$0xf]
    %v1940 = vld [vmem:[%s1926 + $0x34] sm:$0xf]
    %v1941 = vld [vmem:[%s1926 + $0x38] sm:$0xf]
    %v1942 = vld [vmem:[%s1926 + $0x3c] sm:$0xf]
    %v1943 = vunpack.c.l.b16 %v1715
    %v1944 = vunpack.c.l.b16 %v1729
    %v1945 = vunpack.c.l.b16 %v1743
    %v1946 = vunpack.c.l.b16 %v1757
    %v1947 = vunpack.c.l.b16 %v1771
    %v1948 = vunpack.c.l.b16 %v1785
    %v1949 = vunpack.c.l.b16 %v1799
    %v1950 = vunpack.c.l.b16 %v1813
    %v1951 = vunpack.c.l.b16 %v1827
    %v1952 = vunpack.c.l.b16 %v1841
    %v1953 = vunpack.c.l.b16 %v1855
    %v1954 = vunpack.c.l.b16 %v1869
    %v1955 = vunpack.c.l.b16 %v1883
    %v1956 = vunpack.c.l.b16 %v1897
    %v1957 = vunpack.c.l.b16 %v1911
    %v1958 = vunpack.c.l.b16 %v1925
    %v1959 = vpack.c.b16 %v1944, %v1943
    %v1960 = vpack.c.b16 %v1946, %v1945
    %v1961 = vpack.c.b16 %v1948, %v1947
    %v1962 = vpack.c.b16 %v1950, %v1949
    %v1963 = vpack.c.b16 %v1952, %v1951
    %v1964 = vpack.c.b16 %v1954, %v1953
    %v1965 = vpack.c.b16 %v1956, %v1955
    %v1966 = vpack.c.b16 %v1958, %v1957
    %v1991 = vunpack.c.l.b16 %v1927
    %v1992 = vunpack.c.l.b16 %v1928
    %v1993 = vunpack.c.l.b16 %v1929
    %v1994 = vunpack.c.l.b16 %v1930
    %v1995 = vunpack.c.l.b16 %v1931
    %v1996 = vunpack.c.l.b16 %v1932
    %v1997 = vunpack.c.l.b16 %v1933
    %v1998 = vunpack.c.l.b16 %v1934
    %v1999 = vunpack.c.l.b16 %v1935
    %v2000 = vunpack.c.l.b16 %v1936
    %v2001 = vunpack.c.l.b16 %v1937
    %v2002 = vunpack.c.l.b16 %v1938
    %v2003 = vunpack.c.l.b16 %v1939
    %v2004 = vunpack.c.l.b16 %v1940
    %v2005 = vunpack.c.l.b16 %v1941
    %v2006 = vunpack.c.l.b16 %v1942
    %v2007 = vpack.c.b16 %v1992, %v1991
    %v2008 = vpack.c.b16 %v1994, %v1993
    %v2009 = vpack.c.b16 %v1996, %v1995
    %v2010 = vpack.c.b16 %v1998, %v1997
    %v2011 = vpack.c.b16 %v2000, %v1999
    %v2012 = vpack.c.b16 %v2002, %v2001
    %v2013 = vpack.c.b16 %v2004, %v2003
    %v2014 = vpack.c.b16 %v2006, %v2005
    %2023 = vmatpush.bf16.msra.mxu0 %v2014
    %2024 = vmatpush.bf16.msra.mxu0 %v2013
    %2025 = vmatpush.bf16.msra.mxu0 %v2012
    %2026 = vmatpush.bf16.msra.mxu0 %v2011
    %2027 = vmatpush.bf16.msra.mxu0 %v2010
    %2028 = vmatpush.bf16.msra.mxu0 %v2009
    %2029 = vmatpush.bf16.msra.mxu0 %v2008
    %2030 = vmatpush.bf16.msra.mxu0 %v2007
    %2031 = vmatmul.bf16.gmra.mxu0 %v1959
    %v2032 = vpop.f32.mrf.mxu0
    %v2033 = vadd.f32 0.0, %v2032
    %v2034 = vpop.f32.mrf.mxu0
    %v2035 = vadd.f32 0.0, %v2034
    %2036 = vmatmul.bf16.gmra.mxu0 %v1960
    %v2037 = vpop.f32.mrf.mxu0
    %v2038 = vadd.f32 0.0, %v2037
    %v2039 = vpop.f32.mrf.mxu0
    %v2040 = vadd.f32 0.0, %v2039
    %2041 = vmatmul.bf16.gmra.mxu0 %v1961
    %v2042 = vpop.f32.mrf.mxu0
    %v2043 = vadd.f32 0.0, %v2042
    %v2044 = vpop.f32.mrf.mxu0
    %v2045 = vadd.f32 0.0, %v2044
    %2046 = vmatmul.bf16.gmra.mxu0 %v1962
    %v2047 = vpop.f32.mrf.mxu0
    %v2048 = vadd.f32 0.0, %v2047
    %v2049 = vpop.f32.mrf.mxu0
    %v2050 = vadd.f32 0.0, %v2049
    %2051 = vmatmul.bf16.gmra.mxu0 %v1963
    %v2052 = vpop.f32.mrf.mxu0
    %v2053 = vadd.f32 0.0, %v2052
    %v2054 = vpop.f32.mrf.mxu0
    %v2055 = vadd.f32 0.0, %v2054
    %2056 = vmatmul.bf16.gmra.mxu0 %v1964
    %v2057 = vpop.f32.mrf.mxu0
    %v2058 = vadd.f32 0.0, %v2057
    %v2059 = vpop.f32.mrf.mxu0
    %v2060 = vadd.f32 0.0, %v2059
    %2061 = vmatmul.bf16.gmra.mxu0 %v1965
    %v2062 = vpop.f32.mrf.mxu0
    %v2063 = vadd.f32 0.0, %v2062
    %v2064 = vpop.f32.mrf.mxu0
    %v2065 = vadd.f32 0.0, %v2064
    %2066 = vmatmul.bf16.gmra.mxu0 %v1966
    %v2067 = vpop.f32.mrf.mxu0
    %v2068 = vadd.f32 0.0, %v2067
    %v2069 = vpop.f32.mrf.mxu0
    %v2070 = vadd.f32 0.0, %v2069
    %2071 = vdwg.mxu0
    %v2072 = vadd.f32 %v1654, %v2033
    %v2073 = vadd.f32 %v1655, %v2035
    %v2074 = vadd.f32 %v1656, %v2038
    %v2075 = vadd.f32 %v1657, %v2040
    %v2076 = vadd.f32 %v1658, %v2043
    %v2077 = vadd.f32 %v1659, %v2045
    %v2078 = vadd.f32 %v1660, %v2048
    %v2079 = vadd.f32 %v1661, %v2050
    %v2080 = vadd.f32 %v1662, %v2053
    %v2081 = vadd.f32 %v1663, %v2055
    %v2082 = vadd.f32 %v1664, %v2058
    %v2083 = vadd.f32 %v1665, %v2060
    %v2084 = vadd.f32 %v1666, %v2063
    %v2085 = vadd.f32 %v1667, %v2065
    %v2086 = vadd.f32 %v1668, %v2068
    %v2087 = vadd.f32 %v1669, %v2070
    %v2088 = vld [vmem:[%s257] sm:$0xe]
    %v2089 = vld [vmem:[%s257 + $0x8] sm:$0xe]
    %v2090 = vld [vmem:[%s257 + $0x10] sm:$0xe]
    %v2091 = vld [vmem:[%s257 + $0x18] sm:$0xe]
    %v2092 = vld [vmem:[%s257 + $0x20] sm:$0xe]
    %v2093 = vld [vmem:[%s257 + $0x28] sm:$0xe]
    %v2094 = vld [vmem:[%s257 + $0x30] sm:$0xe]
    %v2095 = vld [vmem:[%s257 + $0x38] sm:$0xe]
    %v2096 = vld [vmem:[%s257 + $0x50] sm:$0xe]
    %v2097 = vld [vmem:[%s257 + $0x58] sm:$0xe]
    %v2098 = vld [vmem:[%s257 + $0x60] sm:$0xe]
    %v2099 = vld [vmem:[%s257 + $0x68] sm:$0xe]
    %v2100 = vld [vmem:[%s257 + $0x70] sm:$0xe]
    %v2101 = vld [vmem:[%s257 + $0x78] sm:$0xe]
    %v2102 = vld [vmem:[%s257 + $0x80] sm:$0xe]
    %v2103 = vld [vmem:[%s257 + $0x88] sm:$0xe]
    %v2136 = vrot.slane %v2088, 5
    %v2137 = vrot.slane %v2136, 4
    %v2138 = vrot.slane %v1671, 5
    %v2139 = vsel %vm1249, %v2137, %v2138
    %v2140 = vrot.slane %v2089, 5
    %v2141 = vrot.slane %v2140, 4
    %v2142 = vrot.slane %v1673, 5
    %v2143 = vsel %vm1249, %v2141, %v2142
    %v2144 = vrot.slane %v2090, 5
    %v2145 = vrot.slane %v2144, 4
    %v2146 = vrot.slane %v1675, 5
    %v2147 = vsel %vm1249, %v2145, %v2146
    %v2148 = vrot.slane %v2091, 5
    %v2149 = vrot.slane %v2148, 4
    %v2150 = vrot.slane %v1677, 5
    %v2151 = vsel %vm1249, %v2149, %v2150
    %v2152 = vrot.slane %v2092, 5
    %v2153 = vrot.slane %v2152, 4
    %v2154 = vrot.slane %v1679, 5
    %v2155 = vsel %vm1249, %v2153, %v2154
    %v2156 = vrot.slane %v2093, 5
    %v2157 = vrot.slane %v2156, 4
    %v2158 = vrot.slane %v1681, 5
    %v2159 = vsel %vm1249, %v2157, %v2158
    %v2160 = vrot.slane %v2094, 5
    %v2161 = vrot.slane %v2160, 4
    %v2162 = vrot.slane %v1683, 5
    %v2163 = vsel %vm1249, %v2161, %v2162
    %v2164 = vrot.slane %v2095, 5
    %v2165 = vrot.slane %v2164, 4
    %v2166 = vrot.slane %v1685, 5
    %v2167 = vsel %vm1249, %v2165, %v2166
    %v2168 = vrot.slane %v2096, 5
    %v2169 = vrot.slane %v2168, 4
    %v2170 = vrot.slane %v1687, 5
    %v2171 = vsel %vm1249, %v2169, %v2170
    %v2172 = vrot.slane %v2097, 5
    %v2173 = vrot.slane %v2172, 4
    %v2174 = vrot.slane %v1689, 5
    %v2175 = vsel %vm1249, %v2173, %v2174
    %v2176 = vrot.slane %v2098, 5
    %v2177 = vrot.slane %v2176, 4
    %v2178 = vrot.slane %v1691, 5
    %v2179 = vsel %vm1249, %v2177, %v2178
    %v2180 = vrot.slane %v2099, 5
    %v2181 = vrot.slane %v2180, 4
    %v2182 = vrot.slane %v1693, 5
    %v2183 = vsel %vm1249, %v2181, %v2182
    %v2184 = vrot.slane %v2100, 5
    %v2185 = vrot.slane %v2184, 4
    %v2186 = vrot.slane %v1695, 5
    %v2187 = vsel %vm1249, %v2185, %v2186
    %v2188 = vrot.slane %v2101, 5
    %v2189 = vrot.slane %v2188, 4
    %v2190 = vrot.slane %v1697, 5
    %v2191 = vsel %vm1249, %v2189, %v2190
    %v2192 = vrot.slane %v2102, 5
    %v2193 = vrot.slane %v2192, 4
    %v2194 = vrot.slane %v1699, 5
    %v2195 = vsel %vm1249, %v2193, %v2194
    %v2196 = vrot.slane %v2103, 5
    %v2197 = vrot.slane %v2196, 4
    %v2198 = vrot.slane %v1701, 5
    %v2199 = vsel %vm1249, %v2197, %v2198
    %s2200 = scalar_lea.vmem [#allocation8], 320
    %v2201 = vld [vmem:[%s2200] sm:$0xf]
    %v2202 = vld [vmem:[%s2200 + $0x4] sm:$0xf]
    %v2203 = vld [vmem:[%s2200 + $0x8] sm:$0xf]
    %v2204 = vld [vmem:[%s2200 + $0xc] sm:$0xf]
    %v2205 = vld [vmem:[%s2200 + $0x10] sm:$0xf]
    %v2206 = vld [vmem:[%s2200 + $0x14] sm:$0xf]
    %v2207 = vld [vmem:[%s2200 + $0x18] sm:$0xf]
    %v2208 = vld [vmem:[%s2200 + $0x1c] sm:$0xf]
    %v2209 = vld [vmem:[%s2200 + $0x20] sm:$0xf]
    %v2210 = vld [vmem:[%s2200 + $0x24] sm:$0xf]
    %v2211 = vld [vmem:[%s2200 + $0x28] sm:$0xf]
    %v2212 = vld [vmem:[%s2200 + $0x2c] sm:$0xf]
    %v2213 = vld [vmem:[%s2200 + $0x30] sm:$0xf]
    %v2214 = vld [vmem:[%s2200 + $0x34] sm:$0xf]
    %v2215 = vld [vmem:[%s2200 + $0x38] sm:$0xf]
    %v2216 = vld [vmem:[%s2200 + $0x3c] sm:$0xf]
    %v2217 = vunpack.c.l.b16 %v2139
    %v2218 = vunpack.c.l.b16 %v2143
    %v2219 = vunpack.c.l.b16 %v2147
    %v2220 = vunpack.c.l.b16 %v2151
    %v2221 = vunpack.c.l.b16 %v2155
    %v2222 = vunpack.c.l.b16 %v2159
    %v2223 = vunpack.c.l.b16 %v2163
    %v2224 = vunpack.c.l.b16 %v2167
    %v2225 = vunpack.c.l.b16 %v2171
    %v2226 = vunpack.c.l.b16 %v2175
    %v2227 = vunpack.c.l.b16 %v2179
    %v2228 = vunpack.c.l.b16 %v2183
    %v2229 = vunpack.c.l.b16 %v2187
    %v2230 = vunpack.c.l.b16 %v2191
    %v2231 = vunpack.c.l.b16 %v2195
    %v2232 = vunpack.c.l.b16 %v2199
    %v2233 = vpack.c.b16 %v2218, %v2217
    %v2234 = vpack.c.b16 %v2220, %v2219
    %v2235 = vpack.c.b16 %v2222, %v2221
    %v2236 = vpack.c.b16 %v2224, %v2223
    %v2237 = vpack.c.b16 %v2226, %v2225
    %v2238 = vpack.c.b16 %v2228, %v2227
    %v2239 = vpack.c.b16 %v2230, %v2229
    %v2240 = vpack.c.b16 %v2232, %v2231
    %v2265 = vunpack.c.l.b16 %v2201
    %v2266 = vunpack.c.l.b16 %v2202
    %v2267 = vunpack.c.l.b16 %v2203
    %v2268 = vunpack.c.l.b16 %v2204
    %v2269 = vunpack.c.l.b16 %v2205
    %v2270 = vunpack.c.l.b16 %v2206
    %v2271 = vunpack.c.l.b16 %v2207
    %v2272 = vunpack.c.l.b16 %v2208
    %v2273 = vunpack.c.l.b16 %v2209
    %v2274 = vunpack.c.l.b16 %v2210
    %v2275 = vunpack.c.l.b16 %v2211
    %v2276 = vunpack.c.l.b16 %v2212
    %v2277 = vunpack.c.l.b16 %v2213
    %v2278 = vunpack.c.l.b16 %v2214
    %v2279 = vunpack.c.l.b16 %v2215
    %v2280 = vunpack.c.l.b16 %v2216
    %v2281 = vpack.c.b16 %v2266, %v2265
    %v2282 = vpack.c.b16 %v2268, %v2267
    %v2283 = vpack.c.b16 %v2270, %v2269
    %v2284 = vpack.c.b16 %v2272, %v2271
    %v2285 = vpack.c.b16 %v2274, %v2273
    %v2286 = vpack.c.b16 %v2276, %v2275
    %v2287 = vpack.c.b16 %v2278, %v2277
    %v2288 = vpack.c.b16 %v2280, %v2279
    %2297 = vmatpush.bf16.msra.mxu0 %v2288
    %2298 = vmatpush.bf16.msra.mxu0 %v2287
    %2299 = vmatpush.bf16.msra.mxu0 %v2286
    %2300 = vmatpush.bf16.msra.mxu0 %v2285
    %2301 = vmatpush.bf16.msra.mxu0 %v2284
    %2302 = vmatpush.bf16.msra.mxu0 %v2283
    %2303 = vmatpush.bf16.msra.mxu0 %v2282
    %2304 = vmatpush.bf16.msra.mxu0 %v2281
    %2305 = vmatmul.bf16.gmra.mxu0 %v2233
    %v2306 = vpop.f32.mrf.mxu0
    %v2307 = vadd.f32 0.0, %v2306
    %v2308 = vpop.f32.mrf.mxu0
    %v2309 = vadd.f32 0.0, %v2308
    %2310 = vmatmul.bf16.gmra.mxu0 %v2234
    %v2311 = vpop.f32.mrf.mxu0
    %v2312 = vadd.f32 0.0, %v2311
    %v2313 = vpop.f32.mrf.mxu0
    %v2314 = vadd.f32 0.0, %v2313
    %2315 = vmatmul.bf16.gmra.mxu0 %v2235
    %v2316 = vpop.f32.mrf.mxu0
    %v2317 = vadd.f32 0.0, %v2316
    %v2318 = vpop.f32.mrf.mxu0
    %v2319 = vadd.f32 0.0, %v2318
    %2320 = vmatmul.bf16.gmra.mxu0 %v2236
    %v2321 = vpop.f32.mrf.mxu0
    %v2322 = vadd.f32 0.0, %v2321
    %v2323 = vpop.f32.mrf.mxu0
    %v2324 = vadd.f32 0.0, %v2323
    %2325 = vmatmul.bf16.gmra.mxu0 %v2237
    %v2326 = vpop.f32.mrf.mxu0
    %v2327 = vadd.f32 0.0, %v2326
    %v2328 = vpop.f32.mrf.mxu0
    %v2329 = vadd.f32 0.0, %v2328
    %2330 = vmatmul.bf16.gmra.mxu0 %v2238
    %v2331 = vpop.f32.mrf.mxu0
    %v2332 = vadd.f32 0.0, %v2331
    %v2333 = vpop.f32.mrf.mxu0
    %v2334 = vadd.f32 0.0, %v2333
    %2335 = vmatmul.bf16.gmra.mxu0 %v2239
    %v2336 = vpop.f32.mrf.mxu0
    %v2337 = vadd.f32 0.0, %v2336
    %v2338 = vpop.f32.mrf.mxu0
    %v2339 = vadd.f32 0.0, %v2338
    %2340 = vmatmul.bf16.gmra.mxu0 %v2240
    %v2341 = vpop.f32.mrf.mxu0
    %v2342 = vadd.f32 0.0, %v2341
    %v2343 = vpop.f32.mrf.mxu0
    %v2344 = vadd.f32 0.0, %v2343
    %2345 = vdwg.mxu0
    %v2346 = vadd.f32 %v2072, %v2307
    %v2347 = vadd.f32 %v2073, %v2309
    %v2348 = vadd.f32 %v2074, %v2312
    %v2349 = vadd.f32 %v2075, %v2314
    %v2350 = vadd.f32 %v2076, %v2317
    %v2351 = vadd.f32 %v2077, %v2319
    %v2352 = vadd.f32 %v2078, %v2322
    %v2353 = vadd.f32 %v2079, %v2324
    %v2354 = vadd.f32 %v2080, %v2327
    %v2355 = vadd.f32 %v2081, %v2329
    %v2356 = vadd.f32 %v2082, %v2332
    %v2357 = vadd.f32 %v2083, %v2334
    %v2358 = vadd.f32 %v2084, %v2337
    %v2359 = vadd.f32 %v2085, %v2339
    %v2360 = vadd.f32 %v2086, %v2342
    %v2361 = vadd.f32 %v2087, %v2344
    %s2362 = scalar_lea.vmem [#allocation2], 16
    %v2363 = vld [vmem:[%s2362] sm:$0xf]
    %v2364 = vld [vmem:[%s2362 + $0x8] sm:$0xf]
    %v2365 = vld [vmem:[%s2362 + $0x10] sm:$0xf]
    %v2366 = vld [vmem:[%s2362 + $0x18] sm:$0xf]
    %v2367 = vld [vmem:[%s2362 + $0x20] sm:$0xf]
    %v2368 = vld [vmem:[%s2362 + $0x28] sm:$0xf]
    %v2369 = vld [vmem:[%s2362 + $0x30] sm:$0xf]
    %v2370 = vld [vmem:[%s2362 + $0x38] sm:$0xf]
    %v2371 = vld [vmem:[%s2362 + $0x50] sm:$0xf]
    %v2372 = vld [vmem:[%s2362 + $0x58] sm:$0xf]
    %v2373 = vld [vmem:[%s2362 + $0x60] sm:$0xf]
    %v2374 = vld [vmem:[%s2362 + $0x68] sm:$0xf]
    %v2375 = vld [vmem:[%s2362 + $0x70] sm:$0xf]
    %v2376 = vld [vmem:[%s2362 + $0x78] sm:$0xf]
    %v2377 = vld [vmem:[%s2362 + $0x80] sm:$0xf]
    %v2378 = vld [vmem:[%s2362 + $0x88] sm:$0xf]
    %s2379 = scalar_lea.vmem [#allocation8], 384
    %v2380 = vld [vmem:[%s2379] sm:$0xf]
    %v2381 = vld [vmem:[%s2379 + $0x4] sm:$0xf]
    %v2382 = vld [vmem:[%s2379 + $0x8] sm:$0xf]
    %v2383 = vld [vmem:[%s2379 + $0xc] sm:$0xf]
    %v2384 = vld [vmem:[%s2379 + $0x10] sm:$0xf]
    %v2385 = vld [vmem:[%s2379 + $0x14] sm:$0xf]
    %v2386 = vld [vmem:[%s2379 + $0x18] sm:$0xf]
    %v2387 = vld [vmem:[%s2379 + $0x1c] sm:$0xf]
    %v2388 = vld [vmem:[%s2379 + $0x20] sm:$0xf]
    %v2389 = vld [vmem:[%s2379 + $0x24] sm:$0xf]
    %v2390 = vld [vmem:[%s2379 + $0x28] sm:$0xf]
    %v2391 = vld [vmem:[%s2379 + $0x2c] sm:$0xf]
    %v2392 = vld [vmem:[%s2379 + $0x30] sm:$0xf]
    %v2393 = vld [vmem:[%s2379 + $0x34] sm:$0xf]
    %v2394 = vld [vmem:[%s2379 + $0x38] sm:$0xf]
    %v2395 = vld [vmem:[%s2379 + $0x3c] sm:$0xf]
    %v2412 = vunpack.c.l.b16 %v2363
    %v2413 = vunpack.c.l.b16 %v2364
    %v2414 = vunpack.c.l.b16 %v2365
    %v2415 = vunpack.c.l.b16 %v2366
    %v2416 = vunpack.c.l.b16 %v2367
    %v2417 = vunpack.c.l.b16 %v2368
    %v2418 = vunpack.c.l.b16 %v2369
    %v2419 = vunpack.c.l.b16 %v2370
    %v2420 = vunpack.c.l.b16 %v2371
    %v2421 = vunpack.c.l.b16 %v2372
    %v2422 = vunpack.c.l.b16 %v2373
    %v2423 = vunpack.c.l.b16 %v2374
    %v2424 = vunpack.c.l.b16 %v2375
    %v2425 = vunpack.c.l.b16 %v2376
    %v2426 = vunpack.c.l.b16 %v2377
    %v2427 = vunpack.c.l.b16 %v2378
    %v2428 = vpack.c.b16 %v2413, %v2412
    %v2429 = vpack.c.b16 %v2415, %v2414
    %v2430 = vpack.c.b16 %v2417, %v2416
    %v2431 = vpack.c.b16 %v2419, %v2418
    %v2432 = vpack.c.b16 %v2421, %v2420
    %v2433 = vpack.c.b16 %v2423, %v2422
    %v2434 = vpack.c.b16 %v2425, %v2424
    %v2435 = vpack.c.b16 %v2427, %v2426
    %v2460 = vunpack.c.l.b16 %v2380
    %v2461 = vunpack.c.l.b16 %v2381
    %v2462 = vunpack.c.l.b16 %v2382
    %v2463 = vunpack.c.l.b16 %v2383
    %v2464 = vunpack.c.l.b16 %v2384
    %v2465 = vunpack.c.l.b16 %v2385
    %v2466 = vunpack.c.l.b16 %v2386
    %v2467 = vunpack.c.l.b16 %v2387
    %v2468 = vunpack.c.l.b16 %v2388
    %v2469 = vunpack.c.l.b16 %v2389
    %v2470 = vunpack.c.l.b16 %v2390
    %v2471 = vunpack.c.l.b16 %v2391
    %v2472 = vunpack.c.l.b16 %v2392
    %v2473 = vunpack.c.l.b16 %v2393
    %v2474 = vunpack.c.l.b16 %v2394
    %v2475 = vunpack.c.l.b16 %v2395
    %v2476 = vpack.c.b16 %v2461, %v2460
    %v2477 = vpack.c.b16 %v2463, %v2462
    %v2478 = vpack.c.b16 %v2465, %v2464
    %v2479 = vpack.c.b16 %v2467, %v2466
    %v2480 = vpack.c.b16 %v2469, %v2468
    %v2481 = vpack.c.b16 %v2471, %v2470
    %v2482 = vpack.c.b16 %v2473, %v2472
    %v2483 = vpack.c.b16 %v2475, %v2474
    %2492 = vmatpush.bf16.msra.mxu0 %v2483
    %2493 = vmatpush.bf16.msra.mxu0 %v2482
    %2494 = vmatpush.bf16.msra.mxu0 %v2481
    %2495 = vmatpush.bf16.msra.mxu0 %v2480
    %2496 = vmatpush.bf16.msra.mxu0 %v2479
    %2497 = vmatpush.bf16.msra.mxu0 %v2478
    %2498 = vmatpush.bf16.msra.mxu0 %v2477
    %2499 = vmatpush.bf16.msra.mxu0 %v2476
    %2500 = vmatmul.bf16.gmra.mxu0 %v2428
    %v2501 = vpop.f32.mrf.mxu0
    %v2502 = vadd.f32 0.0, %v2501
    %v2503 = vpop.f32.mrf.mxu0
    %v2504 = vadd.f32 0.0, %v2503
    %2505 = vmatmul.bf16.gmra.mxu0 %v2429
    %v2506 = vpop.f32.mrf.mxu0
    %v2507 = vadd.f32 0.0, %v2506
    %v2508 = vpop.f32.mrf.mxu0
    %v2509 = vadd.f32 0.0, %v2508
    %2510 = vmatmul.bf16.gmra.mxu0 %v2430
    %v2511 = vpop.f32.mrf.mxu0
    %v2512 = vadd.f32 0.0, %v2511
    %v2513 = vpop.f32.mrf.mxu0
    %v2514 = vadd.f32 0.0, %v2513
    %2515 = vmatmul.bf16.gmra.mxu0 %v2431
    %v2516 = vpop.f32.mrf.mxu0
    %v2517 = vadd.f32 0.0, %v2516
    %v2518 = vpop.f32.mrf.mxu0
    %v2519 = vadd.f32 0.0, %v2518
    %2520 = vmatmul.bf16.gmra.mxu0 %v2432
    %v2521 = vpop.f32.mrf.mxu0
    %v2522 = vadd.f32 0.0, %v2521
    %v2523 = vpop.f32.mrf.mxu0
    %v2524 = vadd.f32 0.0, %v2523
    %2525 = vmatmul.bf16.gmra.mxu0 %v2433
    %v2526 = vpop.f32.mrf.mxu0
    %v2527 = vadd.f32 0.0, %v2526
    %v2528 = vpop.f32.mrf.mxu0
    %v2529 = vadd.f32 0.0, %v2528
    %2530 = vmatmul.bf16.gmra.mxu0 %v2434
    %v2531 = vpop.f32.mrf.mxu0
    %v2532 = vadd.f32 0.0, %v2531
    %v2533 = vpop.f32.mrf.mxu0
    %v2534 = vadd.f32 0.0, %v2533
    %2535 = vmatmul.bf16.gmra.mxu0 %v2435
    %v2536 = vpop.f32.mrf.mxu0
    %v2537 = vadd.f32 0.0, %v2536
    %v2538 = vpop.f32.mrf.mxu0
    %v2539 = vadd.f32 0.0, %v2538
    %2540 = vdwg.mxu0
    %v2541 = vadd.f32 %v2346, %v2502
    %v2542 = vadd.f32 %v2347, %v2504
    %v2543 = vadd.f32 %v2348, %v2507
    %v2544 = vadd.f32 %v2349, %v2509
    %v2545 = vadd.f32 %v2350, %v2512
    %v2546 = vadd.f32 %v2351, %v2514
    %v2547 = vadd.f32 %v2352, %v2517
    %v2548 = vadd.f32 %v2353, %v2519
    %v2549 = vadd.f32 %v2354, %v2522
    %v2550 = vadd.f32 %v2355, %v2524
    %v2551 = vadd.f32 %v2356, %v2527
    %v2552 = vadd.f32 %v2357, %v2529
    %v2553 = vadd.f32 %v2358, %v2532
    %v2554 = vadd.f32 %v2359, %v2534
    %v2555 = vadd.f32 %v2360, %v2537
    %v2556 = vadd.f32 %v2361, %v2539
    %v2557 = vld [vmem:[%s2362] sm:$0xf]
    %v2558 = vld [vmem:[%s2362 + $0x4] sm:$0x1]
    %v2559 = vld [vmem:[%s2362 + $0x8] sm:$0xf]
    %v2560 = vld [vmem:[%s2362 + $0xc] sm:$0x1]
    %v2561 = vld [vmem:[%s2362 + $0x10] sm:$0xf]
    %v2562 = vld [vmem:[%s2362 + $0x14] sm:$0x1]
    %v2563 = vld [vmem:[%s2362 + $0x18] sm:$0xf]
    %v2564 = vld [vmem:[%s2362 + $0x1c] sm:$0x1]
    %v2565 = vld [vmem:[%s2362 + $0x20] sm:$0xf]
    %v2566 = vld [vmem:[%s2362 + $0x24] sm:$0x1]
    %v2567 = vld [vmem:[%s2362 + $0x28] sm:$0xf]
    %v2568 = vld [vmem:[%s2362 + $0x2c] sm:$0x1]
    %v2569 = vld [vmem:[%s2362 + $0x30] sm:$0xf]
    %v2570 = vld [vmem:[%s2362 + $0x34] sm:$0x1]
    %v2571 = vld [vmem:[%s2362 + $0x38] sm:$0xf]
    %v2572 = vld [vmem:[%s2362 + $0x3c] sm:$0x1]
    %v2573 = vld [vmem:[%s2362 + $0x50] sm:$0xf]
    %v2574 = vld [vmem:[%s2362 + $0x54] sm:$0x1]
    %v2575 = vld [vmem:[%s2362 + $0x58] sm:$0xf]
    %v2576 = vld [vmem:[%s2362 + $0x5c] sm:$0x1]
    %v2577 = vld [vmem:[%s2362 + $0x60] sm:$0xf]
    %v2578 = vld [vmem:[%s2362 + $0x64] sm:$0x1]
    %v2579 = vld [vmem:[%s2362 + $0x68] sm:$0xf]
    %v2580 = vld [vmem:[%s2362 + $0x6c] sm:$0x1]
    %v2581 = vld [vmem:[%s2362 + $0x70] sm:$0xf]
    %v2582 = vld [vmem:[%s2362 + $0x74] sm:$0x1]
    %v2583 = vld [vmem:[%s2362 + $0x78] sm:$0xf]
    %v2584 = vld [vmem:[%s2362 + $0x7c] sm:$0x1]
    %v2585 = vld [vmem:[%s2362 + $0x80] sm:$0xf]
    %v2586 = vld [vmem:[%s2362 + $0x84] sm:$0x1]
    %v2587 = vld [vmem:[%s2362 + $0x88] sm:$0xf]
    %v2588 = vld [vmem:[%s2362 + $0x8c] sm:$0x1]
    %v2590 = vshrl.u32 %v2557, 16
    %v2592 = vrot.slane %v2590, 4
    %v2593 = vshll.u32 %v2557, 16
    %v2595 = vrot.slane %v2593, 5
    %v2596 = vor.u32 %v2592, %v2595
    %v2597 = vrot.slane %v2596, 4
    %v2599 = vshll.u32 %v2558, 16
    %v2601 = vrot.slane %v2599, 5
    %v2602 = vsel %vm683, %v2597, %v2601
    %v2604 = vshrl.u32 %v2559, 16
    %v2606 = vrot.slane %v2604, 4
    %v2607 = vshll.u32 %v2559, 16
    %v2609 = vrot.slane %v2607, 5
    %v2610 = vor.u32 %v2606, %v2609
    %v2611 = vrot.slane %v2610, 4
    %v2613 = vshll.u32 %v2560, 16
    %v2615 = vrot.slane %v2613, 5
    %v2616 = vsel %vm683, %v2611, %v2615
    %v2618 = vshrl.u32 %v2561, 16
    %v2620 = vrot.slane %v2618, 4
    %v2621 = vshll.u32 %v2561, 16
    %v2623 = vrot.slane %v2621, 5
    %v2624 = vor.u32 %v2620, %v2623
    %v2625 = vrot.slane %v2624, 4
    %v2627 = vshll.u32 %v2562, 16
    %v2629 = vrot.slane %v2627, 5
    %v2630 = vsel %vm683, %v2625, %v2629
    %v2632 = vshrl.u32 %v2563, 16
    %v2634 = vrot.slane %v2632, 4
    %v2635 = vshll.u32 %v2563, 16
    %v2637 = vrot.slane %v2635, 5
    %v2638 = vor.u32 %v2634, %v2637
    %v2639 = vrot.slane %v2638, 4
    %v2641 = vshll.u32 %v2564, 16
    %v2643 = vrot.slane %v2641, 5
    %v2644 = vsel %vm683, %v2639, %v2643
    %v2646 = vshrl.u32 %v2565, 16
    %v2648 = vrot.slane %v2646, 4
    %v2649 = vshll.u32 %v2565, 16
    %v2651 = vrot.slane %v2649, 5
    %v2652 = vor.u32 %v2648, %v2651
    %v2653 = vrot.slane %v2652, 4
    %v2655 = vshll.u32 %v2566, 16
    %v2657 = vrot.slane %v2655, 5
    %v2658 = vsel %vm683, %v2653, %v2657
    %v2660 = vshrl.u32 %v2567, 16
    %v2662 = vrot.slane %v2660, 4
    %v2663 = vshll.u32 %v2567, 16
    %v2665 = vrot.slane %v2663, 5
    %v2666 = vor.u32 %v2662, %v2665
    %v2667 = vrot.slane %v2666, 4
    %v2669 = vshll.u32 %v2568, 16
    %v2671 = vrot.slane %v2669, 5
    %v2672 = vsel %vm683, %v2667, %v2671
    %v2674 = vshrl.u32 %v2569, 16
    %v2676 = vrot.slane %v2674, 4
    %v2677 = vshll.u32 %v2569, 16
    %v2679 = vrot.slane %v2677, 5
    %v2680 = vor.u32 %v2676, %v2679
    %v2681 = vrot.slane %v2680, 4
    %v2683 = vshll.u32 %v2570, 16
    %v2685 = vrot.slane %v2683, 5
    %v2686 = vsel %vm683, %v2681, %v2685
    %v2688 = vshrl.u32 %v2571, 16
    %v2690 = vrot.slane %v2688, 4
    %v2691 = vshll.u32 %v2571, 16
    %v2693 = vrot.slane %v2691, 5
    %v2694 = vor.u32 %v2690, %v2693
    %v2695 = vrot.slane %v2694, 4
    %v2697 = vshll.u32 %v2572, 16
    %v2699 = vrot.slane %v2697, 5
    %v2700 = vsel %vm683, %v2695, %v2699
    %v2702 = vshrl.u32 %v2573, 16
    %v2704 = vrot.slane %v2702, 4
    %v2705 = vshll.u32 %v2573, 16
    %v2707 = vrot.slane %v2705, 5
    %v2708 = vor.u32 %v2704, %v2707
    %v2709 = vrot.slane %v2708, 4
    %v2711 = vshll.u32 %v2574, 16
    %v2713 = vrot.slane %v2711, 5
    %v2714 = vsel %vm683, %v2709, %v2713
    %v2716 = vshrl.u32 %v2575, 16
    %v2718 = vrot.slane %v2716, 4
    %v2719 = vshll.u32 %v2575, 16
    %v2721 = vrot.slane %v2719, 5
    %v2722 = vor.u32 %v2718, %v2721
    %v2723 = vrot.slane %v2722, 4
    %v2725 = vshll.u32 %v2576, 16
    %v2727 = vrot.slane %v2725, 5
    %v2728 = vsel %vm683, %v2723, %v2727
    %v2730 = vshrl.u32 %v2577, 16
    %v2732 = vrot.slane %v2730, 4
    %v2733 = vshll.u32 %v2577, 16
    %v2735 = vrot.slane %v2733, 5
    %v2736 = vor.u32 %v2732, %v2735
    %v2737 = vrot.slane %v2736, 4
    %v2739 = vshll.u32 %v2578, 16
    %v2741 = vrot.slane %v2739, 5
    %v2742 = vsel %vm683, %v2737, %v2741
    %v2744 = vshrl.u32 %v2579, 16
    %v2746 = vrot.slane %v2744, 4
    %v2747 = vshll.u32 %v2579, 16
    %v2749 = vrot.slane %v2747, 5
    %v2750 = vor.u32 %v2746, %v2749
    %v2751 = vrot.slane %v2750, 4
    %v2753 = vshll.u32 %v2580, 16
    %v2755 = vrot.slane %v2753, 5
    %v2756 = vsel %vm683, %v2751, %v2755
    %v2758 = vshrl.u32 %v2581, 16
    %v2760 = vrot.slane %v2758, 4
    %v2761 = vshll.u32 %v2581, 16
    %v2763 = vrot.slane %v2761, 5
    %v2764 = vor.u32 %v2760, %v2763
    %v2765 = vrot.slane %v2764, 4
    %v2767 = vshll.u32 %v2582, 16
    %v2769 = vrot.slane %v2767, 5
    %v2770 = vsel %vm683, %v2765, %v2769
    %v2772 = vshrl.u32 %v2583, 16
    %v2774 = vrot.slane %v2772, 4
    %v2775 = vshll.u32 %v2583, 16
    %v2777 = vrot.slane %v2775, 5
    %v2778 = vor.u32 %v2774, %v2777
    %v2779 = vrot.slane %v2778, 4
    %v2781 = vshll.u32 %v2584, 16
    %v2783 = vrot.slane %v2781, 5
    %v2784 = vsel %vm683, %v2779, %v2783
    %v2786 = vshrl.u32 %v2585, 16
    %v2788 = vrot.slane %v2786, 4
    %v2789 = vshll.u32 %v2585, 16
    %v2791 = vrot.slane %v2789, 5
    %v2792 = vor.u32 %v2788, %v2791
    %v2793 = vrot.slane %v2792, 4
    %v2795 = vshll.u32 %v2586, 16
    %v2797 = vrot.slane %v2795, 5
    %v2798 = vsel %vm683, %v2793, %v2797
    %v2800 = vshrl.u32 %v2587, 16
    %v2802 = vrot.slane %v2800, 4
    %v2803 = vshll.u32 %v2587, 16
    %v2805 = vrot.slane %v2803, 5
    %v2806 = vor.u32 %v2802, %v2805
    %v2807 = vrot.slane %v2806, 4
    %v2809 = vshll.u32 %v2588, 16
    %v2811 = vrot.slane %v2809, 5
    %v2812 = vsel %vm683, %v2807, %v2811
    %s2813 = scalar_lea.vmem [#allocation8], 448
    %v2814 = vld [vmem:[%s2813] sm:$0xf]
    %v2815 = vld [vmem:[%s2813 + $0x4] sm:$0xf]
    %v2816 = vld [vmem:[%s2813 + $0x8] sm:$0xf]
    %v2817 = vld [vmem:[%s2813 + $0xc] sm:$0xf]
    %v2818 = vld [vmem:[%s2813 + $0x10] sm:$0xf]
    %v2819 = vld [vmem:[%s2813 + $0x14] sm:$0xf]
    %v2820 = vld [vmem:[%s2813 + $0x18] sm:$0xf]
    %v2821 = vld [vmem:[%s2813 + $0x1c] sm:$0xf]
    %v2822 = vld [vmem:[%s2813 + $0x20] sm:$0xf]
    %v2823 = vld [vmem:[%s2813 + $0x24] sm:$0xf]
    %v2824 = vld [vmem:[%s2813 + $0x28] sm:$0xf]
    %v2825 = vld [vmem:[%s2813 + $0x2c] sm:$0xf]
    %v2826 = vld [vmem:[%s2813 + $0x30] sm:$0xf]
    %v2827 = vld [vmem:[%s2813 + $0x34] sm:$0xf]
    %v2828 = vld [vmem:[%s2813 + $0x38] sm:$0xf]
    %v2829 = vld [vmem:[%s2813 + $0x3c] sm:$0xf]
    %v2830 = vunpack.c.l.b16 %v2602
    %v2831 = vunpack.c.l.b16 %v2616
    %v2832 = vunpack.c.l.b16 %v2630
    %v2833 = vunpack.c.l.b16 %v2644
    %v2834 = vunpack.c.l.b16 %v2658
    %v2835 = vunpack.c.l.b16 %v2672
    %v2836 = vunpack.c.l.b16 %v2686
    %v2837 = vunpack.c.l.b16 %v2700
    %v2838 = vunpack.c.l.b16 %v2714
    %v2839 = vunpack.c.l.b16 %v2728
    %v2840 = vunpack.c.l.b16 %v2742
    %v2841 = vunpack.c.l.b16 %v2756
    %v2842 = vunpack.c.l.b16 %v2770
    %v2843 = vunpack.c.l.b16 %v2784
    %v2844 = vunpack.c.l.b16 %v2798
    %v2845 = vunpack.c.l.b16 %v2812
    %v2846 = vpack.c.b16 %v2831, %v2830
    %v2847 = vpack.c.b16 %v2833, %v2832
    %v2848 = vpack.c.b16 %v2835, %v2834
    %v2849 = vpack.c.b16 %v2837, %v2836
    %v2850 = vpack.c.b16 %v2839, %v2838
    %v2851 = vpack.c.b16 %v2841, %v2840
    %v2852 = vpack.c.b16 %v2843, %v2842
    %v2853 = vpack.c.b16 %v2845, %v2844
    %v2878 = vunpack.c.l.b16 %v2814
    %v2879 = vunpack.c.l.b16 %v2815
    %v2880 = vunpack.c.l.b16 %v2816
    %v2881 = vunpack.c.l.b16 %v2817
    %v2882 = vunpack.c.l.b16 %v2818
    %v2883 = vunpack.c.l.b16 %v2819
    %v2884 = vunpack.c.l.b16 %v2820
    %v2885 = vunpack.c.l.b16 %v2821
    %v2886 = vunpack.c.l.b16 %v2822
    %v2887 = vunpack.c.l.b16 %v2823
    %v2888 = vunpack.c.l.b16 %v2824
    %v2889 = vunpack.c.l.b16 %v2825
    %v2890 = vunpack.c.l.b16 %v2826
    %v2891 = vunpack.c.l.b16 %v2827
    %v2892 = vunpack.c.l.b16 %v2828
    %v2893 = vunpack.c.l.b16 %v2829
    %v2894 = vpack.c.b16 %v2879, %v2878
    %v2895 = vpack.c.b16 %v2881, %v2880
    %v2896 = vpack.c.b16 %v2883, %v2882
    %v2897 = vpack.c.b16 %v2885, %v2884
    %v2898 = vpack.c.b16 %v2887, %v2886
    %v2899 = vpack.c.b16 %v2889, %v2888
    %v2900 = vpack.c.b16 %v2891, %v2890
    %v2901 = vpack.c.b16 %v2893, %v2892
    %2910 = vmatpush.bf16.msra.mxu0 %v2901
    %2911 = vmatpush.bf16.msra.mxu0 %v2900
    %2912 = vmatpush.bf16.msra.mxu0 %v2899
    %2913 = vmatpush.bf16.msra.mxu0 %v2898
    %2914 = vmatpush.bf16.msra.mxu0 %v2897
    %2915 = vmatpush.bf16.msra.mxu0 %v2896
    %2916 = vmatpush.bf16.msra.mxu0 %v2895
    %2917 = vmatpush.bf16.msra.mxu0 %v2894
    %2918 = vmatmul.bf16.gmra.mxu0 %v2846
    %v2919 = vpop.f32.mrf.mxu0
    %v2920 = vadd.f32 0.0, %v2919
    %v2921 = vpop.f32.mrf.mxu0
    %v2922 = vadd.f32 0.0, %v2921
    %2923 = vmatmul.bf16.gmra.mxu0 %v2847
    %v2924 = vpop.f32.mrf.mxu0
    %v2925 = vadd.f32 0.0, %v2924
    %v2926 = vpop.f32.mrf.mxu0
    %v2927 = vadd.f32 0.0, %v2926
    %2928 = vmatmul.bf16.gmra.mxu0 %v2848
    %v2929 = vpop.f32.mrf.mxu0
    %v2930 = vadd.f32 0.0, %v2929
    %v2931 = vpop.f32.mrf.mxu0
    %v2932 = vadd.f32 0.0, %v2931
    %2933 = vmatmul.bf16.gmra.mxu0 %v2849
    %v2934 = vpop.f32.mrf.mxu0
    %v2935 = vadd.f32 0.0, %v2934
    %v2936 = vpop.f32.mrf.mxu0
    %v2937 = vadd.f32 0.0, %v2936
    %2938 = vmatmul.bf16.gmra.mxu0 %v2850
    %v2939 = vpop.f32.mrf.mxu0
    %v2940 = vadd.f32 0.0, %v2939
    %v2941 = vpop.f32.mrf.mxu0
    %v2942 = vadd.f32 0.0, %v2941
    %2943 = vmatmul.bf16.gmra.mxu0 %v2851
    %v2944 = vpop.f32.mrf.mxu0
    %v2945 = vadd.f32 0.0, %v2944
    %v2946 = vpop.f32.mrf.mxu0
    %v2947 = vadd.f32 0.0, %v2946
    %2948 = vmatmul.bf16.gmra.mxu0 %v2852
    %v2949 = vpop.f32.mrf.mxu0
    %v2950 = vadd.f32 0.0, %v2949
    %v2951 = vpop.f32.mrf.mxu0
    %v2952 = vadd.f32 0.0, %v2951
    %2953 = vmatmul.bf16.gmra.mxu0 %v2853
    %v2954 = vpop.f32.mrf.mxu0
    %v2955 = vadd.f32 0.0, %v2954
    %v2956 = vpop.f32.mrf.mxu0
    %v2957 = vadd.f32 0.0, %v2956
    %2958 = vdwg.mxu0
    %v2959 = vadd.f32 %v2541, %v2920
    %v2960 = vadd.f32 %v2542, %v2922
    %v2961 = vadd.f32 %v2543, %v2925
    %v2962 = vadd.f32 %v2544, %v2927
    %v2963 = vadd.f32 %v2545, %v2930
    %v2964 = vadd.f32 %v2546, %v2932
    %v2965 = vadd.f32 %v2547, %v2935
    %v2966 = vadd.f32 %v2548, %v2937
    %v2967 = vadd.f32 %v2549, %v2940
    %v2968 = vadd.f32 %v2550, %v2942
    %v2969 = vadd.f32 %v2551, %v2945
    %v2970 = vadd.f32 %v2552, %v2947
    %v2971 = vadd.f32 %v2553, %v2950
    %v2972 = vadd.f32 %v2554, %v2952
    %v2973 = vadd.f32 %v2555, %v2955
    %v2974 = vadd.f32 %v2556, %v2957
    %v2975 = vld [vmem:[%s2362] sm:$0xe]
    %v2976 = vld [vmem:[%s2362 + $0x8] sm:$0xe]
    %v2977 = vld [vmem:[%s2362 + $0x10] sm:$0xe]
    %v2978 = vld [vmem:[%s2362 + $0x18] sm:$0xe]
    %v2979 = vld [vmem:[%s2362 + $0x20] sm:$0xe]
    %v2980 = vld [vmem:[%s2362 + $0x28] sm:$0xe]
    %v2981 = vld [vmem:[%s2362 + $0x30] sm:$0xe]
    %v2982 = vld [vmem:[%s2362 + $0x38] sm:$0xe]
    %v2983 = vld [vmem:[%s2362 + $0x50] sm:$0xe]
    %v2984 = vld [vmem:[%s2362 + $0x58] sm:$0xe]
    %v2985 = vld [vmem:[%s2362 + $0x60] sm:$0xe]
    %v2986 = vld [vmem:[%s2362 + $0x68] sm:$0xe]
    %v2987 = vld [vmem:[%s2362 + $0x70] sm:$0xe]
    %v2988 = vld [vmem:[%s2362 + $0x78] sm:$0xe]
    %v2989 = vld [vmem:[%s2362 + $0x80] sm:$0xe]
    %v2990 = vld [vmem:[%s2362 + $0x88] sm:$0xe]
    %v3023 = vrot.slane %v2975, 5
    %v3024 = vrot.slane %v3023, 4
    %v3025 = vrot.slane %v2558, 5
    %v3026 = vsel %vm1249, %v3024, %v3025
    %v3027 = vrot.slane %v2976, 5
    %v3028 = vrot.slane %v3027, 4
    %v3029 = vrot.slane %v2560, 5
    %v3030 = vsel %vm1249, %v3028, %v3029
    %v3031 = vrot.slane %v2977, 5
    %v3032 = vrot.slane %v3031, 4
    %v3033 = vrot.slane %v2562, 5
    %v3034 = vsel %vm1249, %v3032, %v3033
    %v3035 = vrot.slane %v2978, 5
    %v3036 = vrot.slane %v3035, 4
    %v3037 = vrot.slane %v2564, 5
    %v3038 = vsel %vm1249, %v3036, %v3037
    %v3039 = vrot.slane %v2979, 5
    %v3040 = vrot.slane %v3039, 4
    %v3041 = vrot.slane %v2566, 5
    %v3042 = vsel %vm1249, %v3040, %v3041
    %v3043 = vrot.slane %v2980, 5
    %v3044 = vrot.slane %v3043, 4
    %v3045 = vrot.slane %v2568, 5
    %v3046 = vsel %vm1249, %v3044, %v3045
    %v3047 = vrot.slane %v2981, 5
    %v3048 = vrot.slane %v3047, 4
    %v3049 = vrot.slane %v2570, 5
    %v3050 = vsel %vm1249, %v3048, %v3049
    %v3051 = vrot.slane %v2982, 5
    %v3052 = vrot.slane %v3051, 4
    %v3053 = vrot.slane %v2572, 5
    %v3054 = vsel %vm1249, %v3052, %v3053
    %v3055 = vrot.slane %v2983, 5
    %v3056 = vrot.slane %v3055, 4
    %v3057 = vrot.slane %v2574, 5
    %v3058 = vsel %vm1249, %v3056, %v3057
    %v3059 = vrot.slane %v2984, 5
    %v3060 = vrot.slane %v3059, 4
    %v3061 = vrot.slane %v2576, 5
    %v3062 = vsel %vm1249, %v3060, %v3061
    %v3063 = vrot.slane %v2985, 5
    %v3064 = vrot.slane %v3063, 4
    %v3065 = vrot.slane %v2578, 5
    %v3066 = vsel %vm1249, %v3064, %v3065
    %v3067 = vrot.slane %v2986, 5
    %v3068 = vrot.slane %v3067, 4
    %v3069 = vrot.slane %v2580, 5
    %v3070 = vsel %vm1249, %v3068, %v3069
    %v3071 = vrot.slane %v2987, 5
    %v3072 = vrot.slane %v3071, 4
    %v3073 = vrot.slane %v2582, 5
    %v3074 = vsel %vm1249, %v3072, %v3073
    %v3075 = vrot.slane %v2988, 5
    %v3076 = vrot.slane %v3075, 4
    %v3077 = vrot.slane %v2584, 5
    %v3078 = vsel %vm1249, %v3076, %v3077
    %v3079 = vrot.slane %v2989, 5
    %v3080 = vrot.slane %v3079, 4
    %v3081 = vrot.slane %v2586, 5
    %v3082 = vsel %vm1249, %v3080, %v3081
    %v3083 = vrot.slane %v2990, 5
    %v3084 = vrot.slane %v3083, 4
    %v3085 = vrot.slane %v2588, 5
    %v3086 = vsel %vm1249, %v3084, %v3085
    %s3087 = scalar_lea.vmem [#allocation8], 512
    %v3088 = vld [vmem:[%s3087] sm:$0xf]
    %v3089 = vld [vmem:[%s3087 + $0x4] sm:$0xf]
    %v3090 = vld [vmem:[%s3087 + $0x8] sm:$0xf]
    %v3091 = vld [vmem:[%s3087 + $0xc] sm:$0xf]
    %v3092 = vld [vmem:[%s3087 + $0x10] sm:$0xf]
    %v3093 = vld [vmem:[%s3087 + $0x14] sm:$0xf]
    %v3094 = vld [vmem:[%s3087 + $0x18] sm:$0xf]
    %v3095 = vld [vmem:[%s3087 + $0x1c] sm:$0xf]
    %v3096 = vld [vmem:[%s3087 + $0x20] sm:$0xf]
    %v3097 = vld [vmem:[%s3087 + $0x24] sm:$0xf]
    %v3098 = vld [vmem:[%s3087 + $0x28] sm:$0xf]
    %v3099 = vld [vmem:[%s3087 + $0x2c] sm:$0xf]
    %v3100 = vld [vmem:[%s3087 + $0x30] sm:$0xf]
    %v3101 = vld [vmem:[%s3087 + $0x34] sm:$0xf]
    %v3102 = vld [vmem:[%s3087 + $0x38] sm:$0xf]
    %v3103 = vld [vmem:[%s3087 + $0x3c] sm:$0xf]
    %v3104 = vunpack.c.l.b16 %v3026
    %v3105 = vunpack.c.l.b16 %v3030
    %v3106 = vunpack.c.l.b16 %v3034
    %v3107 = vunpack.c.l.b16 %v3038
    %v3108 = vunpack.c.l.b16 %v3042
    %v3109 = vunpack.c.l.b16 %v3046
    %v3110 = vunpack.c.l.b16 %v3050
    %v3111 = vunpack.c.l.b16 %v3054
    %v3112 = vunpack.c.l.b16 %v3058
    %v3113 = vunpack.c.l.b16 %v3062
    %v3114 = vunpack.c.l.b16 %v3066
    %v3115 = vunpack.c.l.b16 %v3070
    %v3116 = vunpack.c.l.b16 %v3074
    %v3117 = vunpack.c.l.b16 %v3078
    %v3118 = vunpack.c.l.b16 %v3082
    %v3119 = vunpack.c.l.b16 %v3086
    %v3120 = vpack.c.b16 %v3105, %v3104
    %v3121 = vpack.c.b16 %v3107, %v3106
    %v3122 = vpack.c.b16 %v3109, %v3108
    %v3123 = vpack.c.b16 %v3111, %v3110
    %v3124 = vpack.c.b16 %v3113, %v3112
    %v3125 = vpack.c.b16 %v3115, %v3114
    %v3126 = vpack.c.b16 %v3117, %v3116
    %v3127 = vpack.c.b16 %v3119, %v3118
    %v3152 = vunpack.c.l.b16 %v3088
    %v3153 = vunpack.c.l.b16 %v3089
    %v3154 = vunpack.c.l.b16 %v3090
    %v3155 = vunpack.c.l.b16 %v3091
    %v3156 = vunpack.c.l.b16 %v3092
    %v3157 = vunpack.c.l.b16 %v3093
    %v3158 = vunpack.c.l.b16 %v3094
    %v3159 = vunpack.c.l.b16 %v3095
    %v3160 = vunpack.c.l.b16 %v3096
    %v3161 = vunpack.c.l.b16 %v3097
    %v3162 = vunpack.c.l.b16 %v3098
    %v3163 = vunpack.c.l.b16 %v3099
    %v3164 = vunpack.c.l.b16 %v3100
    %v3165 = vunpack.c.l.b16 %v3101
    %v3166 = vunpack.c.l.b16 %v3102
    %v3167 = vunpack.c.l.b16 %v3103
    %v3168 = vpack.c.b16 %v3153, %v3152
    %v3169 = vpack.c.b16 %v3155, %v3154
    %v3170 = vpack.c.b16 %v3157, %v3156
    %v3171 = vpack.c.b16 %v3159, %v3158
    %v3172 = vpack.c.b16 %v3161, %v3160
    %v3173 = vpack.c.b16 %v3163, %v3162
    %v3174 = vpack.c.b16 %v3165, %v3164
    %v3175 = vpack.c.b16 %v3167, %v3166
    %3184 = vmatpush.bf16.msra.mxu0 %v3175
    %3185 = vmatpush.bf16.msra.mxu0 %v3174
    %3186 = vmatpush.bf16.msra.mxu0 %v3173
    %3187 = vmatpush.bf16.msra.mxu0 %v3172
    %3188 = vmatpush.bf16.msra.mxu0 %v3171
    %3189 = vmatpush.bf16.msra.mxu0 %v3170
    %3190 = vmatpush.bf16.msra.mxu0 %v3169
    %3191 = vmatpush.bf16.msra.mxu0 %v3168
    %3192 = vmatmul.bf16.gmra.mxu0 %v3120
    %v3193 = vpop.f32.mrf.mxu0
    %v3194 = vadd.f32 0.0, %v3193
    %v3195 = vpop.f32.mrf.mxu0
    %v3196 = vadd.f32 0.0, %v3195
    %3197 = vmatmul.bf16.gmra.mxu0 %v3121
    %v3198 = vpop.f32.mrf.mxu0
    %v3199 = vadd.f32 0.0, %v3198
    %v3200 = vpop.f32.mrf.mxu0
    %v3201 = vadd.f32 0.0, %v3200
    %3202 = vmatmul.bf16.gmra.mxu0 %v3122
    %v3203 = vpop.f32.mrf.mxu0
    %v3204 = vadd.f32 0.0, %v3203
    %v3205 = vpop.f32.mrf.mxu0
    %v3206 = vadd.f32 0.0, %v3205
    %3207 = vmatmul.bf16.gmra.mxu0 %v3123
    %v3208 = vpop.f32.mrf.mxu0
    %v3209 = vadd.f32 0.0, %v3208
    %v3210 = vpop.f32.mrf.mxu0
    %v3211 = vadd.f32 0.0, %v3210
    %3212 = vmatmul.bf16.gmra.mxu0 %v3124
    %v3213 = vpop.f32.mrf.mxu0
    %v3214 = vadd.f32 0.0, %v3213
    %v3215 = vpop.f32.mrf.mxu0
    %v3216 = vadd.f32 0.0, %v3215
    %3217 = vmatmul.bf16.gmra.mxu0 %v3125
    %v3218 = vpop.f32.mrf.mxu0
    %v3219 = vadd.f32 0.0, %v3218
    %v3220 = vpop.f32.mrf.mxu0
    %v3221 = vadd.f32 0.0, %v3220
    %3222 = vmatmul.bf16.gmra.mxu0 %v3126
    %v3223 = vpop.f32.mrf.mxu0
    %v3224 = vadd.f32 0.0, %v3223
    %v3225 = vpop.f32.mrf.mxu0
    %v3226 = vadd.f32 0.0, %v3225
    %3227 = vmatmul.bf16.gmra.mxu0 %v3127
    %v3228 = vpop.f32.mrf.mxu0
    %v3229 = vadd.f32 0.0, %v3228
    %v3230 = vpop.f32.mrf.mxu0
    %v3231 = vadd.f32 0.0, %v3230
    %3232 = vdwg.mxu0
    %v3233 = vadd.f32 %v2959, %v3194
    %v3234 = vadd.f32 %v2960, %v3196
    %v3235 = vadd.f32 %v2961, %v3199
    %v3236 = vadd.f32 %v2962, %v3201
    %v3237 = vadd.f32 %v2963, %v3204
    %v3238 = vadd.f32 %v2964, %v3206
    %v3239 = vadd.f32 %v2965, %v3209
    %v3240 = vadd.f32 %v2966, %v3211
    %v3241 = vadd.f32 %v2967, %v3214
    %v3242 = vadd.f32 %v2968, %v3216
    %v3243 = vadd.f32 %v2969, %v3219
    %v3244 = vadd.f32 %v2970, %v3221
    %v3245 = vadd.f32 %v2971, %v3224
    %v3246 = vadd.f32 %v2972, %v3226
    %v3247 = vadd.f32 %v2973, %v3229
    %v3248 = vadd.f32 %v2974, %v3231
    %v3249 = vld [vmem:[%s4] sm:$0x1]
    %v3251 = vperm.slane %v3249, 0
    %v3253 = vadd.f32 %v3233, %v3251
    %v3254 = vadd.f32 %v3234, %v3251
    %v3255 = vadd.f32 %v3235, %v3251
    %v3256 = vadd.f32 %v3236, %v3251
    %v3257 = vadd.f32 %v3237, %v3251
    %v3258 = vadd.f32 %v3238, %v3251
    %v3259 = vadd.f32 %v3239, %v3251
    %v3260 = vadd.f32 %v3240, %v3251
    %v3261 = vadd.f32 %v3241, %v3251
    %v3262 = vadd.f32 %v3242, %v3251
    %v3263 = vadd.f32 %v3243, %v3251
    %v3264 = vadd.f32 %v3244, %v3251
    %v3265 = vadd.f32 %v3245, %v3251
    %v3266 = vadd.f32 %v3246, %v3251
    %v3267 = vadd.f32 %v3247, %v3251
    %v3268 = vadd.f32 %v3248, %v3251
    %v3269 = vmax.f32 %v3253, 0.0
    %v3270 = vmax.f32 %v3254, 0.0
    %v3271 = vmax.f32 %v3255, 0.0
    %v3272 = vmax.f32 %v3256, 0.0
    %v3273 = vmax.f32 %v3257, 0.0
    %v3274 = vmax.f32 %v3258, 0.0
    %v3275 = vmax.f32 %v3259, 0.0
    %v3276 = vmax.f32 %v3260, 0.0
    %v3277 = vmax.f32 %v3261, 0.0
    %v3278 = vmax.f32 %v3262, 0.0
    %v3279 = vmax.f32 %v3263, 0.0
    %v3280 = vmax.f32 %v3264, 0.0
    %v3281 = vmax.f32 %v3265, 0.0
    %v3282 = vmax.f32 %v3266, 0.0
    %v3283 = vmax.f32 %v3267, 0.0
    %v3284 = vmax.f32 %v3268, 0.0
    %v3285 = vpack.c.bf16 %v3270, %v3269
    %v3286 = vpack.c.bf16 %v3272, %v3271
    %v3287 = vpack.c.bf16 %v3274, %v3273
    %v3288 = vpack.c.bf16 %v3276, %v3275
    %v3289 = vpack.c.bf16 %v3278, %v3277
    %v3290 = vpack.c.bf16 %v3280, %v3279
    %v3291 = vpack.c.bf16 %v3282, %v3281
    %v3292 = vpack.c.bf16 %v3284, %v3283
    %v3293 = vld [vmem:[#allocation9] sm:$0xf]
    %v3294 = vld [vmem:[#allocation9 + $0x4] sm:$0xf]
    %v3295 = vld [vmem:[#allocation9 + $0x8] sm:$0xf]
    %v3296 = vld [vmem:[#allocation9 + $0xc] sm:$0xf]
    %v3297 = vld [vmem:[#allocation9 + $0x10] sm:$0xf]
    %v3298 = vld [vmem:[#allocation9 + $0x14] sm:$0xf]
    %v3299 = vld [vmem:[#allocation9 + $0x18] sm:$0xf]
    %v3300 = vld [vmem:[#allocation9 + $0x1c] sm:$0xf]
    %v3301 = vld [vmem:[#allocation9 + $0x20] sm:$0xf]
    %v3302 = vld [vmem:[#allocation9 + $0x24] sm:$0xf]
    %v3303 = vld [vmem:[#allocation9 + $0x28] sm:$0xf]
    %v3304 = vld [vmem:[#allocation9 + $0x2c] sm:$0xf]
    %v3305 = vld [vmem:[#allocation9 + $0x30] sm:$0xf]
    %v3306 = vld [vmem:[#allocation9 + $0x34] sm:$0xf]
    %v3307 = vld [vmem:[#allocation9 + $0x38] sm:$0xf]
    %v3308 = vld [vmem:[#allocation9 + $0x3c] sm:$0xf]
    %v3309 = vld [vmem:[%s6] sm:$0x1]
    %v3311 = vperm.slane %v3309, 0
    %v3329 = vunpack.c.l.b16 %v3293
    %v3330 = vunpack.c.l.b16 %v3294
    %v3331 = vunpack.c.l.b16 %v3295
    %v3332 = vunpack.c.l.b16 %v3296
    %v3333 = vunpack.c.l.b16 %v3297
    %v3334 = vunpack.c.l.b16 %v3298
    %v3335 = vunpack.c.l.b16 %v3299
    %v3336 = vunpack.c.l.b16 %v3300
    %v3337 = vunpack.c.l.b16 %v3301
    %v3338 = vunpack.c.l.b16 %v3302
    %v3339 = vunpack.c.l.b16 %v3303
    %v3340 = vunpack.c.l.b16 %v3304
    %v3341 = vunpack.c.l.b16 %v3305
    %v3342 = vunpack.c.l.b16 %v3306
    %v3343 = vunpack.c.l.b16 %v3307
    %v3344 = vunpack.c.l.b16 %v3308
    %v3345 = vpack.c.b16 %v3330, %v3329
    %v3346 = vpack.c.b16 %v3332, %v3331
    %v3347 = vpack.c.b16 %v3334, %v3333
    %v3348 = vpack.c.b16 %v3336, %v3335
    %v3349 = vpack.c.b16 %v3338, %v3337
    %v3350 = vpack.c.b16 %v3340, %v3339
    %v3351 = vpack.c.b16 %v3342, %v3341
    %v3352 = vpack.c.b16 %v3344, %v3343
    %3361 = vmatpush.bf16.msra.mxu0 %v3352
    %3362 = vmatpush.bf16.msra.mxu0 %v3351
    %3363 = vmatpush.bf16.msra.mxu0 %v3350
    %3364 = vmatpush.bf16.msra.mxu0 %v3349
    %3365 = vmatpush.bf16.msra.mxu0 %v3348
    %3366 = vmatpush.bf16.msra.mxu0 %v3347
    %3367 = vmatpush.bf16.msra.mxu0 %v3346
    %3368 = vmatpush.bf16.msra.mxu0 %v3345
    %3369 = vmatmul.bf16.gmra.mxu0 %v3285
    %v3370 = vpop.f32.mrf.mxu0
    %v3371 = vadd.f32 %v3311, %v3370
    %v3372 = vpop.f32.mrf.mxu0
    %v3373 = vadd.f32 %v3311, %v3372
    %3374 = vmatmul.bf16.gmra.mxu0 %v3286
    %v3375 = vpop.f32.mrf.mxu0
    %v3376 = vadd.f32 %v3311, %v3375
    %v3377 = vpop.f32.mrf.mxu0
    %v3378 = vadd.f32 %v3311, %v3377
    %3379 = vmatmul.bf16.gmra.mxu0 %v3287
    %v3380 = vpop.f32.mrf.mxu0
    %v3381 = vadd.f32 %v3311, %v3380
    %v3382 = vpop.f32.mrf.mxu0
    %v3383 = vadd.f32 %v3311, %v3382
    %3384 = vmatmul.bf16.gmra.mxu0 %v3288
    %v3385 = vpop.f32.mrf.mxu0
    %v3386 = vadd.f32 %v3311, %v3385
    %v3387 = vpop.f32.mrf.mxu0
    %v3388 = vadd.f32 %v3311, %v3387
    %3389 = vmatmul.bf16.gmra.mxu0 %v3289
    %v3390 = vpop.f32.mrf.mxu0
    %v3391 = vadd.f32 %v3311, %v3390
    %v3392 = vpop.f32.mrf.mxu0
    %v3393 = vadd.f32 %v3311, %v3392
    %3394 = vmatmul.bf16.gmra.mxu0 %v3290
    %v3395 = vpop.f32.mrf.mxu0
    %v3396 = vadd.f32 %v3311, %v3395
    %v3397 = vpop.f32.mrf.mxu0
    %v3398 = vadd.f32 %v3311, %v3397
    %3399 = vmatmul.bf16.gmra.mxu0 %v3291
    %v3400 = vpop.f32.mrf.mxu0
    %v3401 = vadd.f32 %v3311, %v3400
    %v3402 = vpop.f32.mrf.mxu0
    %v3403 = vadd.f32 %v3311, %v3402
    %3404 = vmatmul.bf16.gmra.mxu0 %v3292
    %v3405 = vpop.f32.mrf.mxu0
    %v3406 = vadd.f32 %v3311, %v3405
    %v3407 = vpop.f32.mrf.mxu0
    %v3408 = vadd.f32 %v3311, %v3407
    %3409 = vdwg.mxu0
    %v3410 = vld [vmem:[#allocation3] sm:$0xff]
    %v3411 = vld [vmem:[#allocation3 + $0x8] sm:$0xff]
    %v3412 = vld [vmem:[#allocation3 + $0x10] sm:$0xff]
    %v3413 = vld [vmem:[#allocation3 + $0x18] sm:$0xff]
    %v3414 = vld [vmem:[#allocation3 + $0x20] sm:$0xff]
    %v3415 = vld [vmem:[#allocation3 + $0x28] sm:$0xff]
    %v3416 = vld [vmem:[#allocation3 + $0x30] sm:$0xff]
    %v3417 = vld [vmem:[#allocation3 + $0x38] sm:$0xff]
    %v3418 = vld [vmem:[#allocation3 + $0x40] sm:$0xff]
    %v3419 = vld [vmem:[#allocation3 + $0x48] sm:$0xff]
    %v3420 = vld [vmem:[#allocation3 + $0x50] sm:$0xff]
    %v3421 = vld [vmem:[#allocation3 + $0x58] sm:$0xff]
    %v3422 = vld [vmem:[#allocation3 + $0x60] sm:$0xff]
    %v3423 = vld [vmem:[#allocation3 + $0x68] sm:$0xff]
    %v3424 = vld [vmem:[#allocation3 + $0x70] sm:$0xff]
    %v3425 = vld [vmem:[#allocation3 + $0x78] sm:$0xff]
    %v3426 = vadd.f32 %v3371, %v3410
    %v3427 = vadd.f32 %v3373, %v3411
    %v3428 = vadd.f32 %v3376, %v3412
    %v3429 = vadd.f32 %v3378, %v3413
    %v3430 = vadd.f32 %v3381, %v3414
    %v3431 = vadd.f32 %v3383, %v3415
    %v3432 = vadd.f32 %v3386, %v3416
    %v3433 = vadd.f32 %v3388, %v3417
    %v3434 = vadd.f32 %v3391, %v3418
    %v3435 = vadd.f32 %v3393, %v3419
    %v3436 = vadd.f32 %v3396, %v3420
    %v3437 = vadd.f32 %v3398, %v3421
    %v3438 = vadd.f32 %v3401, %v3422
    %v3439 = vadd.f32 %v3403, %v3423
    %v3440 = vadd.f32 %v3406, %v3424
    %v3441 = vadd.f32 %v3408, %v3425
    %v3442 = vmax.f32 %v3426, 0.0
    %v3443 = vmax.f32 %v3427, 0.0
    %v3444 = vmax.f32 %v3428, 0.0
    %v3445 = vmax.f32 %v3429, 0.0
    %v3446 = vmax.f32 %v3430, 0.0
    %v3447 = vmax.f32 %v3431, 0.0
    %v3448 = vmax.f32 %v3432, 0.0
    %v3449 = vmax.f32 %v3433, 0.0
    %v3450 = vmax.f32 %v3434, 0.0
    %v3451 = vmax.f32 %v3435, 0.0
    %v3452 = vmax.f32 %v3436, 0.0
    %v3453 = vmax.f32 %v3437, 0.0
    %v3454 = vmax.f32 %v3438, 0.0
    %v3455 = vmax.f32 %v3439, 0.0
    %v3456 = vmax.f32 %v3440, 0.0
    %v3457 = vmax.f32 %v3441, 0.0
    %3458 = vst [vmem:[#allocation11] sm:$0xff] %v3442
    %3459 = vst [vmem:[#allocation11 + $0x8] sm:$0xff] %v3443
    %3460 = vst [vmem:[#allocation11 + $0x10] sm:$0xff] %v3444
    %3461 = vst [vmem:[#allocation11 + $0x18] sm:$0xff] %v3445
    %3462 = vst [vmem:[#allocation11 + $0x20] sm:$0xff] %v3446
    %3463 = vst [vmem:[#allocation11 + $0x28] sm:$0xff] %v3447
    %3464 = vst [vmem:[#allocation11 + $0x30] sm:$0xff] %v3448
    %3465 = vst [vmem:[#allocation11 + $0x38] sm:$0xff] %v3449
    %3466 = vst [vmem:[#allocation11 + $0x40] sm:$0xff] %v3450
    %3467 = vst [vmem:[#allocation11 + $0x48] sm:$0xff] %v3451
    %3468 = vst [vmem:[#allocation11 + $0x50] sm:$0xff] %v3452
    %3469 = vst [vmem:[#allocation11 + $0x58] sm:$0xff] %v3453
    %3470 = vst [vmem:[#allocation11 + $0x60] sm:$0xff] %v3454
    %3471 = vst [vmem:[#allocation11 + $0x68] sm:$0xff] %v3455
    %3472 = vst [vmem:[#allocation11 + $0x70] sm:$0xff] %v3456
    %3473 = vst [vmem:[#allocation11 + $0x78] sm:$0xff] %v3457
    // Predicated region
    $region46: #{tpu_custom_call.1} parent=1 // pred_check
      _
    $region47: #{tpu_custom_call.1} parent=1 // pred_check_branch
      %3475 = sbr.rel (0) target = $region49
    $region48: #{tpu_custom_call.1} parent=1 // pred_region
      %3477 = vsyncadd [#allocation5], 0
      %s3478 = sshll.u32 [#allocation11], 4
      %s3479 = int_to_ptr.vmem [resolvable:$true] %s3478
      %s3480 = sshll.u32 %s7, 4
      %s3481 = int_to_ptr.hbm [resolvable:$true] %s3480
      %3486 = dma.vmem_to_hbm [thread:$0]  %s3479, 2048, %s3481, [#allocation5], 128, 128, 8
    $region49: #{tpu_custom_call.1} parent=1 // pred_fallthru
      _
    // Predicated region
    $region50: #{tpu_custom_call.1} parent=1 // pred_check
      _
    $region51: #{tpu_custom_call.1} parent=1 // pred_check_branch
      %3488 = sbr.rel (0) target = $region53
    $region52: #{tpu_custom_call.1} parent=1 // pred_region
      %3490 = dma.done [#allocation5], 2048
    $region53: #{tpu_custom_call.1} parent=1 // pred_fallthru
      _
    %3491 = vsyncpa [#allocation4], 1
    %3492 = vsyncpa [#allocation7], 1
    %3493 = vsyncpa [#allocation10], 1
    %3494 = vsyncpa [#allocation5], 1

</llo_original>
